<compile_context>
chip_gen: v6e
topology: v6e:2x2x1
jax: 0.10.0
libtpu: 0.0.40
codegen_flags: <defaults>
</compile_context>

<pallas_src>
import functools

import jax
import jax.numpy as jnp
from jax import lax
from jax.experimental import pallas as pl
from jax.experimental.pallas import tpu as pltpu

HEAD_PAD = 128       # per-head (mu / logvar) lane-padded width
DEC_HIDDEN = 20      # decoder hidden width from the PyTorch module


# ----------------------------------------------------------------------------
# Kernel
# ----------------------------------------------------------------------------
def hmmved_kernel(
    vis_ref, txt_ref, eps_ref,
    vd_w, enc1_w, enc2_w, head_w, dec_w, bias_ref,
    out_ref,
    *, feature_size,
):
    f32 = jnp.float32
    bf16 = jnp.bfloat16
    F = feature_size
    HP = HEAD_PAD

    # Static, 128-aligned offsets into the flat (1, F + 2304) f32 bias buffer.
    o_vd = 0
    o_ve1 = F
    o_ve2 = F + 512
    o_te1 = F + 768
    o_te2 = F + 1280
    o_vh = F + 1536      # [v_mu_b | v_lv_b], each padded to 128
    o_th = F + 1792      # [t_mu_b | t_lv_b]
    o_d1 = F + 2048
    o_d2 = F + 2176

    def bias(off, width):
        return bias_ref[:, off:off + width]

    def dense(x, w, b, relu=False):
        # bf16 operands into the MXU, f32 accumulation, f32 bias/activation.
        y = jnp.dot(x.astype(bf16), w, preferred_element_type=f32) + b
        return jnp.maximum(y, 0.0) if relu else y

    v = vis_ref[...]   # bf16 from the wrapper
    t = txt_ref[...]

    # visual_dense_layer (VisualEncoder stand-in): Linear(F, F) + ReLU
    v = dense(v, vd_w[...], bias(o_vd, F), relu=True)
    # visual_encoder / textual_encoder stage 1: Linear(F, 512) + ReLU
    v = dense(v, enc1_w[0:F, :], bias(o_ve1, 512), relu=True)
    t = dense(t, enc1_w[F:2 * F, :], bias(o_te1, 512), relu=True)
    # stage 2: Linear(512, 256) + ReLU
    v = dense(v, enc2_w[0:512, :], bias(o_ve2, 256), relu=True)
    t = dense(t, enc2_w[512:1024, :], bias(o_te2, 256), relu=True)

    # Per-modality fused heads: one (256 -> 2*128) matmul each; mu / logvar
    # land on 128-lane boundaries so the slices below are free views.
    v_heads = dense(v, head_w[0:256, :], bias(o_vh, 2 * HP))
    t_heads = dense(t, head_w[256:512, :], bias(o_th, 2 * HP))
    v_mu, v_lv = v_heads[:, 0:HP], v_heads[:, HP:2 * HP]
    t_mu, t_lv = t_heads[:, 0:HP], t_heads[:, HP:2 * HP]

    # Product-of-experts fusion + reparameterization (f32, EUP-routed).
    # prec = 1 / exp(0.5*logvar)^2 == exp(-logvar); pad cols give prec=1 -> safe.
    v_prec = jnp.exp(-v_lv)
    t_prec = jnp.exp(-t_lv)
    denom = v_prec + t_prec
    poe_mu = (v_mu * v_prec + t_mu * t_prec) * pl.reciprocal(denom, approx=True)
    poe_std = lax.rsqrt(denom)
    z = poe_mu + eps_ref[...] * poe_std          # pad cols: 0 + 0*rsqrt(2) = 0

    # decoder: Linear(L, 20) + ReLU, Linear(20, 1); both padded to 128 lanes
    # (zero rows/cols) so the K dims are 128 and the output store is lane-dense.
    h = dense(z, dec_w[0:HP, :], bias(o_d1, HP), relu=True)
    out_ref[...] = dense(h, dec_w[HP:2 * HP, :], bias(o_d2, HP)).astype(out_ref.dtype)


# ----------------------------------------------------------------------------
# Parameter construction (deterministic, PyTorch-Linear-style init)
# ----------------------------------------------------------------------------
def _linear_params(key, fan_in, fan_out):
    kw, kb = jax.random.split(key)
    bound = 1.0 / jnp.sqrt(float(fan_in))
    w = jax.random.uniform(kw, (fan_in, fan_out), jnp.float32, -bound, bound)
    b = jax.random.uniform(kb, (1, fan_out), jnp.float32, -bound, bound)
    return w, b


def make_params(key, feature_size, latent_size):
    keys = jax.random.split(key, 12)
    p = {}
    p["vd"] = _linear_params(keys[0], feature_size, feature_size)
    p["ve1"] = _linear_params(keys[1], feature_size, 512)
    p["ve2"] = _linear_params(keys[2], 512, 256)
    p["te1"] = _linear_params(keys[3], feature_size, 512)
    p["te2"] = _linear_params(keys[4], 512, 256)
    p["v_mu"] = _linear_params(keys[5], 256, latent_size)
    p["v_lv"] = _linear_params(keys[6], 256, latent_size)
    p["t_mu"] = _linear_params(keys[7], 256, latent_size)
    p["t_lv"] = _linear_params(keys[8], 256, latent_size)
    p["d1"] = _linear_params(keys[9], latent_size, DEC_HIDDEN)
    p["d2"] = _linear_params(keys[10], DEC_HIDDEN, 1)
    return p


def pack_params(params, dtype=jnp.bfloat16):
    """Kernel layout: 5 bf16 weight slabs + one flat f32 bias buffer.

    Heads and decoder are zero-padded to 128 lanes so every in-kernel slice
    is lane-aligned; the extra zero columns/rows are numerically inert.
    """
    HP = HEAD_PAD
    F = params["vd"][0].shape[0]
    L = params["v_mu"][0].shape[1]
    assert F % 128 == 0, "feature_size must be a multiple of 128"
    assert L <= HP, "latent_size must be <= 128"

    def padw(w, rows, cols):
        out = jnp.zeros((rows, cols), jnp.float32)
        return out.at[:w.shape[0], :w.shape[1]].set(w)

    def padb(b, width):
        out = jnp.zeros((1, width), jnp.float32)
        return out.at[:, :b.shape[1]].set(b)

    vd_w, vd_b = params["vd"]
    ve1_w, ve1_b = params["ve1"]
    ve2_w, ve2_b = params["ve2"]
    te1_w, te1_b = params["te1"]
    te2_w, te2_b = params["te2"]
    v_mu_w, v_mu_b = params["v_mu"]
    v_lv_w, v_lv_b = params["v_lv"]
    t_mu_w, t_mu_b = params["t_mu"]
    t_lv_w, t_lv_b = params["t_lv"]
    d1_w, d1_b = params["d1"]
    d2_w, d2_b = params["d2"]

    enc1_w = jnp.concatenate([ve1_w, te1_w], axis=0)              # (2F, 512)
    enc2_w = jnp.concatenate([ve2_w, te2_w], axis=0)              # (1024, 256)
    head_v = jnp.concatenate([padw(v_mu_w, 256, HP), padw(v_lv_w, 256, HP)], axis=1)
    head_t = jnp.concatenate([padw(t_mu_w, 256, HP), padw(t_lv_w, 256, HP)], axis=1)
    head_w = jnp.concatenate([head_v, head_t], axis=0)            # (512, 256)
    dec_w = jnp.concatenate([padw(d1_w, HP, HP), padw(d2_w, HP, HP)], axis=0)  # (256, 128)

    bias_all = jnp.concatenate(
        [vd_b, ve1_b, ve2_b, te1_b, te2_b,
         padb(v_mu_b, HP), padb(v_lv_b, HP),
         padb(t_mu_b, HP), padb(t_lv_b, HP),
         padb(d1_b, HP), padb(d2_b, HP)],
        axis=1).astype(jnp.float32)                               # (1, F + 2304)

    weights = {
        "vd": vd_w.astype(dtype),
        "enc1": enc1_w.astype(dtype),
        "enc2": enc2_w.astype(dtype),
        "head": head_w.astype(dtype),
        "dec": dec_w.astype(dtype),
    }
    return {"weights": weights, "bias": bias_all}


# ----------------------------------------------------------------------------
# Wrapper
# ----------------------------------------------------------------------------
def pick_batch_tile(batch):
    """Single-TC chips (v5e/v6e): one big tile. Dual-TC chips (v7x/v4/v5p):
    keep >=2 parallel tiles so the grid feeds both TensorCores."""
    try:
        kind = jax.devices()[0].device_kind.lower()
    except Exception:  # pragma: no cover - defensive
        kind = ""
    dual_tc = any(s in kind for s in ("v7", "v4", "v5p"))
    if dual_tc:
        tile = max(128, min(256, -(-batch // 2)))
    else:
        tile = min(512, batch)
    return max(8, ((tile + 7) // 8) * 8)


@functools.partial(jax.jit, static_argnames=("batch_tile",))
def _hmmved_forward_impl(visual_feature, textual_feature, eps,
                         weights, bias_all, batch_tile):
    B = visual_feature.shape[0]
    F = weights["vd"].shape[0]
    HP = HEAD_PAD

    # pad batch to a multiple of the tile
    pad = (-B) % batch_tile
    if pad:
        visual_feature = jnp.pad(visual_feature, ((0, pad), (0, 0)))
        textual_feature = jnp.pad(textual_feature, ((0, pad), (0, 0)))
        eps = jnp.pad(eps, ((0, pad), (0, 0)))
    Bp = B + pad

    # pad eps lanes to 128 so the PoE / reparam block is fully lane-dense
    L = eps.shape[1]
    if L < HP:
        eps = jnp.pad(eps, ((0, 0), (0, HP - L)))

    vis = visual_feature.astype(jnp.bfloat16)
    txt = textual_feature.astype(jnp.bfloat16)
    eps = eps.astype(jnp.float32)

    w_list = (weights["vd"], weights["enc1"], weights["enc2"],
              weights["head"], weights["dec"], bias_all)

    def batch_spec(arr):
        return pl.BlockSpec((batch_tile, arr.shape[1]), lambda i: (i, 0))

    def full_spec(arr):
        # grid-invariant weights/biases: constant index_map -> fetched once.
        return pl.BlockSpec(arr.shape, lambda i: (0, 0))

    out = pl.pallas_call(
        functools.partial(hmmved_kernel, feature_size=F),
        out_shape=jax.ShapeDtypeStruct((Bp, HP), jnp.bfloat16),
        grid=(Bp // batch_tile,),
        in_specs=([batch_spec(vis), batch_spec(txt), batch_spec(eps)]
                  + [full_spec(a) for a in w_list]),
        out_specs=pl.BlockSpec((batch_tile, HP), lambda i: (i, 0)),
        compiler_params=pltpu.CompilerParams(
            dimension_semantics=("parallel",),
            vmem_limit_bytes=16 * 1024 * 1024,
        ),
    )(vis, txt, eps, *w_list)

    # real decoder output is column 0 of the lane-dense padded bf16 result
    return out[:B, :1].astype(jnp.float32)


def hmmved_forward(visual_feature, textual_feature, eps, packed, batch_tile=None):
    if batch_tile is None:
        batch_tile = pick_batch_tile(visual_feature.shape[0])
    return _hmmved_forward_impl(visual_feature, textual_feature, eps,
                                packed["weights"], packed["bias"], batch_tile)


# ----------------------------------------------------------------------------
# Pure-JAX reference (same bf16-matmul numerics, exact elementwise math)
# ----------------------------------------------------------------------------
def hmmved_reference(visual_feature, textual_feature, eps, params):
    bf16 = jnp.bfloat16

    def dense(x, wb, relu=False):
        w, b = wb
        y = jnp.dot(x.astype(bf16), w.astype(bf16),
                    preferred_element_type=jnp.float32) + b
        return jnp.maximum(y, 0.0) if relu else y

    v = dense(visual_feature, params["vd"], relu=True)
    v = dense(v, params["ve1"], relu=True)
    v = dense(v, params["ve2"], relu=True)
    t = dense(textual_feature, params["te1"], relu=True)
    t = dense(t, params["te2"], relu=True)
    v_lv = dense(v, params["v_lv"])
    t_lv = dense(t, params["t_lv"])
    v_mu = dense(v, params["v_mu"])
    t_mu = dense(t, params["t_mu"])
    v_std = jnp.exp(0.5 * v_lv)
    t_std = jnp.exp(0.5 * t_lv)
    v_prec = 1.0 / v_std ** 2
    t_prec = 1.0 / t_std ** 2
    poe_mu = (v_mu * v_prec + t_mu * t_prec) / (v_prec + t_prec)
    poe_std = jnp.sqrt(1.0 / (v_prec + t_prec))
    z = poe_mu + eps * poe_std
    h = dense(z, params["d1"], relu=True)
    return dense(h, params["d2"])


# ----------------------------------------------------------------------------
# Main
# ----------------------------------------------------------------------------
if __name__ == "__main__":
    FEATURE_SIZE = 256   # small stand-in for default 768 (multiple of 128)
    LATENT_SIZE = 32     # small stand-in for default 50 (<= 128, lane-padded)
    BATCH = 256

    root = jax.random.PRNGKey(0)
    k_vis, k_txt, k_eps, k_par = jax.random.split(root, 4)

    visual_feature = jax.random.normal(k_vis, (BATCH, FEATURE_SIZE), jnp.float32)
    textual_feature = jax.random.normal(k_txt, (BATCH, FEATURE_SIZE), jnp.float32)
    eps = jax.random.normal(k_eps, (BATCH, LATENT_SIZE), jnp.float32)

    params = make_params(k_par, FEATURE_SIZE, LATENT_SIZE)
    packed = pack_params(params)

    out = hmmved_forward(visual_feature, textual_feature, eps, packed)
    out = jax.block_until_ready(out)

    ref = hmmved_reference(visual_feature, textual_feature, eps, params)
    assert out.shape == (BATCH, 1)
    assert jnp.allclose(out, ref, atol=3e-2, rtol=3e-2), (out, ref)

    print("KERNEL_OK")
</pallas_src>

<mosaic_0001>
module attributes {stable_mosaic.version = 11 : i64} {
  func.func @hmmved_kernel(%arg0: i32, %arg1: memref<256x256xbf16, #tpu.memory_space<vmem>>, %arg2: memref<256x256xbf16, #tpu.memory_space<vmem>>, %arg3: memref<256x128xf32, #tpu.memory_space<vmem>>, %arg4: memref<256x256xbf16, #tpu.memory_space<vmem>>, %arg5: memref<512x512xbf16, #tpu.memory_space<vmem>>, %arg6: memref<1024x256xbf16, #tpu.memory_space<vmem>>, %arg7: memref<512x256xbf16, #tpu.memory_space<vmem>>, %arg8: memref<256x128xbf16, #tpu.memory_space<vmem>>, %arg9: memref<1x2560xf32, #tpu.memory_space<vmem>>, %arg10: memref<256x128xbf16, #tpu.memory_space<vmem>>) attributes {dimension_semantics = [#tpu.dimension_semantics<parallel>], iteration_bounds = array<i64: 1>, scalar_prefetch = 0 : i64, scratch_operands = 0 : i64, tpu.core_type = #tpu.core_type<tc>, window_params = [{transform_indices = @transform_0, window_bounds = array<i64: 256, 256>}, {transform_indices = @transform_1, window_bounds = array<i64: 256, 256>}, {transform_indices = @transform_2, window_bounds = array<i64: 256, 128>}, {pipeline_mode = #tpu.pipeline_mode<synchronous>, transform_indices = @transform_3, window_bounds = array<i64: 256, 256>}, {pipeline_mode = #tpu.pipeline_mode<synchronous>, transform_indices = @transform_4, window_bounds = array<i64: 512, 512>}, {pipeline_mode = #tpu.pipeline_mode<synchronous>, transform_indices = @transform_5, window_bounds = array<i64: 1024, 256>}, {pipeline_mode = #tpu.pipeline_mode<synchronous>, transform_indices = @transform_6, window_bounds = array<i64: 512, 256>}, {pipeline_mode = #tpu.pipeline_mode<synchronous>, transform_indices = @transform_7, window_bounds = array<i64: 256, 128>}, {pipeline_mode = #tpu.pipeline_mode<synchronous>, transform_indices = @transform_8, window_bounds = array<i64: 1, 2560>}, {transform_indices = @transform_9, window_bounds = array<i64: 256, 128>}]} {
    %c0 = arith.constant 0 : index
    %c0_0 = arith.constant 0 : index
    %0 = vector.load %arg1[%c0, %c0_0] : memref<256x256xbf16, #tpu.memory_space<vmem>>, vector<256x256xbf16>
    %c0_1 = arith.constant 0 : index
    %c0_2 = arith.constant 0 : index
    %1 = vector.load %arg2[%c0_1, %c0_2] : memref<256x256xbf16, #tpu.memory_space<vmem>>, vector<256x256xbf16>
    %c0_3 = arith.constant 0 : index
    %c0_4 = arith.constant 0 : index
    %2 = vector.load %arg4[%c0_3, %c0_4] : memref<256x256xbf16, #tpu.memory_space<vmem>>, vector<256x256xbf16>
    %c0_5 = arith.constant 0 : index
    %c0_6 = arith.constant 0 : index
    %3 = vector.load %arg9[%c0_5, %c0_6] : memref<1x2560xf32, #tpu.memory_space<vmem>>, vector<1x256xf32>
    %cst = arith.constant dense<0.000000e+00> : vector<256x256xf32>
    %4 = tpu.matmul %0, %2, %cst {dimension_numbers = #tpu.dot_dimension_numbers<[1], [0], [0], [1], [0, 0, 1, 1], [], []>} : vector<256x256xbf16>, vector<256x256xbf16>, vector<256x256xf32> -> vector<256x256xf32>
    %5 = vector.broadcast %3 : vector<1x256xf32> to vector<256x256xf32>
    %6 = arith.addf %4, %5 : vector<256x256xf32>
    %cst_7 = arith.constant 0.000000e+00 : f32
    %7 = vector.broadcast %cst_7 : f32 to vector<256x256xf32>
    %8 = arith.maximumf %6, %7 : vector<256x256xf32>
    %c0_8 = arith.constant 0 : index
    %c0_9 = arith.constant 0 : index
    %9 = vector.load %arg5[%c0_8, %c0_9] : memref<512x512xbf16, #tpu.memory_space<vmem>>, vector<256x512xbf16>
    %c0_10 = arith.constant 0 : index
    %c256 = arith.constant 256 : index
    %10 = vector.load %arg9[%c0_10, %c256] : memref<1x2560xf32, #tpu.memory_space<vmem>>, vector<1x512xf32>
    %11 = arith.truncf %8 : vector<256x256xf32> to vector<256x256xbf16>
    %cst_11 = arith.constant dense<0.000000e+00> : vector<256x512xf32>
    %12 = tpu.matmul %11, %9, %cst_11 {dimension_numbers = #tpu.dot_dimension_numbers<[1], [0], [0], [1], [0, 0, 1, 1], [], []>} : vector<256x256xbf16>, vector<256x512xbf16>, vector<256x512xf32> -> vector<256x512xf32>
    %13 = vector.broadcast %10 : vector<1x512xf32> to vector<256x512xf32>
    %14 = arith.addf %12, %13 : vector<256x512xf32>
    %cst_12 = arith.constant 0.000000e+00 : f32
    %15 = vector.broadcast %cst_12 : f32 to vector<256x512xf32>
    %16 = arith.maximumf %14, %15 : vector<256x512xf32>
    %c256_13 = arith.constant 256 : index
    %c0_14 = arith.constant 0 : index
    %17 = vector.load %arg5[%c256_13, %c0_14] : memref<512x512xbf16, #tpu.memory_space<vmem>>, vector<256x512xbf16>
    %c0_15 = arith.constant 0 : index
    %c1024 = arith.constant 1024 : index
    %18 = vector.load %arg9[%c0_15, %c1024] : memref<1x2560xf32, #tpu.memory_space<vmem>>, vector<1x512xf32>
    %cst_16 = arith.constant dense<0.000000e+00> : vector<256x512xf32>
    %19 = tpu.matmul %1, %17, %cst_16 {dimension_numbers = #tpu.dot_dimension_numbers<[1], [0], [0], [1], [0, 0, 1, 1], [], []>} : vector<256x256xbf16>, vector<256x512xbf16>, vector<256x512xf32> -> vector<256x512xf32>
    %20 = vector.broadcast %18 : vector<1x512xf32> to vector<256x512xf32>
    %21 = arith.addf %19, %20 : vector<256x512xf32>
    %cst_17 = arith.constant 0.000000e+00 : f32
    %22 = vector.broadcast %cst_17 : f32 to vector<256x512xf32>
    %23 = arith.maximumf %21, %22 : vector<256x512xf32>
    %c0_18 = arith.constant 0 : index
    %c0_19 = arith.constant 0 : index
    %24 = vector.load %arg6[%c0_18, %c0_19] : memref<1024x256xbf16, #tpu.memory_space<vmem>>, vector<512x256xbf16>
    %c0_20 = arith.constant 0 : index
    %c768 = arith.constant 768 : index
    %25 = vector.load %arg9[%c0_20, %c768] : memref<1x2560xf32, #tpu.memory_space<vmem>>, vector<1x256xf32>
    %26 = arith.truncf %16 : vector<256x512xf32> to vector<256x512xbf16>
    %cst_21 = arith.constant dense<0.000000e+00> : vector<256x256xf32>
    %27 = tpu.matmul %26, %24, %cst_21 {dimension_numbers = #tpu.dot_dimension_numbers<[1], [0], [0], [1], [0, 0, 1, 1], [], []>} : vector<256x512xbf16>, vector<512x256xbf16>, vector<256x256xf32> -> vector<256x256xf32>
    %28 = vector.broadcast %25 : vector<1x256xf32> to vector<256x256xf32>
    %29 = arith.addf %27, %28 : vector<256x256xf32>
    %cst_22 = arith.constant 0.000000e+00 : f32
    %30 = vector.broadcast %cst_22 : f32 to vector<256x256xf32>
    %31 = arith.maximumf %29, %30 : vector<256x256xf32>
    %c512 = arith.constant 512 : index
    %c0_23 = arith.constant 0 : index
    %32 = vector.load %arg6[%c512, %c0_23] : memref<1024x256xbf16, #tpu.memory_space<vmem>>, vector<512x256xbf16>
    %c0_24 = arith.constant 0 : index
    %c1536 = arith.constant 1536 : index
    %33 = vector.load %arg9[%c0_24, %c1536] : memref<1x2560xf32, #tpu.memory_space<vmem>>, vector<1x256xf32>
    %34 = arith.truncf %23 : vector<256x512xf32> to vector<256x512xbf16>
    %cst_25 = arith.constant dense<0.000000e+00> : vector<256x256xf32>
    %35 = tpu.matmul %34, %32, %cst_25 {dimension_numbers = #tpu.dot_dimension_numbers<[1], [0], [0], [1], [0, 0, 1, 1], [], []>} : vector<256x512xbf16>, vector<512x256xbf16>, vector<256x256xf32> -> vector<256x256xf32>
    %36 = vector.broadcast %33 : vector<1x256xf32> to vector<256x256xf32>
    %37 = arith.addf %35, %36 : vector<256x256xf32>
    %cst_26 = arith.constant 0.000000e+00 : f32
    %38 = vector.broadcast %cst_26 : f32 to vector<256x256xf32>
    %39 = arith.maximumf %37, %38 : vector<256x256xf32>
    %c0_27 = arith.constant 0 : index
    %c0_28 = arith.constant 0 : index
    %40 = vector.load %arg7[%c0_27, %c0_28] : memref<512x256xbf16, #tpu.memory_space<vmem>>, vector<256x256xbf16>
    %c0_29 = arith.constant 0 : index
    %c1792 = arith.constant 1792 : index
    %41 = vector.load %arg9[%c0_29, %c1792] : memref<1x2560xf32, #tpu.memory_space<vmem>>, vector<1x256xf32>
    %42 = arith.truncf %31 : vector<256x256xf32> to vector<256x256xbf16>
    %cst_30 = arith.constant dense<0.000000e+00> : vector<256x256xf32>
    %43 = tpu.matmul %42, %40, %cst_30 {dimension_numbers = #tpu.dot_dimension_numbers<[1], [0], [0], [1], [0, 0, 1, 1], [], []>} : vector<256x256xbf16>, vector<256x256xbf16>, vector<256x256xf32> -> vector<256x256xf32>
    %44 = vector.broadcast %41 : vector<1x256xf32> to vector<256x256xf32>
    %45 = arith.addf %43, %44 : vector<256x256xf32>
    %c256_31 = arith.constant 256 : index
    %c0_32 = arith.constant 0 : index
    %46 = vector.load %arg7[%c256_31, %c0_32] : memref<512x256xbf16, #tpu.memory_space<vmem>>, vector<256x256xbf16>
    %c0_33 = arith.constant 0 : index
    %c2048 = arith.constant 2048 : index
    %47 = vector.load %arg9[%c0_33, %c2048] : memref<1x2560xf32, #tpu.memory_space<vmem>>, vector<1x256xf32>
    %48 = arith.truncf %39 : vector<256x256xf32> to vector<256x256xbf16>
    %cst_34 = arith.constant dense<0.000000e+00> : vector<256x256xf32>
    %49 = tpu.matmul %48, %46, %cst_34 {dimension_numbers = #tpu.dot_dimension_numbers<[1], [0], [0], [1], [0, 0, 1, 1], [], []>} : vector<256x256xbf16>, vector<256x256xbf16>, vector<256x256xf32> -> vector<256x256xf32>
    %50 = vector.broadcast %47 : vector<1x256xf32> to vector<256x256xf32>
    %51 = arith.addf %49, %50 : vector<256x256xf32>
    %52 = vector.extract_strided_slice %45 {offsets = [0, 0], sizes = [256, 128], strides = [1, 1]} : vector<256x256xf32> to vector<256x128xf32>
    %53 = vector.extract_strided_slice %45 {offsets = [0, 128], sizes = [256, 128], strides = [1, 1]} : vector<256x256xf32> to vector<256x128xf32>
    %54 = vector.extract_strided_slice %51 {offsets = [0, 0], sizes = [256, 128], strides = [1, 1]} : vector<256x256xf32> to vector<256x128xf32>
    %55 = vector.extract_strided_slice %51 {offsets = [0, 128], sizes = [256, 128], strides = [1, 1]} : vector<256x256xf32> to vector<256x128xf32>
    %cst_35 = arith.constant 0.000000e+00 : f32
    %56 = vector.broadcast %cst_35 : f32 to vector<256x128xf32>
    %57 = arith.subf %56, %53 : vector<256x128xf32>
    %58 = math.exp %57 : vector<256x128xf32>
    %cst_36 = arith.constant 0.000000e+00 : f32
    %59 = vector.broadcast %cst_36 : f32 to vector<256x128xf32>
    %60 = arith.subf %59, %55 : vector<256x128xf32>
    %61 = math.exp %60 : vector<256x128xf32>
    %62 = arith.addf %58, %61 : vector<256x128xf32>
    %63 = arith.mulf %52, %58 : vector<256x128xf32>
    %64 = arith.mulf %54, %61 : vector<256x128xf32>
    %65 = arith.addf %63, %64 : vector<256x128xf32>
    %66 = tpu.reciprocal %62 {approx = true} : vector<256x128xf32> -> vector<256x128xf32>
    %67 = arith.mulf %65, %66 : vector<256x128xf32>
    %68 = math.rsqrt %62 : vector<256x128xf32>
    %c0_37 = arith.constant 0 : index
    %c0_38 = arith.constant 0 : index
    %69 = vector.load %arg3[%c0_37, %c0_38] : memref<256x128xf32, #tpu.memory_space<vmem>>, vector<256x128xf32>
    %70 = arith.mulf %69, %68 : vector<256x128xf32>
    %71 = arith.addf %67, %70 : vector<256x128xf32>
    %c0_39 = arith.constant 0 : index
    %c0_40 = arith.constant 0 : index
    %72 = vector.load %arg8[%c0_39, %c0_40] : memref<256x128xbf16, #tpu.memory_space<vmem>>, vector<128x128xbf16>
    %c0_41 = arith.constant 0 : index
    %c2304 = arith.constant 2304 : index
    %73 = vector.load %arg9[%c0_41, %c2304] : memref<1x2560xf32, #tpu.memory_space<vmem>>, vector<1x128xf32>
    %74 = arith.truncf %71 : vector<256x128xf32> to vector<256x128xbf16>
    %cst_42 = arith.constant dense<0.000000e+00> : vector<256x128xf32>
    %75 = tpu.matmul %74, %72, %cst_42 {dimension_numbers = #tpu.dot_dimension_numbers<[1], [0], [0], [1], [0, 0, 1, 1], [], []>} : vector<256x128xbf16>, vector<128x128xbf16>, vector<256x128xf32> -> vector<256x128xf32>
    %76 = vector.broadcast %73 : vector<1x128xf32> to vector<256x128xf32>
    %77 = arith.addf %75, %76 : vector<256x128xf32>
    %cst_43 = arith.constant 0.000000e+00 : f32
    %78 = vector.broadcast %cst_43 : f32 to vector<256x128xf32>
    %79 = arith.maximumf %77, %78 : vector<256x128xf32>
    %c128 = arith.constant 128 : index
    %c0_44 = arith.constant 0 : index
    %80 = vector.load %arg8[%c128, %c0_44] : memref<256x128xbf16, #tpu.memory_space<vmem>>, vector<128x128xbf16>
    %c0_45 = arith.constant 0 : index
    %c2432 = arith.constant 2432 : index
    %81 = vector.load %arg9[%c0_45, %c2432] : memref<1x2560xf32, #tpu.memory_space<vmem>>, vector<1x128xf32>
    %82 = arith.truncf %79 : vector<256x128xf32> to vector<256x128xbf16>
    %cst_46 = arith.constant dense<0.000000e+00> : vector<256x128xf32>
    %83 = tpu.matmul %82, %80, %cst_46 {dimension_numbers = #tpu.dot_dimension_numbers<[1], [0], [0], [1], [0, 0, 1, 1], [], []>} : vector<256x128xbf16>, vector<128x128xbf16>, vector<256x128xf32> -> vector<256x128xf32>
    %84 = vector.broadcast %81 : vector<1x128xf32> to vector<256x128xf32>
    %85 = arith.addf %83, %84 : vector<256x128xf32>
    %86 = arith.truncf %85 : vector<256x128xf32> to vector<256x128xbf16>
    %c0_47 = arith.constant 0 : index
    %c0_48 = arith.constant 0 : index
    %87 = vector.load %arg10[%c0_47, %c0_48] : memref<256x128xbf16, #tpu.memory_space<vmem>>, vector<256x128xbf16>
    tpu.vector_store %arg10[%c0_47, %c0_48], %86 {strides = array<i32>} : memref<256x128xbf16, #tpu.memory_space<vmem>>, vector<256x128xbf16>,
    return
  }
  func.func @transform_0(%arg0: i32) -> (i32, i32) {
    %c0_i32 = arith.constant 0 : i32
    %c0_i32_0 = arith.constant 0 : i32
    return %arg0, %c0_i32 : i32, i32
  }
  func.func @transform_1(%arg0: i32) -> (i32, i32) {
    %c0_i32 = arith.constant 0 : i32
    %c0_i32_0 = arith.constant 0 : i32
    return %arg0, %c0_i32 : i32, i32
  }
  func.func @transform_2(%arg0: i32) -> (i32, i32) {
    %c0_i32 = arith.constant 0 : i32
    %c0_i32_0 = arith.constant 0 : i32
    return %arg0, %c0_i32 : i32, i32
  }
  func.func @transform_3(%arg0: i32) -> (i32, i32) {
    %c0_i32 = arith.constant 0 : i32
    %c0_i32_0 = arith.constant 0 : i32
    %c0_i32_1 = arith.constant 0 : i32
    return %c0_i32, %c0_i32_0 : i32, i32
  }
  func.func @transform_4(%arg0: i32) -> (i32, i32) {
    %c0_i32 = arith.constant 0 : i32
    %c0_i32_0 = arith.constant 0 : i32
    %c0_i32_1 = arith.constant 0 : i32
    return %c0_i32, %c0_i32_0 : i32, i32
  }
  func.func @transform_5(%arg0: i32) -> (i32, i32) {
    %c0_i32 = arith.constant 0 : i32
    %c0_i32_0 = arith.constant 0 : i32
    %c0_i32_1 = arith.constant 0 : i32
    return %c0_i32, %c0_i32_0 : i32, i32
  }
  func.func @transform_6(%arg0: i32) -> (i32, i32) {
    %c0_i32 = arith.constant 0 : i32
    %c0_i32_0 = arith.constant 0 : i32
    %c0_i32_1 = arith.constant 0 : i32
    return %c0_i32, %c0_i32_0 : i32, i32
  }
  func.func @transform_7(%arg0: i32) -> (i32, i32) {
    %c0_i32 = arith.constant 0 : i32
    %c0_i32_0 = arith.constant 0 : i32
    %c0_i32_1 = arith.constant 0 : i32
    return %c0_i32, %c0_i32_0 : i32, i32
  }
  func.func @transform_8(%arg0: i32) -> (i32, i32) {
    %c0_i32 = arith.constant 0 : i32
    %c0_i32_0 = arith.constant 0 : i32
    %c0_i32_1 = arith.constant 0 : i32
    return %c0_i32, %c0_i32_0 : i32, i32
  }
  func.func @transform_9(%arg0: i32) -> (i32, i32) {
    %c0_i32 = arith.constant 0 : i32
    %c0_i32_0 = arith.constant 0 : i32
    return %arg0, %c0_i32 : i32, i32
  }
}

</mosaic_0001>

<llo_original>
// kernel: _hmmved_forward_impl.1
$region0: #{_hmmved_forward_impl.1}
  #allocation0 [shape = 'u32[]', space=smem, size = 0x4, offset = 0x4, fixed_abs, tag = 'smem constant byte address 0x4 - core index']
  #allocation1 [shape = 'u32[144,128]{1,0:T(1,128)}', space=vmem, size = 0x12000, scoped, tag = 'internal scratch']
  %s0 = inlined_call_operand.vmem [shape: bf16[256,256], index: 0, kind: input, shape index: {}]
  %s1 = inlined_call_operand.vmem [shape: bf16[256,256], index: 1, kind: input, shape index: {}]
  %s2 = inlined_call_operand.vmem [shape: f32[256,128], index: 2, kind: input, shape index: {}]
  %s3 = inlined_call_operand.vmem [shape: bf16[256,256], index: 3, kind: input, shape index: {}]
  %s4 = inlined_call_operand.vmem [shape: bf16[512,512], index: 4, kind: input, shape index: {}]
  %s5 = inlined_call_operand.vmem [shape: bf16[1024,256], index: 5, kind: input, shape index: {}]
  %s6 = inlined_call_operand.hbm [shape: bf16[512,256], index: 6, kind: input, shape index: {}]
  %s7 = inlined_call_operand.hbm [shape: bf16[256,128], index: 7, kind: input, shape index: {}]
  %s8 = inlined_call_operand.vmem [shape: f32[1,2560], index: 8, kind: input, shape index: {}]
  %s9 = inlined_call_operand.vmem [shape: bf16[256,128], index: 9, kind: output, shape index: {}]
  %s10 = sld [smem:[#allocation0]]
  $region54: #{_hmmved_forward_impl.1} parent=0
    _
  %s12 = ssub.s32 1, %s10
  %s13 = scalar_select 0, %s12, %s10
  $region1: #{_hmmved_forward_impl.1} parent=0
    #allocation2 [shape = 'u8[262144]{0}', space=vmem, size = 0x40000, scoped, tag = 'input window, operand 6, single buffered']
    #allocation3 [shape = 's32[1]{0}', space=sflag, size = 0x4, scoped, tag = 'scoped memory for _hmmved_forward_impl.1']
    #allocation4 [shape = 'u8[65536]{0}', space=vmem, size = 0x10000, scoped, tag = 'input window, operand 7, single buffered']
    #allocation5 [shape = 's32[1]{0}', space=sflag, size = 0x4, scoped, tag = 'scoped memory for _hmmved_forward_impl.1']
    %14 = vsyncpa [#allocation3], 0
    %15 = vsyncpa [#allocation5], 0
    // Predicated region
    $region2: #{_hmmved_forward_impl.1} parent=1 // pred_check
      _
    $region3: #{_hmmved_forward_impl.1} parent=1 // pred_check_branch
      %17 = sbr.rel (0) target = $region5
    $region4: #{_hmmved_forward_impl.1} parent=1 // pred_region
      _
    $region5: #{_hmmved_forward_impl.1} parent=1 // pred_fallthru
      _
    // Predicated region
    $region6: #{_hmmved_forward_impl.1} parent=1 // pred_check
      _
    $region7: #{_hmmved_forward_impl.1} parent=1 // pred_check_branch
      %19 = sbr.rel (0) target = $region9
    $region8: #{_hmmved_forward_impl.1} parent=1 // pred_region
      _
    $region9: #{_hmmved_forward_impl.1} parent=1 // pred_fallthru
      _
    // Predicated region
    $region10: #{_hmmved_forward_impl.1} parent=1 // pred_check
      _
    $region11: #{_hmmved_forward_impl.1} parent=1 // pred_check_branch
      %21 = sbr.rel (0) target = $region13
    $region12: #{_hmmved_forward_impl.1} parent=1 // pred_region
      _
    $region13: #{_hmmved_forward_impl.1} parent=1 // pred_fallthru
      _
    // Predicated region
    $region14: #{_hmmved_forward_impl.1} parent=1 // pred_check
      _
    $region15: #{_hmmved_forward_impl.1} parent=1 // pred_check_branch
      %23 = sbr.rel (0) target = $region17
    $region16: #{_hmmved_forward_impl.1} parent=1 // pred_region
      _
    $region17: #{_hmmved_forward_impl.1} parent=1 // pred_fallthru
      _
    // Predicated region
    $region18: #{_hmmved_forward_impl.1} parent=1 // pred_check
      _
    $region19: #{_hmmved_forward_impl.1} parent=1 // pred_check_branch
      %25 = sbr.rel (0) target = $region21
    $region20: #{_hmmved_forward_impl.1} parent=1 // pred_region
      _
    $region21: #{_hmmved_forward_impl.1} parent=1 // pred_fallthru
      _
    // Predicated region
    $region22: #{_hmmved_forward_impl.1} parent=1 // pred_check
      _
    $region23: #{_hmmved_forward_impl.1} parent=1 // pred_check_branch
      %27 = sbr.rel (0) target = $region25
    $region24: #{_hmmved_forward_impl.1} parent=1 // pred_region
      _
    $region25: #{_hmmved_forward_impl.1} parent=1 // pred_fallthru
      _
    // Predicated region
    $region26: #{_hmmved_forward_impl.1} parent=1 // pred_check
      _
    $region27: #{_hmmved_forward_impl.1} parent=1 // pred_check_branch
      %29 = sbr.rel (0) target = $region29
    $region28: #{_hmmved_forward_impl.1} parent=1 // pred_region
      %s31 = ssub.s32 8192, 8192
      %32 = vsyncadd [#allocation3], %s31
      %s33 = sshll.u32 [#allocation2], 4
      %s34 = int_to_ptr.vmem [resolvable:$true] %s33
      %39 = dma.hbm_to_vmem [thread:$0]  %s6, 8192, %s34, [#allocation3], 128, 128, 8
    $region29: #{_hmmved_forward_impl.1} parent=1 // pred_fallthru
      _
    // Predicated region
    $region30: #{_hmmved_forward_impl.1} parent=1 // pred_check
      _
    $region31: #{_hmmved_forward_impl.1} parent=1 // pred_check_branch
      %41 = sbr.rel (0) target = $region33
    $region32: #{_hmmved_forward_impl.1} parent=1 // pred_region
      %s43 = ssub.s32 2048, 2048
      %44 = vsyncadd [#allocation5], %s43
      %s45 = sshll.u32 [#allocation4], 4
      %s46 = int_to_ptr.vmem [resolvable:$true] %s45
      %51 = dma.hbm_to_vmem [thread:$0]  %s7, 2048, %s46, [#allocation5], 64, 64, 4
    $region33: #{_hmmved_forward_impl.1} parent=1 // pred_fallthru
      _
    // Predicated region
    $region34: #{_hmmved_forward_impl.1} parent=1 // pred_check
      _
    $region35: #{_hmmved_forward_impl.1} parent=1 // pred_check_branch
      %53 = sbr.rel (0) target = $region37
    $region36: #{_hmmved_forward_impl.1} parent=1 // pred_region
      _
    $region37: #{_hmmved_forward_impl.1} parent=1 // pred_fallthru
      _
    // Predicated region
    $region38: #{_hmmved_forward_impl.1} parent=1 // pred_check
      _
    $region39: #{_hmmved_forward_impl.1} parent=1 // pred_check_branch
      %55 = sbr.rel (0) target = $region41
    $region40: #{_hmmved_forward_impl.1} parent=1 // pred_region
      %56 = dma.done [#allocation3], 8192
    $region41: #{_hmmved_forward_impl.1} parent=1 // pred_fallthru
      _
    // Predicated region
    $region42: #{_hmmved_forward_impl.1} parent=1 // pred_check
      _
    $region43: #{_hmmved_forward_impl.1} parent=1 // pred_check_branch
      %58 = sbr.rel (0) target = $region45
    $region44: #{_hmmved_forward_impl.1} parent=1 // pred_region
      %59 = dma.done [#allocation5], 2048
    $region45: #{_hmmved_forward_impl.1} parent=1 // pred_fallthru
      _
    %v61 = vld [vmem:[%s0] sm:$0xff]
    %v62 = vld [vmem:[%s0 + $0x8] sm:$0xff]
    %v63 = vld [vmem:[%s0 + $0x10] sm:$0xff]
    %v64 = vld [vmem:[%s0 + $0x18] sm:$0xff]
    %v65 = vld [vmem:[%s0 + $0x20] sm:$0xff]
    %v66 = vld [vmem:[%s0 + $0x28] sm:$0xff]
    %v67 = vld [vmem:[%s0 + $0x30] sm:$0xff]
    %v68 = vld [vmem:[%s0 + $0x38] sm:$0xff]
    %v69 = vld [vmem:[%s0 + $0x40] sm:$0xff]
    %v70 = vld [vmem:[%s0 + $0x48] sm:$0xff]
    %v71 = vld [vmem:[%s0 + $0x50] sm:$0xff]
    %v72 = vld [vmem:[%s0 + $0x58] sm:$0xff]
    %v73 = vld [vmem:[%s0 + $0x60] sm:$0xff]
    %v74 = vld [vmem:[%s0 + $0x68] sm:$0xff]
    %v75 = vld [vmem:[%s0 + $0x70] sm:$0xff]
    %v76 = vld [vmem:[%s0 + $0x78] sm:$0xff]
    %v77 = vld [vmem:[%s0 + $0x80] sm:$0xff]
    %v78 = vld [vmem:[%s0 + $0x88] sm:$0xff]
    %v79 = vld [vmem:[%s0 + $0x90] sm:$0xff]
    %v80 = vld [vmem:[%s0 + $0x98] sm:$0xff]
    %v81 = vld [vmem:[%s0 + $0xa0] sm:$0xff]
    %v82 = vld [vmem:[%s0 + $0xa8] sm:$0xff]
    %v83 = vld [vmem:[%s0 + $0xb0] sm:$0xff]
    %v84 = vld [vmem:[%s0 + $0xb8] sm:$0xff]
    %v85 = vld [vmem:[%s0 + $0xc0] sm:$0xff]
    %v86 = vld [vmem:[%s0 + $0xc8] sm:$0xff]
    %v87 = vld [vmem:[%s0 + $0xd0] sm:$0xff]
    %v88 = vld [vmem:[%s0 + $0xd8] sm:$0xff]
    %v89 = vld [vmem:[%s0 + $0xe0] sm:$0xff]
    %v90 = vld [vmem:[%s0 + $0xe8] sm:$0xff]
    %v91 = vld [vmem:[%s0 + $0xf0] sm:$0xff]
    %v92 = vld [vmem:[%s0 + $0xf8] sm:$0xff]
    %v93 = vld [vmem:[%s1] sm:$0xff]
    %v94 = vld [vmem:[%s1 + $0x8] sm:$0xff]
    %v95 = vld [vmem:[%s1 + $0x10] sm:$0xff]
    %v96 = vld [vmem:[%s1 + $0x18] sm:$0xff]
    %v97 = vld [vmem:[%s1 + $0x20] sm:$0xff]
    %v98 = vld [vmem:[%s1 + $0x28] sm:$0xff]
    %v99 = vld [vmem:[%s1 + $0x30] sm:$0xff]
    %v100 = vld [vmem:[%s1 + $0x38] sm:$0xff]
    %v101 = vld [vmem:[%s1 + $0x40] sm:$0xff]
    %v102 = vld [vmem:[%s1 + $0x48] sm:$0xff]
    %v103 = vld [vmem:[%s1 + $0x50] sm:$0xff]
    %v104 = vld [vmem:[%s1 + $0x58] sm:$0xff]
    %v105 = vld [vmem:[%s1 + $0x60] sm:$0xff]
    %v106 = vld [vmem:[%s1 + $0x68] sm:$0xff]
    %v107 = vld [vmem:[%s1 + $0x70] sm:$0xff]
    %v108 = vld [vmem:[%s1 + $0x78] sm:$0xff]
    %v109 = vld [vmem:[%s1 + $0x80] sm:$0xff]
    %v110 = vld [vmem:[%s1 + $0x88] sm:$0xff]
    %v111 = vld [vmem:[%s1 + $0x90] sm:$0xff]
    %v112 = vld [vmem:[%s1 + $0x98] sm:$0xff]
    %v113 = vld [vmem:[%s1 + $0xa0] sm:$0xff]
    %v114 = vld [vmem:[%s1 + $0xa8] sm:$0xff]
    %v115 = vld [vmem:[%s1 + $0xb0] sm:$0xff]
    %v116 = vld [vmem:[%s1 + $0xb8] sm:$0xff]
    %v117 = vld [vmem:[%s1 + $0xc0] sm:$0xff]
    %v118 = vld [vmem:[%s1 + $0xc8] sm:$0xff]
    %v119 = vld [vmem:[%s1 + $0xd0] sm:$0xff]
    %v120 = vld [vmem:[%s1 + $0xd8] sm:$0xff]
    %v121 = vld [vmem:[%s1 + $0xe0] sm:$0xff]
    %v122 = vld [vmem:[%s1 + $0xe8] sm:$0xff]
    %v123 = vld [vmem:[%s1 + $0xf0] sm:$0xff]
    %v124 = vld [vmem:[%s1 + $0xf8] sm:$0xff]
    %v125 = vld [vmem:[%s3] sm:$0xff]
    %v126 = vld [vmem:[%s3 + $0x8] sm:$0xff]
    %v127 = vld [vmem:[%s3 + $0x10] sm:$0xff]
    %v128 = vld [vmem:[%s3 + $0x18] sm:$0xff]
    %v129 = vld [vmem:[%s3 + $0x20] sm:$0xff]
    %v130 = vld [vmem:[%s3 + $0x28] sm:$0xff]
    %v131 = vld [vmem:[%s3 + $0x30] sm:$0xff]
    %v132 = vld [vmem:[%s3 + $0x38] sm:$0xff]
    %v133 = vld [vmem:[%s3 + $0x40] sm:$0xff]
    %v134 = vld [vmem:[%s3 + $0x48] sm:$0xff]
    %v135 = vld [vmem:[%s3 + $0x50] sm:$0xff]
    %v136 = vld [vmem:[%s3 + $0x58] sm:$0xff]
    %v137 = vld [vmem:[%s3 + $0x60] sm:$0xff]
    %v138 = vld [vmem:[%s3 + $0x68] sm:$0xff]
    %v139 = vld [vmem:[%s3 + $0x70] sm:$0xff]
    %v140 = vld [vmem:[%s3 + $0x78] sm:$0xff]
    %v141 = vld [vmem:[%s3 + $0x80] sm:$0xff]
    %v142 = vld [vmem:[%s3 + $0x88] sm:$0xff]
    %v143 = vld [vmem:[%s3 + $0x90] sm:$0xff]
    %v144 = vld [vmem:[%s3 + $0x98] sm:$0xff]
    %v145 = vld [vmem:[%s3 + $0xa0] sm:$0xff]
    %v146 = vld [vmem:[%s3 + $0xa8] sm:$0xff]
    %v147 = vld [vmem:[%s3 + $0xb0] sm:$0xff]
    %v148 = vld [vmem:[%s3 + $0xb8] sm:$0xff]
    %v149 = vld [vmem:[%s3 + $0xc0] sm:$0xff]
    %v150 = vld [vmem:[%s3 + $0xc8] sm:$0xff]
    %v151 = vld [vmem:[%s3 + $0xd0] sm:$0xff]
    %v152 = vld [vmem:[%s3 + $0xd8] sm:$0xff]
    %v153 = vld [vmem:[%s3 + $0xe0] sm:$0xff]
    %v154 = vld [vmem:[%s3 + $0xe8] sm:$0xff]
    %v155 = vld [vmem:[%s3 + $0xf0] sm:$0xff]
    %v156 = vld [vmem:[%s3 + $0xf8] sm:$0xff]
    %v157 = vld [vmem:[%s8] sm:$0x3]
    %v159 = vlaneseq
    %v160 = vshrl.u32 %v159, 7
    %v161 = vsub.s32 0, %v160
    %v162 = vrot.slane %v157, %v161
    %v163 = vlaneseq
    %v164 = vshrl.u32 %v163, 7
    %v165 = vsub.s32 1, %v164
    %v166 = vrot.slane %v157, %v165
    %v201 = vunpack.c.l.b16 %v61
    %v202 = vunpack.c.h.b16 %v61
    %v203 = vunpack.c.l.b16 %v62
    %v204 = vunpack.c.h.b16 %v62
    %v205 = vunpack.c.l.b16 %v63
    %v206 = vunpack.c.h.b16 %v63
    %v207 = vunpack.c.l.b16 %v64
    %v208 = vunpack.c.h.b16 %v64
    %v209 = vunpack.c.l.b16 %v65
    %v210 = vunpack.c.h.b16 %v65
    %v211 = vunpack.c.l.b16 %v66
    %v212 = vunpack.c.h.b16 %v66
    %v213 = vunpack.c.l.b16 %v67
    %v214 = vunpack.c.h.b16 %v67
    %v215 = vunpack.c.l.b16 %v68
    %v216 = vunpack.c.h.b16 %v68
    %v217 = vunpack.c.l.b16 %v69
    %v218 = vunpack.c.h.b16 %v69
    %v219 = vunpack.c.l.b16 %v70
    %v220 = vunpack.c.h.b16 %v70
    %v221 = vunpack.c.l.b16 %v71
    %v222 = vunpack.c.h.b16 %v71
    %v223 = vunpack.c.l.b16 %v72
    %v224 = vunpack.c.h.b16 %v72
    %v225 = vunpack.c.l.b16 %v73
    %v226 = vunpack.c.h.b16 %v73
    %v227 = vunpack.c.l.b16 %v74
    %v228 = vunpack.c.h.b16 %v74
    %v229 = vunpack.c.l.b16 %v75
    %v230 = vunpack.c.h.b16 %v75
    %v231 = vunpack.c.l.b16 %v76
    %v232 = vunpack.c.h.b16 %v76
    %v233 = vunpack.c.l.b16 %v77
    %v234 = vunpack.c.h.b16 %v77
    %v235 = vunpack.c.l.b16 %v78
    %v236 = vunpack.c.h.b16 %v78
    %v237 = vunpack.c.l.b16 %v79
    %v238 = vunpack.c.h.b16 %v79
    %v239 = vunpack.c.l.b16 %v80
    %v240 = vunpack.c.h.b16 %v80
    %v241 = vunpack.c.l.b16 %v81
    %v242 = vunpack.c.h.b16 %v81
    %v243 = vunpack.c.l.b16 %v82
    %v244 = vunpack.c.h.b16 %v82
    %v245 = vunpack.c.l.b16 %v83
    %v246 = vunpack.c.h.b16 %v83
    %v247 = vunpack.c.l.b16 %v84
    %v248 = vunpack.c.h.b16 %v84
    %v249 = vunpack.c.l.b16 %v85
    %v250 = vunpack.c.h.b16 %v85
    %v251 = vunpack.c.l.b16 %v86
    %v252 = vunpack.c.h.b16 %v86
    %v253 = vunpack.c.l.b16 %v87
    %v254 = vunpack.c.h.b16 %v87
    %v255 = vunpack.c.l.b16 %v88
    %v256 = vunpack.c.h.b16 %v88
    %v257 = vunpack.c.l.b16 %v89
    %v258 = vunpack.c.h.b16 %v89
    %v259 = vunpack.c.l.b16 %v90
    %v260 = vunpack.c.h.b16 %v90
    %v261 = vunpack.c.l.b16 %v91
    %v262 = vunpack.c.h.b16 %v91
    %v263 = vunpack.c.l.b16 %v92
    %v264 = vunpack.c.h.b16 %v92
    %v265 = vpack.c.b16 %v203, %v201
    %v266 = vpack.c.b16 %v204, %v202
    %v267 = vpack.c.b16 %v207, %v205
    %v268 = vpack.c.b16 %v208, %v206
    %v269 = vpack.c.b16 %v211, %v209
    %v270 = vpack.c.b16 %v212, %v210
    %v271 = vpack.c.b16 %v215, %v213
    %v272 = vpack.c.b16 %v216, %v214
    %v273 = vpack.c.b16 %v219, %v217
    %v274 = vpack.c.b16 %v220, %v218
    %v275 = vpack.c.b16 %v223, %v221
    %v276 = vpack.c.b16 %v224, %v222
    %v277 = vpack.c.b16 %v227, %v225
    %v278 = vpack.c.b16 %v228, %v226
    %v279 = vpack.c.b16 %v231, %v229
    %v280 = vpack.c.b16 %v232, %v230
    %v281 = vpack.c.b16 %v235, %v233
    %v282 = vpack.c.b16 %v236, %v234
    %v283 = vpack.c.b16 %v239, %v237
    %v284 = vpack.c.b16 %v240, %v238
    %v285 = vpack.c.b16 %v243, %v241
    %v286 = vpack.c.b16 %v244, %v242
    %v287 = vpack.c.b16 %v247, %v245
    %v288 = vpack.c.b16 %v248, %v246
    %v289 = vpack.c.b16 %v251, %v249
    %v290 = vpack.c.b16 %v252, %v250
    %v291 = vpack.c.b16 %v255, %v253
    %v292 = vpack.c.b16 %v256, %v254
    %v293 = vpack.c.b16 %v259, %v257
    %v294 = vpack.c.b16 %v260, %v258
    %v295 = vpack.c.b16 %v263, %v261
    %v296 = vpack.c.b16 %v264, %v262
    %v361 = vunpack.c.l.b16 %v125
    %v362 = vunpack.c.h.b16 %v125
    %v363 = vunpack.c.l.b16 %v126
    %v364 = vunpack.c.h.b16 %v126
    %v365 = vunpack.c.l.b16 %v127
    %v366 = vunpack.c.h.b16 %v127
    %v367 = vunpack.c.l.b16 %v128
    %v368 = vunpack.c.h.b16 %v128
    %v369 = vunpack.c.l.b16 %v129
    %v370 = vunpack.c.h.b16 %v129
    %v371 = vunpack.c.l.b16 %v130
    %v372 = vunpack.c.h.b16 %v130
    %v373 = vunpack.c.l.b16 %v131
    %v374 = vunpack.c.h.b16 %v131
    %v375 = vunpack.c.l.b16 %v132
    %v376 = vunpack.c.h.b16 %v132
    %v377 = vunpack.c.l.b16 %v133
    %v378 = vunpack.c.h.b16 %v133
    %v379 = vunpack.c.l.b16 %v134
    %v380 = vunpack.c.h.b16 %v134
    %v381 = vunpack.c.l.b16 %v135
    %v382 = vunpack.c.h.b16 %v135
    %v383 = vunpack.c.l.b16 %v136
    %v384 = vunpack.c.h.b16 %v136
    %v385 = vunpack.c.l.b16 %v137
    %v386 = vunpack.c.h.b16 %v137
    %v387 = vunpack.c.l.b16 %v138
    %v388 = vunpack.c.h.b16 %v138
    %v389 = vunpack.c.l.b16 %v139
    %v390 = vunpack.c.h.b16 %v139
    %v391 = vunpack.c.l.b16 %v140
    %v392 = vunpack.c.h.b16 %v140
    %v393 = vunpack.c.l.b16 %v141
    %v394 = vunpack.c.h.b16 %v141
    %v395 = vunpack.c.l.b16 %v142
    %v396 = vunpack.c.h.b16 %v142
    %v397 = vunpack.c.l.b16 %v143
    %v398 = vunpack.c.h.b16 %v143
    %v399 = vunpack.c.l.b16 %v144
    %v400 = vunpack.c.h.b16 %v144
    %v401 = vunpack.c.l.b16 %v145
    %v402 = vunpack.c.h.b16 %v145
    %v403 = vunpack.c.l.b16 %v146
    %v404 = vunpack.c.h.b16 %v146
    %v405 = vunpack.c.l.b16 %v147
    %v406 = vunpack.c.h.b16 %v147
    %v407 = vunpack.c.l.b16 %v148
    %v408 = vunpack.c.h.b16 %v148
    %v409 = vunpack.c.l.b16 %v149
    %v410 = vunpack.c.h.b16 %v149
    %v411 = vunpack.c.l.b16 %v150
    %v412 = vunpack.c.h.b16 %v150
    %v413 = vunpack.c.l.b16 %v151
    %v414 = vunpack.c.h.b16 %v151
    %v415 = vunpack.c.l.b16 %v152
    %v416 = vunpack.c.h.b16 %v152
    %v417 = vunpack.c.l.b16 %v153
    %v418 = vunpack.c.h.b16 %v153
    %v419 = vunpack.c.l.b16 %v154
    %v420 = vunpack.c.h.b16 %v154
    %v421 = vunpack.c.l.b16 %v155
    %v422 = vunpack.c.h.b16 %v155
    %v423 = vunpack.c.l.b16 %v156
    %v424 = vunpack.c.h.b16 %v156
    %v425 = vpack.c.b16 %v363, %v361
    %v426 = vpack.c.b16 %v364, %v362
    %v427 = vpack.c.b16 %v367, %v365
    %v428 = vpack.c.b16 %v368, %v366
    %v429 = vpack.c.b16 %v371, %v369
    %v430 = vpack.c.b16 %v372, %v370
    %v431 = vpack.c.b16 %v375, %v373
    %v432 = vpack.c.b16 %v376, %v374
    %v433 = vpack.c.b16 %v379, %v377
    %v434 = vpack.c.b16 %v380, %v378
    %v435 = vpack.c.b16 %v383, %v381
    %v436 = vpack.c.b16 %v384, %v382
    %v437 = vpack.c.b16 %v387, %v385
    %v438 = vpack.c.b16 %v388, %v386
    %v439 = vpack.c.b16 %v391, %v389
    %v440 = vpack.c.b16 %v392, %v390
    %v441 = vpack.c.b16 %v395, %v393
    %v442 = vpack.c.b16 %v396, %v394
    %v443 = vpack.c.b16 %v399, %v397
    %v444 = vpack.c.b16 %v400, %v398
    %v445 = vpack.c.b16 %v403, %v401
    %v446 = vpack.c.b16 %v404, %v402
    %v447 = vpack.c.b16 %v407, %v405
    %v448 = vpack.c.b16 %v408, %v406
    %v449 = vpack.c.b16 %v411, %v409
    %v450 = vpack.c.b16 %v412, %v410
    %v451 = vpack.c.b16 %v415, %v413
    %v452 = vpack.c.b16 %v416, %v414
    %v453 = vpack.c.b16 %v419, %v417
    %v454 = vpack.c.b16 %v420, %v418
    %v455 = vpack.c.b16 %v423, %v421
    %v456 = vpack.c.b16 %v424, %v422
    %489 = vmatprep.subr.bf16.mxu0 %v440
    %490 = vmatpush1.bf16.msra.mxu0 %v439
    %491 = vmatprep.subr.bf16.mxu0 %v438
    %492 = vmatpush1.bf16.msra.mxu0 %v437
    %493 = vmatprep.subr.bf16.mxu0 %v436
    %494 = vmatpush1.bf16.msra.mxu0 %v435
    %495 = vmatprep.subr.bf16.mxu0 %v434
    %496 = vmatpush1.bf16.msra.mxu0 %v433
    %497 = vmatprep.subr.bf16.mxu0 %v432
    %498 = vmatpush1.bf16.msra.mxu0 %v431
    %499 = vmatprep.subr.bf16.mxu0 %v430
    %500 = vmatpush1.bf16.msra.mxu0 %v429
    %501 = vmatprep.subr.bf16.mxu0 %v428
    %502 = vmatpush1.bf16.msra.mxu0 %v427
    %503 = vmatprep.subr.bf16.mxu0 %v426
    %504 = vmatpush1.bf16.msra.mxu0 %v425
    %505 = vmatprep.subr.bf16.mxu0 %v456
    %506 = vmatpush2.bf16.msra.mxu0 %v455
    %507 = vmatprep.subr.bf16.mxu0 %v454
    %508 = vmatpush2.bf16.msra.mxu0 %v453
    %509 = vmatprep.subr.bf16.mxu0 %v452
    %510 = vmatpush2.bf16.msra.mxu0 %v451
    %511 = vmatprep.subr.bf16.mxu0 %v450
    %512 = vmatpush2.bf16.msra.mxu0 %v449
    %513 = vmatprep.subr.bf16.mxu0 %v448
    %514 = vmatpush2.bf16.msra.mxu0 %v447
    %515 = vmatprep.subr.bf16.mxu0 %v446
    %516 = vmatpush2.bf16.msra.mxu0 %v445
    %517 = vmatprep.subr.bf16.mxu0 %v444
    %518 = vmatpush2.bf16.msra.mxu0 %v443
    %519 = vmatprep.subr.bf16.mxu0 %v442
    %520 = vmatpush2.bf16.msra.mxu0 %v441
    %521 = vmatprep.mubr.bf16.mxu0 %v266
    %522 = vmatmul.mubr.bf16.gmra.mxu0 %v265
    %v523 = vpop.f32.mrf.mxu0
    %v524 = vadd.f32 %v162, %v523
    %v525 = vpop.f32.mrf.mxu0
    %v526 = vadd.f32 %v166, %v525
    %v527 = vpop.f32.mrf.mxu0
    %v528 = vadd.f32 %v162, %v527
    %v529 = vpop.f32.mrf.mxu0
    %v530 = vadd.f32 %v166, %v529
    %531 = vmatprep.mubr.bf16.mxu0 %v268
    %532 = vmatmul.mubr.bf16.gmra.mxu0 %v267
    %v533 = vpop.f32.mrf.mxu0
    %v534 = vadd.f32 %v162, %v533
    %v535 = vpop.f32.mrf.mxu0
    %v536 = vadd.f32 %v166, %v535
    %v537 = vpop.f32.mrf.mxu0
    %v538 = vadd.f32 %v162, %v537
    %v539 = vpop.f32.mrf.mxu0
    %v540 = vadd.f32 %v166, %v539
    %541 = vmatprep.mubr.bf16.mxu0 %v270
    %542 = vmatmul.mubr.bf16.gmra.mxu0 %v269
    %v543 = vpop.f32.mrf.mxu0
    %v544 = vadd.f32 %v162, %v543
    %v545 = vpop.f32.mrf.mxu0
    %v546 = vadd.f32 %v166, %v545
    %v547 = vpop.f32.mrf.mxu0
    %v548 = vadd.f32 %v162, %v547
    %v549 = vpop.f32.mrf.mxu0
    %v550 = vadd.f32 %v166, %v549
    %551 = vmatprep.mubr.bf16.mxu0 %v272
    %552 = vmatmul.mubr.bf16.gmra.mxu0 %v271
    %v553 = vpop.f32.mrf.mxu0
    %v554 = vadd.f32 %v162, %v553
    %v555 = vpop.f32.mrf.mxu0
    %v556 = vadd.f32 %v166, %v555
    %v557 = vpop.f32.mrf.mxu0
    %v558 = vadd.f32 %v162, %v557
    %v559 = vpop.f32.mrf.mxu0
    %v560 = vadd.f32 %v166, %v559
    %561 = vmatprep.mubr.bf16.mxu0 %v274
    %562 = vmatmul.mubr.bf16.gmra.mxu0 %v273
    %v563 = vpop.f32.mrf.mxu0
    %v564 = vadd.f32 %v162, %v563
    %v565 = vpop.f32.mrf.mxu0
    %v566 = vadd.f32 %v166, %v565
    %v567 = vpop.f32.mrf.mxu0
    %v568 = vadd.f32 %v162, %v567
    %v569 = vpop.f32.mrf.mxu0
    %v570 = vadd.f32 %v166, %v569
    %571 = vmatprep.mubr.bf16.mxu0 %v276
    %572 = vmatmul.mubr.bf16.gmra.mxu0 %v275
    %v573 = vpop.f32.mrf.mxu0
    %v574 = vadd.f32 %v162, %v573
    %v575 = vpop.f32.mrf.mxu0
    %v576 = vadd.f32 %v166, %v575
    %v577 = vpop.f32.mrf.mxu0
    %v578 = vadd.f32 %v162, %v577
    %v579 = vpop.f32.mrf.mxu0
    %v580 = vadd.f32 %v166, %v579
    %581 = vmatprep.mubr.bf16.mxu0 %v278
    %582 = vmatmul.mubr.bf16.gmra.mxu0 %v277
    %v583 = vpop.f32.mrf.mxu0
    %v584 = vadd.f32 %v162, %v583
    %v585 = vpop.f32.mrf.mxu0
    %v586 = vadd.f32 %v166, %v585
    %v587 = vpop.f32.mrf.mxu0
    %v588 = vadd.f32 %v162, %v587
    %v589 = vpop.f32.mrf.mxu0
    %v590 = vadd.f32 %v166, %v589
    %591 = vmatprep.mubr.bf16.mxu0 %v280
    %592 = vmatmul.mubr.bf16.gmra.mxu0 %v279
    %v593 = vpop.f32.mrf.mxu0
    %v594 = vadd.f32 %v162, %v593
    %v595 = vpop.f32.mrf.mxu0
    %v596 = vadd.f32 %v166, %v595
    %v597 = vpop.f32.mrf.mxu0
    %v598 = vadd.f32 %v162, %v597
    %v599 = vpop.f32.mrf.mxu0
    %v600 = vadd.f32 %v166, %v599
    %601 = vmatprep.mubr.bf16.mxu0 %v282
    %602 = vmatmul.mubr.bf16.gmra.mxu0 %v281
    %v603 = vpop.f32.mrf.mxu0
    %v604 = vadd.f32 %v162, %v603
    %v605 = vpop.f32.mrf.mxu0
    %v606 = vadd.f32 %v166, %v605
    %v607 = vpop.f32.mrf.mxu0
    %v608 = vadd.f32 %v162, %v607
    %v609 = vpop.f32.mrf.mxu0
    %v610 = vadd.f32 %v166, %v609
    %611 = vmatprep.mubr.bf16.mxu0 %v284
    %612 = vmatmul.mubr.bf16.gmra.mxu0 %v283
    %v613 = vpop.f32.mrf.mxu0
    %v614 = vadd.f32 %v162, %v613
    %v615 = vpop.f32.mrf.mxu0
    %v616 = vadd.f32 %v166, %v615
    %v617 = vpop.f32.mrf.mxu0
    %v618 = vadd.f32 %v162, %v617
    %v619 = vpop.f32.mrf.mxu0
    %v620 = vadd.f32 %v166, %v619
    %621 = vmatprep.mubr.bf16.mxu0 %v286
    %622 = vmatmul.mubr.bf16.gmra.mxu0 %v285
    %v623 = vpop.f32.mrf.mxu0
    %v624 = vadd.f32 %v162, %v623
    %v625 = vpop.f32.mrf.mxu0
    %v626 = vadd.f32 %v166, %v625
    %v627 = vpop.f32.mrf.mxu0
    %v628 = vadd.f32 %v162, %v627
    %v629 = vpop.f32.mrf.mxu0
    %v630 = vadd.f32 %v166, %v629
    %631 = vmatprep.mubr.bf16.mxu0 %v288
    %632 = vmatmul.mubr.bf16.gmra.mxu0 %v287
    %v633 = vpop.f32.mrf.mxu0
    %v634 = vadd.f32 %v162, %v633
    %v635 = vpop.f32.mrf.mxu0
    %v636 = vadd.f32 %v166, %v635
    %v637 = vpop.f32.mrf.mxu0
    %v638 = vadd.f32 %v162, %v637
    %v639 = vpop.f32.mrf.mxu0
    %v640 = vadd.f32 %v166, %v639
    %641 = vmatprep.mubr.bf16.mxu0 %v290
    %642 = vmatmul.mubr.bf16.gmra.mxu0 %v289
    %v643 = vpop.f32.mrf.mxu0
    %v644 = vadd.f32 %v162, %v643
    %v645 = vpop.f32.mrf.mxu0
    %v646 = vadd.f32 %v166, %v645
    %v647 = vpop.f32.mrf.mxu0
    %v648 = vadd.f32 %v162, %v647
    %v649 = vpop.f32.mrf.mxu0
    %v650 = vadd.f32 %v166, %v649
    %651 = vmatprep.mubr.bf16.mxu0 %v292
    %652 = vmatmul.mubr.bf16.gmra.mxu0 %v291
    %v653 = vpop.f32.mrf.mxu0
    %v654 = vadd.f32 %v162, %v653
    %v655 = vpop.f32.mrf.mxu0
    %v656 = vadd.f32 %v166, %v655
    %v657 = vpop.f32.mrf.mxu0
    %v658 = vadd.f32 %v162, %v657
    %v659 = vpop.f32.mrf.mxu0
    %v660 = vadd.f32 %v166, %v659
    %661 = vmatprep.mubr.bf16.mxu0 %v294
    %662 = vmatmul.mubr.bf16.gmra.mxu0 %v293
    %v663 = vpop.f32.mrf.mxu0
    %v664 = vadd.f32 %v162, %v663
    %v665 = vpop.f32.mrf.mxu0
    %v666 = vadd.f32 %v166, %v665
    %v667 = vpop.f32.mrf.mxu0
    %v668 = vadd.f32 %v162, %v667
    %v669 = vpop.f32.mrf.mxu0
    %v670 = vadd.f32 %v166, %v669
    %671 = vmatprep.mubr.bf16.mxu0 %v296
    %672 = vmatmul.mubr.bf16.gmra.mxu0 %v295
    %v673 = vpop.f32.mrf.mxu0
    %v674 = vadd.f32 %v162, %v673
    %v675 = vpop.f32.mrf.mxu0
    %v676 = vadd.f32 %v166, %v675
    %v677 = vpop.f32.mrf.mxu0
    %v678 = vadd.f32 %v162, %v677
    %v679 = vpop.f32.mrf.mxu0
    %v680 = vadd.f32 %v166, %v679
    %681 = vdwg.mxu0
    %v682 = vmax.f32 %v524, 0.0
    %v683 = vmax.f32 %v526, 0.0
    %v684 = vmax.f32 %v528, 0.0
    %v685 = vmax.f32 %v530, 0.0
    %v686 = vmax.f32 %v534, 0.0
    %v687 = vmax.f32 %v536, 0.0
    %v688 = vmax.f32 %v538, 0.0
    %v689 = vmax.f32 %v540, 0.0
    %v690 = vmax.f32 %v544, 0.0
    %v691 = vmax.f32 %v546, 0.0
    %v692 = vmax.f32 %v548, 0.0
    %v693 = vmax.f32 %v550, 0.0
    %v694 = vmax.f32 %v554, 0.0
    %v695 = vmax.f32 %v556, 0.0
    %v696 = vmax.f32 %v558, 0.0
    %v697 = vmax.f32 %v560, 0.0
    %v698 = vmax.f32 %v564, 0.0
    %v699 = vmax.f32 %v566, 0.0
    %v700 = vmax.f32 %v568, 0.0
    %v701 = vmax.f32 %v570, 0.0
    %v702 = vmax.f32 %v574, 0.0
    %v703 = vmax.f32 %v576, 0.0
    %v704 = vmax.f32 %v578, 0.0
    %v705 = vmax.f32 %v580, 0.0
    %v706 = vmax.f32 %v584, 0.0
    %v707 = vmax.f32 %v586, 0.0
    %v708 = vmax.f32 %v588, 0.0
    %v709 = vmax.f32 %v590, 0.0
    %v710 = vmax.f32 %v594, 0.0
    %v711 = vmax.f32 %v596, 0.0
    %v712 = vmax.f32 %v598, 0.0
    %v713 = vmax.f32 %v600, 0.0
    %v714 = vmax.f32 %v604, 0.0
    %v715 = vmax.f32 %v606, 0.0
    %v716 = vmax.f32 %v608, 0.0
    %v717 = vmax.f32 %v610, 0.0
    %v718 = vmax.f32 %v614, 0.0
    %v719 = vmax.f32 %v616, 0.0
    %v720 = vmax.f32 %v618, 0.0
    %v721 = vmax.f32 %v620, 0.0
    %v722 = vmax.f32 %v624, 0.0
    %v723 = vmax.f32 %v626, 0.0
    %v724 = vmax.f32 %v628, 0.0
    %v725 = vmax.f32 %v630, 0.0
    %v726 = vmax.f32 %v634, 0.0
    %v727 = vmax.f32 %v636, 0.0
    %v728 = vmax.f32 %v638, 0.0
    %v729 = vmax.f32 %v640, 0.0
    %v730 = vmax.f32 %v644, 0.0
    %v731 = vmax.f32 %v646, 0.0
    %v732 = vmax.f32 %v648, 0.0
    %v733 = vmax.f32 %v650, 0.0
    %v734 = vmax.f32 %v654, 0.0
    %v735 = vmax.f32 %v656, 0.0
    %v736 = vmax.f32 %v658, 0.0
    %v737 = vmax.f32 %v660, 0.0
    %v738 = vmax.f32 %v664, 0.0
    %v739 = vmax.f32 %v666, 0.0
    %v740 = vmax.f32 %v668, 0.0
    %v741 = vmax.f32 %v670, 0.0
    %v742 = vmax.f32 %v674, 0.0
    %v743 = vmax.f32 %v676, 0.0
    %v744 = vmax.f32 %v678, 0.0
    %v745 = vmax.f32 %v680, 0.0
    %v746 = vld [vmem:[%s4] sm:$0xff]
    %v747 = vld [vmem:[%s4 + $0x8] sm:$0xff]
    %v748 = vld [vmem:[%s4 + $0x10] sm:$0xff]
    %v749 = vld [vmem:[%s4 + $0x18] sm:$0xff]
    %v750 = vld [vmem:[%s4 + $0x20] sm:$0xff]
    %v751 = vld [vmem:[%s4 + $0x28] sm:$0xff]
    %v752 = vld [vmem:[%s4 + $0x30] sm:$0xff]
    %v753 = vld [vmem:[%s4 + $0x38] sm:$0xff]
    %v754 = vld [vmem:[%s4 + $0x40] sm:$0xff]
    %v755 = vld [vmem:[%s4 + $0x48] sm:$0xff]
    %v756 = vld [vmem:[%s4 + $0x50] sm:$0xff]
    %v757 = vld [vmem:[%s4 + $0x58] sm:$0xff]
    %v758 = vld [vmem:[%s4 + $0x60] sm:$0xff]
    %v759 = vld [vmem:[%s4 + $0x68] sm:$0xff]
    %v760 = vld [vmem:[%s4 + $0x70] sm:$0xff]
    %v761 = vld [vmem:[%s4 + $0x78] sm:$0xff]
    %v762 = vld [vmem:[%s4 + $0x80] sm:$0xff]
    %v763 = vld [vmem:[%s4 + $0x88] sm:$0xff]
    %v764 = vld [vmem:[%s4 + $0x90] sm:$0xff]
    %v765 = vld [vmem:[%s4 + $0x98] sm:$0xff]
    %v766 = vld [vmem:[%s4 + $0xa0] sm:$0xff]
    %v767 = vld [vmem:[%s4 + $0xa8] sm:$0xff]
    %v768 = vld [vmem:[%s4 + $0xb0] sm:$0xff]
    %v769 = vld [vmem:[%s4 + $0xb8] sm:$0xff]
    %v770 = vld [vmem:[%s4 + $0xc0] sm:$0xff]
    %v771 = vld [vmem:[%s4 + $0xc8] sm:$0xff]
    %v772 = vld [vmem:[%s4 + $0xd0] sm:$0xff]
    %v773 = vld [vmem:[%s4 + $0xd8] sm:$0xff]
    %v774 = vld [vmem:[%s4 + $0xe0] sm:$0xff]
    %v775 = vld [vmem:[%s4 + $0xe8] sm:$0xff]
    %v776 = vld [vmem:[%s4 + $0xf0] sm:$0xff]
    %v777 = vld [vmem:[%s4 + $0xf8] sm:$0xff]
    %v778 = vld [vmem:[%s4 + $0x100] sm:$0xff]
    %v779 = vld [vmem:[%s4 + $0x108] sm:$0xff]
    %v780 = vld [vmem:[%s4 + $0x110] sm:$0xff]
    %v781 = vld [vmem:[%s4 + $0x118] sm:$0xff]
    %v782 = vld [vmem:[%s4 + $0x120] sm:$0xff]
    %v783 = vld [vmem:[%s4 + $0x128] sm:$0xff]
    %v784 = vld [vmem:[%s4 + $0x130] sm:$0xff]
    %v785 = vld [vmem:[%s4 + $0x138] sm:$0xff]
    %v786 = vld [vmem:[%s4 + $0x140] sm:$0xff]
    %v787 = vld [vmem:[%s4 + $0x148] sm:$0xff]
    %v788 = vld [vmem:[%s4 + $0x150] sm:$0xff]
    %v789 = vld [vmem:[%s4 + $0x158] sm:$0xff]
    %v790 = vld [vmem:[%s4 + $0x160] sm:$0xff]
    %v791 = vld [vmem:[%s4 + $0x168] sm:$0xff]
    %v792 = vld [vmem:[%s4 + $0x170] sm:$0xff]
    %v793 = vld [vmem:[%s4 + $0x178] sm:$0xff]
    %v794 = vld [vmem:[%s4 + $0x180] sm:$0xff]
    %v795 = vld [vmem:[%s4 + $0x188] sm:$0xff]
    %v796 = vld [vmem:[%s4 + $0x190] sm:$0xff]
    %v797 = vld [vmem:[%s4 + $0x198] sm:$0xff]
    %v798 = vld [vmem:[%s4 + $0x1a0] sm:$0xff]
    %v799 = vld [vmem:[%s4 + $0x1a8] sm:$0xff]
    %v800 = vld [vmem:[%s4 + $0x1b0] sm:$0xff]
    %v801 = vld [vmem:[%s4 + $0x1b8] sm:$0xff]
    %v802 = vld [vmem:[%s4 + $0x1c0] sm:$0xff]
    %v803 = vld [vmem:[%s4 + $0x1c8] sm:$0xff]
    %v804 = vld [vmem:[%s4 + $0x1d0] sm:$0xff]
    %v805 = vld [vmem:[%s4 + $0x1d8] sm:$0xff]
    %v806 = vld [vmem:[%s4 + $0x1e0] sm:$0xff]
    %v807 = vld [vmem:[%s4 + $0x1e8] sm:$0xff]
    %v808 = vld [vmem:[%s4 + $0x1f0] sm:$0xff]
    %v809 = vld [vmem:[%s4 + $0x1f8] sm:$0xff]
    %v810 = vld [vmem:[%s8 + $0x2] sm:$0xf]
    %v811 = vpack.c.bf16 %v684, %v682
    %v812 = vpack.c.bf16 %v685, %v683
    %v813 = vpack.c.bf16 %v688, %v686
    %v814 = vpack.c.bf16 %v689, %v687
    %v815 = vpack.c.bf16 %v692, %v690
    %v816 = vpack.c.bf16 %v693, %v691
    %v817 = vpack.c.bf16 %v696, %v694
    %v818 = vpack.c.bf16 %v697, %v695
    %v819 = vpack.c.bf16 %v700, %v698
    %v820 = vpack.c.bf16 %v701, %v699
    %v821 = vpack.c.bf16 %v704, %v702
    %v822 = vpack.c.bf16 %v705, %v703
    %v823 = vpack.c.bf16 %v708, %v706
    %v824 = vpack.c.bf16 %v709, %v707
    %v825 = vpack.c.bf16 %v712, %v710
    %v826 = vpack.c.bf16 %v713, %v711
    %v827 = vpack.c.bf16 %v716, %v714
    %v828 = vpack.c.bf16 %v717, %v715
    %v829 = vpack.c.bf16 %v720, %v718
    %v830 = vpack.c.bf16 %v721, %v719
    %v831 = vpack.c.bf16 %v724, %v722
    %v832 = vpack.c.bf16 %v725, %v723
    %v833 = vpack.c.bf16 %v728, %v726
    %v834 = vpack.c.bf16 %v729, %v727
    %v835 = vpack.c.bf16 %v732, %v730
    %v836 = vpack.c.bf16 %v733, %v731
    %v837 = vpack.c.bf16 %v736, %v734
    %v838 = vpack.c.bf16 %v737, %v735
    %v839 = vpack.c.bf16 %v740, %v738
    %v840 = vpack.c.bf16 %v741, %v739
    %v841 = vpack.c.bf16 %v744, %v742
    %v842 = vpack.c.bf16 %v745, %v743
    %v844 = vlaneseq
    %v845 = vshrl.u32 %v844, 7
    %v846 = vsub.s32 0, %v845
    %v847 = vrot.slane %v810, %v846
    %v848 = vlaneseq
    %v849 = vshrl.u32 %v848, 7
    %v850 = vsub.s32 1, %v849
    %v851 = vrot.slane %v810, %v850
    %v852 = vlaneseq
    %v853 = vshrl.u32 %v852, 7
    %v854 = vsub.s32 2, %v853
    %v855 = vrot.slane %v810, %v854
    %v856 = vlaneseq
    %v857 = vshrl.u32 %v856, 7
    %v858 = vsub.s32 3, %v857
    %v859 = vrot.slane %v810, %v858
    %v928 = vunpack.c.l.b16 %v746
    %v929 = vunpack.c.h.b16 %v746
    %v930 = vunpack.c.l.b16 %v747
    %v931 = vunpack.c.h.b16 %v747
    %v932 = vunpack.c.l.b16 %v748
    %v933 = vunpack.c.h.b16 %v748
    %v934 = vunpack.c.l.b16 %v749
    %v935 = vunpack.c.h.b16 %v749
    %v936 = vunpack.c.l.b16 %v750
    %v937 = vunpack.c.h.b16 %v750
    %v938 = vunpack.c.l.b16 %v751
    %v939 = vunpack.c.h.b16 %v751
    %v940 = vunpack.c.l.b16 %v752
    %v941 = vunpack.c.h.b16 %v752
    %v942 = vunpack.c.l.b16 %v753
    %v943 = vunpack.c.h.b16 %v753
    %v944 = vunpack.c.l.b16 %v754
    %v945 = vunpack.c.h.b16 %v754
    %v946 = vunpack.c.l.b16 %v755
    %v947 = vunpack.c.h.b16 %v755
    %v948 = vunpack.c.l.b16 %v756
    %v949 = vunpack.c.h.b16 %v756
    %v950 = vunpack.c.l.b16 %v757
    %v951 = vunpack.c.h.b16 %v757
    %v952 = vunpack.c.l.b16 %v758
    %v953 = vunpack.c.h.b16 %v758
    %v954 = vunpack.c.l.b16 %v759
    %v955 = vunpack.c.h.b16 %v759
    %v956 = vunpack.c.l.b16 %v760
    %v957 = vunpack.c.h.b16 %v760
    %v958 = vunpack.c.l.b16 %v761
    %v959 = vunpack.c.h.b16 %v761
    %v960 = vunpack.c.l.b16 %v762
    %v961 = vunpack.c.h.b16 %v762
    %v962 = vunpack.c.l.b16 %v763
    %v963 = vunpack.c.h.b16 %v763
    %v964 = vunpack.c.l.b16 %v764
    %v965 = vunpack.c.h.b16 %v764
    %v966 = vunpack.c.l.b16 %v765
    %v967 = vunpack.c.h.b16 %v765
    %v968 = vunpack.c.l.b16 %v766
    %v969 = vunpack.c.h.b16 %v766
    %v970 = vunpack.c.l.b16 %v767
    %v971 = vunpack.c.h.b16 %v767
    %v972 = vunpack.c.l.b16 %v768
    %v973 = vunpack.c.h.b16 %v768
    %v974 = vunpack.c.l.b16 %v769
    %v975 = vunpack.c.h.b16 %v769
    %v976 = vunpack.c.l.b16 %v770
    %v977 = vunpack.c.h.b16 %v770
    %v978 = vunpack.c.l.b16 %v771
    %v979 = vunpack.c.h.b16 %v771
    %v980 = vunpack.c.l.b16 %v772
    %v981 = vunpack.c.h.b16 %v772
    %v982 = vunpack.c.l.b16 %v773
    %v983 = vunpack.c.h.b16 %v773
    %v984 = vunpack.c.l.b16 %v774
    %v985 = vunpack.c.h.b16 %v774
    %v986 = vunpack.c.l.b16 %v775
    %v987 = vunpack.c.h.b16 %v775
    %v988 = vunpack.c.l.b16 %v776
    %v989 = vunpack.c.h.b16 %v776
    %v990 = vunpack.c.l.b16 %v777
    %v991 = vunpack.c.h.b16 %v777
    %v992 = vunpack.c.l.b16 %v778
    %v993 = vunpack.c.h.b16 %v778
    %v994 = vunpack.c.l.b16 %v779
    %v995 = vunpack.c.h.b16 %v779
    %v996 = vunpack.c.l.b16 %v780
    %v997 = vunpack.c.h.b16 %v780
    %v998 = vunpack.c.l.b16 %v781
    %v999 = vunpack.c.h.b16 %v781
    %v1000 = vunpack.c.l.b16 %v782
    %v1001 = vunpack.c.h.b16 %v782
    %v1002 = vunpack.c.l.b16 %v783
    %v1003 = vunpack.c.h.b16 %v783
    %v1004 = vunpack.c.l.b16 %v784
    %v1005 = vunpack.c.h.b16 %v784
    %v1006 = vunpack.c.l.b16 %v785
    %v1007 = vunpack.c.h.b16 %v785
    %v1008 = vunpack.c.l.b16 %v786
    %v1009 = vunpack.c.h.b16 %v786
    %v1010 = vunpack.c.l.b16 %v787
    %v1011 = vunpack.c.h.b16 %v787
    %v1012 = vunpack.c.l.b16 %v788
    %v1013 = vunpack.c.h.b16 %v788
    %v1014 = vunpack.c.l.b16 %v789
    %v1015 = vunpack.c.h.b16 %v789
    %v1016 = vunpack.c.l.b16 %v790
    %v1017 = vunpack.c.h.b16 %v790
    %v1018 = vunpack.c.l.b16 %v791
    %v1019 = vunpack.c.h.b16 %v791
    %v1020 = vunpack.c.l.b16 %v792
    %v1021 = vunpack.c.h.b16 %v792
    %v1022 = vunpack.c.l.b16 %v793
    %v1023 = vunpack.c.h.b16 %v793
    %v1024 = vunpack.c.l.b16 %v794
    %v1025 = vunpack.c.h.b16 %v794
    %v1026 = vunpack.c.l.b16 %v795
    %v1027 = vunpack.c.h.b16 %v795
    %v1028 = vunpack.c.l.b16 %v796
    %v1029 = vunpack.c.h.b16 %v796
    %v1030 = vunpack.c.l.b16 %v797
    %v1031 = vunpack.c.h.b16 %v797
    %v1032 = vunpack.c.l.b16 %v798
    %v1033 = vunpack.c.h.b16 %v798
    %v1034 = vunpack.c.l.b16 %v799
    %v1035 = vunpack.c.h.b16 %v799
    %v1036 = vunpack.c.l.b16 %v800
    %v1037 = vunpack.c.h.b16 %v800
    %v1038 = vunpack.c.l.b16 %v801
    %v1039 = vunpack.c.h.b16 %v801
    %v1040 = vunpack.c.l.b16 %v802
    %v1041 = vunpack.c.h.b16 %v802
    %v1042 = vunpack.c.l.b16 %v803
    %v1043 = vunpack.c.h.b16 %v803
    %v1044 = vunpack.c.l.b16 %v804
    %v1045 = vunpack.c.h.b16 %v804
    %v1046 = vunpack.c.l.b16 %v805
    %v1047 = vunpack.c.h.b16 %v805
    %v1048 = vunpack.c.l.b16 %v806
    %v1049 = vunpack.c.h.b16 %v806
    %v1050 = vunpack.c.l.b16 %v807
    %v1051 = vunpack.c.h.b16 %v807
    %v1052 = vunpack.c.l.b16 %v808
    %v1053 = vunpack.c.h.b16 %v808
    %v1054 = vunpack.c.l.b16 %v809
    %v1055 = vunpack.c.h.b16 %v809
    %v1056 = vpack.c.b16 %v932, %v928
    %v1057 = vpack.c.b16 %v933, %v929
    %v1058 = vpack.c.b16 %v934, %v930
    %v1059 = vpack.c.b16 %v935, %v931
    %v1060 = vpack.c.b16 %v940, %v936
    %v1061 = vpack.c.b16 %v941, %v937
    %v1062 = vpack.c.b16 %v942, %v938
    %v1063 = vpack.c.b16 %v943, %v939
    %v1064 = vpack.c.b16 %v948, %v944
    %v1065 = vpack.c.b16 %v949, %v945
    %v1066 = vpack.c.b16 %v950, %v946
    %v1067 = vpack.c.b16 %v951, %v947
    %v1068 = vpack.c.b16 %v956, %v952
    %v1069 = vpack.c.b16 %v957, %v953
    %v1070 = vpack.c.b16 %v958, %v954
    %v1071 = vpack.c.b16 %v959, %v955
    %v1072 = vpack.c.b16 %v964, %v960
    %v1073 = vpack.c.b16 %v965, %v961
    %v1074 = vpack.c.b16 %v966, %v962
    %v1075 = vpack.c.b16 %v967, %v963
    %v1076 = vpack.c.b16 %v972, %v968
    %v1077 = vpack.c.b16 %v973, %v969
    %v1078 = vpack.c.b16 %v974, %v970
    %v1079 = vpack.c.b16 %v975, %v971
    %v1080 = vpack.c.b16 %v980, %v976
    %v1081 = vpack.c.b16 %v981, %v977
    %v1082 = vpack.c.b16 %v982, %v978
    %v1083 = vpack.c.b16 %v983, %v979
    %v1084 = vpack.c.b16 %v988, %v984
    %v1085 = vpack.c.b16 %v989, %v985
    %v1086 = vpack.c.b16 %v990, %v986
    %v1087 = vpack.c.b16 %v991, %v987
    %v1088 = vpack.c.b16 %v996, %v992
    %v1089 = vpack.c.b16 %v997, %v993
    %v1090 = vpack.c.b16 %v998, %v994
    %v1091 = vpack.c.b16 %v999, %v995
    %v1092 = vpack.c.b16 %v1004, %v1000
    %v1093 = vpack.c.b16 %v1005, %v1001
    %v1094 = vpack.c.b16 %v1006, %v1002
    %v1095 = vpack.c.b16 %v1007, %v1003
    %v1096 = vpack.c.b16 %v1012, %v1008
    %v1097 = vpack.c.b16 %v1013, %v1009
    %v1098 = vpack.c.b16 %v1014, %v1010
    %v1099 = vpack.c.b16 %v1015, %v1011
    %v1100 = vpack.c.b16 %v1020, %v1016
    %v1101 = vpack.c.b16 %v1021, %v1017
    %v1102 = vpack.c.b16 %v1022, %v1018
    %v1103 = vpack.c.b16 %v1023, %v1019
    %v1104 = vpack.c.b16 %v1028, %v1024
    %v1105 = vpack.c.b16 %v1029, %v1025
    %v1106 = vpack.c.b16 %v1030, %v1026
    %v1107 = vpack.c.b16 %v1031, %v1027
    %v1108 = vpack.c.b16 %v1036, %v1032
    %v1109 = vpack.c.b16 %v1037, %v1033
    %v1110 = vpack.c.b16 %v1038, %v1034
    %v1111 = vpack.c.b16 %v1039, %v1035
    %v1112 = vpack.c.b16 %v1044, %v1040
    %v1113 = vpack.c.b16 %v1045, %v1041
    %v1114 = vpack.c.b16 %v1046, %v1042
    %v1115 = vpack.c.b16 %v1047, %v1043
    %v1116 = vpack.c.b16 %v1052, %v1048
    %v1117 = vpack.c.b16 %v1053, %v1049
    %v1118 = vpack.c.b16 %v1054, %v1050
    %v1119 = vpack.c.b16 %v1055, %v1051
    %1184 = vmatprep.subr.bf16.mxu0 %v1085
    %1185 = vmatpush1.bf16.msra.mxu0 %v1084
    %1186 = vmatprep.subr.bf16.mxu0 %v1081
    %1187 = vmatpush1.bf16.msra.mxu0 %v1080
    %1188 = vmatprep.subr.bf16.mxu0 %v1077
    %1189 = vmatpush1.bf16.msra.mxu0 %v1076
    %1190 = vmatprep.subr.bf16.mxu0 %v1073
    %1191 = vmatpush1.bf16.msra.mxu0 %v1072
    %1192 = vmatprep.subr.bf16.mxu0 %v1069
    %1193 = vmatpush1.bf16.msra.mxu0 %v1068
    %1194 = vmatprep.subr.bf16.mxu0 %v1065
    %1195 = vmatpush1.bf16.msra.mxu0 %v1064
    %1196 = vmatprep.subr.bf16.mxu0 %v1061
    %1197 = vmatpush1.bf16.msra.mxu0 %v1060
    %1198 = vmatprep.subr.bf16.mxu0 %v1057
    %1199 = vmatpush1.bf16.msra.mxu0 %v1056
    %1200 = vmatprep.subr.bf16.mxu0 %v1117
    %1201 = vmatpush2.bf16.msra.mxu0 %v1116
    %1202 = vmatprep.subr.bf16.mxu0 %v1113
    %1203 = vmatpush2.bf16.msra.mxu0 %v1112
    %1204 = vmatprep.subr.bf16.mxu0 %v1109
    %1205 = vmatpush2.bf16.msra.mxu0 %v1108
    %1206 = vmatprep.subr.bf16.mxu0 %v1105
    %1207 = vmatpush2.bf16.msra.mxu0 %v1104
    %1208 = vmatprep.subr.bf16.mxu0 %v1101
    %1209 = vmatpush2.bf16.msra.mxu0 %v1100
    %1210 = vmatprep.subr.bf16.mxu0 %v1097
    %1211 = vmatpush2.bf16.msra.mxu0 %v1096
    %1212 = vmatprep.subr.bf16.mxu0 %v1093
    %1213 = vmatpush2.bf16.msra.mxu0 %v1092
    %1214 = vmatprep.subr.bf16.mxu0 %v1089
    %1215 = vmatpush2.bf16.msra.mxu0 %v1088
    %1216 = vmatprep.mubr.bf16.mxu0 %v812
    %1217 = vmatmul.mubr.bf16.gmra.mxu0 %v811
    %v1218 = vpop.f32.mrf.mxu0
    %v1219 = vadd.f32 %v847, %v1218
    %v1220 = vpop.f32.mrf.mxu0
    %v1221 = vadd.f32 %v851, %v1220
    %v1222 = vpop.f32.mrf.mxu0
    %v1223 = vadd.f32 %v847, %v1222
    %v1224 = vpop.f32.mrf.mxu0
    %v1225 = vadd.f32 %v851, %v1224
    %1226 = vmatprep.mubr.bf16.mxu0 %v814
    %1227 = vmatmul.mubr.bf16.gmra.mxu0 %v813
    %v1228 = vpop.f32.mrf.mxu0
    %v1229 = vadd.f32 %v847, %v1228
    %v1230 = vpop.f32.mrf.mxu0
    %v1231 = vadd.f32 %v851, %v1230
    %v1232 = vpop.f32.mrf.mxu0
    %v1233 = vadd.f32 %v847, %v1232
    %v1234 = vpop.f32.mrf.mxu0
    %v1235 = vadd.f32 %v851, %v1234
    %1236 = vmatprep.mubr.bf16.mxu0 %v816
    %1237 = vmatmul.mubr.bf16.gmra.mxu0 %v815
    %v1238 = vpop.f32.mrf.mxu0
    %v1239 = vadd.f32 %v847, %v1238
    %v1240 = vpop.f32.mrf.mxu0
    %v1241 = vadd.f32 %v851, %v1240
    %v1242 = vpop.f32.mrf.mxu0
    %v1243 = vadd.f32 %v847, %v1242
    %v1244 = vpop.f32.mrf.mxu0
    %v1245 = vadd.f32 %v851, %v1244
    %1246 = vmatprep.mubr.bf16.mxu0 %v818
    %1247 = vmatmul.mubr.bf16.gmra.mxu0 %v817
    %v1248 = vpop.f32.mrf.mxu0
    %v1249 = vadd.f32 %v847, %v1248
    %v1250 = vpop.f32.mrf.mxu0
    %v1251 = vadd.f32 %v851, %v1250
    %v1252 = vpop.f32.mrf.mxu0
    %v1253 = vadd.f32 %v847, %v1252
    %v1254 = vpop.f32.mrf.mxu0
    %v1255 = vadd.f32 %v851, %v1254
    %1256 = vmatprep.mubr.bf16.mxu0 %v820
    %1257 = vmatmul.mubr.bf16.gmra.mxu0 %v819
    %v1258 = vpop.f32.mrf.mxu0
    %v1259 = vadd.f32 %v847, %v1258
    %v1260 = vpop.f32.mrf.mxu0
    %v1261 = vadd.f32 %v851, %v1260
    %v1262 = vpop.f32.mrf.mxu0
    %v1263 = vadd.f32 %v847, %v1262
    %v1264 = vpop.f32.mrf.mxu0
    %v1265 = vadd.f32 %v851, %v1264
    %1266 = vmatprep.mubr.bf16.mxu0 %v822
    %1267 = vmatmul.mubr.bf16.gmra.mxu0 %v821
    %v1268 = vpop.f32.mrf.mxu0
    %v1269 = vadd.f32 %v847, %v1268
    %v1270 = vpop.f32.mrf.mxu0
    %v1271 = vadd.f32 %v851, %v1270
    %v1272 = vpop.f32.mrf.mxu0
    %v1273 = vadd.f32 %v847, %v1272
    %v1274 = vpop.f32.mrf.mxu0
    %v1275 = vadd.f32 %v851, %v1274
    %1276 = vmatprep.mubr.bf16.mxu0 %v824
    %1277 = vmatmul.mubr.bf16.gmra.mxu0 %v823
    %v1278 = vpop.f32.mrf.mxu0
    %v1279 = vadd.f32 %v847, %v1278
    %v1280 = vpop.f32.mrf.mxu0
    %v1281 = vadd.f32 %v851, %v1280
    %v1282 = vpop.f32.mrf.mxu0
    %v1283 = vadd.f32 %v847, %v1282
    %v1284 = vpop.f32.mrf.mxu0
    %v1285 = vadd.f32 %v851, %v1284
    %1286 = vmatprep.mubr.bf16.mxu0 %v826
    %1287 = vmatmul.mubr.bf16.gmra.mxu0 %v825
    %v1288 = vpop.f32.mrf.mxu0
    %v1289 = vadd.f32 %v847, %v1288
    %v1290 = vpop.f32.mrf.mxu0
    %v1291 = vadd.f32 %v851, %v1290
    %v1292 = vpop.f32.mrf.mxu0
    %v1293 = vadd.f32 %v847, %v1292
    %v1294 = vpop.f32.mrf.mxu0
    %v1295 = vadd.f32 %v851, %v1294
    %1296 = vmatprep.mubr.bf16.mxu0 %v828
    %1297 = vmatmul.mubr.bf16.gmra.mxu0 %v827
    %v1298 = vpop.f32.mrf.mxu0
    %v1299 = vadd.f32 %v847, %v1298
    %v1300 = vpop.f32.mrf.mxu0
    %v1301 = vadd.f32 %v851, %v1300
    %v1302 = vpop.f32.mrf.mxu0
    %v1303 = vadd.f32 %v847, %v1302
    %v1304 = vpop.f32.mrf.mxu0
    %v1305 = vadd.f32 %v851, %v1304
    %1306 = vmatprep.mubr.bf16.mxu0 %v830
    %1307 = vmatmul.mubr.bf16.gmra.mxu0 %v829
    %v1308 = vpop.f32.mrf.mxu0
    %v1309 = vadd.f32 %v847, %v1308
    %v1310 = vpop.f32.mrf.mxu0
    %v1311 = vadd.f32 %v851, %v1310
    %v1312 = vpop.f32.mrf.mxu0
    %v1313 = vadd.f32 %v847, %v1312
    %v1314 = vpop.f32.mrf.mxu0
    %v1315 = vadd.f32 %v851, %v1314
    %1316 = vmatprep.mubr.bf16.mxu0 %v832
    %1317 = vmatmul.mubr.bf16.gmra.mxu0 %v831
    %v1318 = vpop.f32.mrf.mxu0
    %v1319 = vadd.f32 %v847, %v1318
    %v1320 = vpop.f32.mrf.mxu0
    %v1321 = vadd.f32 %v851, %v1320
    %v1322 = vpop.f32.mrf.mxu0
    %v1323 = vadd.f32 %v847, %v1322
    %v1324 = vpop.f32.mrf.mxu0
    %v1325 = vadd.f32 %v851, %v1324
    %1326 = vmatprep.mubr.bf16.mxu0 %v834
    %1327 = vmatmul.mubr.bf16.gmra.mxu0 %v833
    %v1328 = vpop.f32.mrf.mxu0
    %v1329 = vadd.f32 %v847, %v1328
    %v1330 = vpop.f32.mrf.mxu0
    %v1331 = vadd.f32 %v851, %v1330
    %v1332 = vpop.f32.mrf.mxu0
    %v1333 = vadd.f32 %v847, %v1332
    %v1334 = vpop.f32.mrf.mxu0
    %v1335 = vadd.f32 %v851, %v1334
    %1336 = vmatprep.mubr.bf16.mxu0 %v836
    %1337 = vmatmul.mubr.bf16.gmra.mxu0 %v835
    %v1338 = vpop.f32.mrf.mxu0
    %v1339 = vadd.f32 %v847, %v1338
    %v1340 = vpop.f32.mrf.mxu0
    %v1341 = vadd.f32 %v851, %v1340
    %v1342 = vpop.f32.mrf.mxu0
    %v1343 = vadd.f32 %v847, %v1342
    %v1344 = vpop.f32.mrf.mxu0
    %v1345 = vadd.f32 %v851, %v1344
    %1346 = vmatprep.mubr.bf16.mxu0 %v838
    %1347 = vmatmul.mubr.bf16.gmra.mxu0 %v837
    %v1348 = vpop.f32.mrf.mxu0
    %v1349 = vadd.f32 %v847, %v1348
    %v1350 = vpop.f32.mrf.mxu0
    %v1351 = vadd.f32 %v851, %v1350
    %v1352 = vpop.f32.mrf.mxu0
    %v1353 = vadd.f32 %v847, %v1352
    %v1354 = vpop.f32.mrf.mxu0
    %v1355 = vadd.f32 %v851, %v1354
    %1356 = vmatprep.mubr.bf16.mxu0 %v840
    %1357 = vmatmul.mubr.bf16.gmra.mxu0 %v839
    %v1358 = vpop.f32.mrf.mxu0
    %v1359 = vadd.f32 %v847, %v1358
    %v1360 = vpop.f32.mrf.mxu0
    %v1361 = vadd.f32 %v851, %v1360
    %v1362 = vpop.f32.mrf.mxu0
    %v1363 = vadd.f32 %v847, %v1362
    %v1364 = vpop.f32.mrf.mxu0
    %v1365 = vadd.f32 %v851, %v1364
    %1366 = vmatprep.mubr.bf16.mxu0 %v842
    %1367 = vmatmul.mubr.bf16.gmra.mxu0 %v841
    %v1368 = vpop.f32.mrf.mxu0
    %v1369 = vadd.f32 %v847, %v1368
    %v1370 = vpop.f32.mrf.mxu0
    %v1371 = vadd.f32 %v851, %v1370
    %v1372 = vpop.f32.mrf.mxu0
    %v1373 = vadd.f32 %v847, %v1372
    %v1374 = vpop.f32.mrf.mxu0
    %v1375 = vadd.f32 %v851, %v1374
    %1376 = vdwg.mxu0
    %1377 = vmatprep.subr.bf16.mxu0 %v1087
    %1378 = vmatpush1.bf16.msra.mxu0 %v1086
    %1379 = vmatprep.subr.bf16.mxu0 %v1083
    %1380 = vmatpush1.bf16.msra.mxu0 %v1082
    %1381 = vmatprep.subr.bf16.mxu0 %v1079
    %1382 = vmatpush1.bf16.msra.mxu0 %v1078
    %1383 = vmatprep.subr.bf16.mxu0 %v1075
    %1384 = vmatpush1.bf16.msra.mxu0 %v1074
    %1385 = vmatprep.subr.bf16.mxu0 %v1071
    %1386 = vmatpush1.bf16.msra.mxu0 %v1070
    %1387 = vmatprep.subr.bf16.mxu0 %v1067
    %1388 = vmatpush1.bf16.msra.mxu0 %v1066
    %1389 = vmatprep.subr.bf16.mxu0 %v1063
    %1390 = vmatpush1.bf16.msra.mxu0 %v1062
    %1391 = vmatprep.subr.bf16.mxu0 %v1059
    %1392 = vmatpush1.bf16.msra.mxu0 %v1058
    %1393 = vmatprep.subr.bf16.mxu0 %v1119
    %1394 = vmatpush2.bf16.msra.mxu0 %v1118
    %1395 = vmatprep.subr.bf16.mxu0 %v1115
    %1396 = vmatpush2.bf16.msra.mxu0 %v1114
    %1397 = vmatprep.subr.bf16.mxu0 %v1111
    %1398 = vmatpush2.bf16.msra.mxu0 %v1110
    %1399 = vmatprep.subr.bf16.mxu0 %v1107
    %1400 = vmatpush2.bf16.msra.mxu0 %v1106
    %1401 = vmatprep.subr.bf16.mxu0 %v1103
    %1402 = vmatpush2.bf16.msra.mxu0 %v1102
    %1403 = vmatprep.subr.bf16.mxu0 %v1099
    %1404 = vmatpush2.bf16.msra.mxu0 %v1098
    %1405 = vmatprep.subr.bf16.mxu0 %v1095
    %1406 = vmatpush2.bf16.msra.mxu0 %v1094
    %1407 = vmatprep.subr.bf16.mxu0 %v1091
    %1408 = vmatpush2.bf16.msra.mxu0 %v1090
    %1409 = vmatprep.mubr.bf16.mxu0 %v812
    %1410 = vmatmul.mubr.bf16.gmra.mxu0 %v811
    %v1411 = vpop.f32.mrf.mxu0
    %v1412 = vadd.f32 %v855, %v1411
    %v1413 = vpop.f32.mrf.mxu0
    %v1414 = vadd.f32 %v859, %v1413
    %v1415 = vpop.f32.mrf.mxu0
    %v1416 = vadd.f32 %v855, %v1415
    %v1417 = vpop.f32.mrf.mxu0
    %v1418 = vadd.f32 %v859, %v1417
    %1419 = vmatprep.mubr.bf16.mxu0 %v814
    %1420 = vmatmul.mubr.bf16.gmra.mxu0 %v813
    %v1421 = vpop.f32.mrf.mxu0
    %v1422 = vadd.f32 %v855, %v1421
    %v1423 = vpop.f32.mrf.mxu0
    %v1424 = vadd.f32 %v859, %v1423
    %v1425 = vpop.f32.mrf.mxu0
    %v1426 = vadd.f32 %v855, %v1425
    %v1427 = vpop.f32.mrf.mxu0
    %v1428 = vadd.f32 %v859, %v1427
    %1429 = vmatprep.mubr.bf16.mxu0 %v816
    %1430 = vmatmul.mubr.bf16.gmra.mxu0 %v815
    %v1431 = vpop.f32.mrf.mxu0
    %v1432 = vadd.f32 %v855, %v1431
    %v1433 = vpop.f32.mrf.mxu0
    %v1434 = vadd.f32 %v859, %v1433
    %v1435 = vpop.f32.mrf.mxu0
    %v1436 = vadd.f32 %v855, %v1435
    %v1437 = vpop.f32.mrf.mxu0
    %v1438 = vadd.f32 %v859, %v1437
    %1439 = vmatprep.mubr.bf16.mxu0 %v818
    %1440 = vmatmul.mubr.bf16.gmra.mxu0 %v817
    %v1441 = vpop.f32.mrf.mxu0
    %v1442 = vadd.f32 %v855, %v1441
    %v1443 = vpop.f32.mrf.mxu0
    %v1444 = vadd.f32 %v859, %v1443
    %v1445 = vpop.f32.mrf.mxu0
    %v1446 = vadd.f32 %v855, %v1445
    %v1447 = vpop.f32.mrf.mxu0
    %v1448 = vadd.f32 %v859, %v1447
    %1449 = vmatprep.mubr.bf16.mxu0 %v820
    %1450 = vmatmul.mubr.bf16.gmra.mxu0 %v819
    %v1451 = vpop.f32.mrf.mxu0
    %v1452 = vadd.f32 %v855, %v1451
    %v1453 = vpop.f32.mrf.mxu0
    %v1454 = vadd.f32 %v859, %v1453
    %v1455 = vpop.f32.mrf.mxu0
    %v1456 = vadd.f32 %v855, %v1455
    %v1457 = vpop.f32.mrf.mxu0
    %v1458 = vadd.f32 %v859, %v1457
    %1459 = vmatprep.mubr.bf16.mxu0 %v822
    %1460 = vmatmul.mubr.bf16.gmra.mxu0 %v821
    %v1461 = vpop.f32.mrf.mxu0
    %v1462 = vadd.f32 %v855, %v1461
    %v1463 = vpop.f32.mrf.mxu0
    %v1464 = vadd.f32 %v859, %v1463
    %v1465 = vpop.f32.mrf.mxu0
    %v1466 = vadd.f32 %v855, %v1465
    %v1467 = vpop.f32.mrf.mxu0
    %v1468 = vadd.f32 %v859, %v1467
    %1469 = vmatprep.mubr.bf16.mxu0 %v824
    %1470 = vmatmul.mubr.bf16.gmra.mxu0 %v823
    %v1471 = vpop.f32.mrf.mxu0
    %v1472 = vadd.f32 %v855, %v1471
    %v1473 = vpop.f32.mrf.mxu0
    %v1474 = vadd.f32 %v859, %v1473
    %v1475 = vpop.f32.mrf.mxu0
    %v1476 = vadd.f32 %v855, %v1475
    %v1477 = vpop.f32.mrf.mxu0
    %v1478 = vadd.f32 %v859, %v1477
    %1479 = vmatprep.mubr.bf16.mxu0 %v826
    %1480 = vmatmul.mubr.bf16.gmra.mxu0 %v825
    %v1481 = vpop.f32.mrf.mxu0
    %v1482 = vadd.f32 %v855, %v1481
    %v1483 = vpop.f32.mrf.mxu0
    %v1484 = vadd.f32 %v859, %v1483
    %v1485 = vpop.f32.mrf.mxu0
    %v1486 = vadd.f32 %v855, %v1485
    %v1487 = vpop.f32.mrf.mxu0
    %v1488 = vadd.f32 %v859, %v1487
    %1489 = vmatprep.mubr.bf16.mxu0 %v828
    %1490 = vmatmul.mubr.bf16.gmra.mxu0 %v827
    %v1491 = vpop.f32.mrf.mxu0
    %v1492 = vadd.f32 %v855, %v1491
    %v1493 = vpop.f32.mrf.mxu0
    %v1494 = vadd.f32 %v859, %v1493
    %v1495 = vpop.f32.mrf.mxu0
    %v1496 = vadd.f32 %v855, %v1495
    %v1497 = vpop.f32.mrf.mxu0
    %v1498 = vadd.f32 %v859, %v1497
    %1499 = vmatprep.mubr.bf16.mxu0 %v830
    %1500 = vmatmul.mubr.bf16.gmra.mxu0 %v829
    %v1501 = vpop.f32.mrf.mxu0
    %v1502 = vadd.f32 %v855, %v1501
    %v1503 = vpop.f32.mrf.mxu0
    %v1504 = vadd.f32 %v859, %v1503
    %v1505 = vpop.f32.mrf.mxu0
    %v1506 = vadd.f32 %v855, %v1505
    %v1507 = vpop.f32.mrf.mxu0
    %v1508 = vadd.f32 %v859, %v1507
    %1509 = vmatprep.mubr.bf16.mxu0 %v832
    %1510 = vmatmul.mubr.bf16.gmra.mxu0 %v831
    %v1511 = vpop.f32.mrf.mxu0
    %v1512 = vadd.f32 %v855, %v1511
    %v1513 = vpop.f32.mrf.mxu0
    %v1514 = vadd.f32 %v859, %v1513
    %v1515 = vpop.f32.mrf.mxu0
    %v1516 = vadd.f32 %v855, %v1515
    %v1517 = vpop.f32.mrf.mxu0
    %v1518 = vadd.f32 %v859, %v1517
    %1519 = vmatprep.mubr.bf16.mxu0 %v834
    %1520 = vmatmul.mubr.bf16.gmra.mxu0 %v833
    %v1521 = vpop.f32.mrf.mxu0
    %v1522 = vadd.f32 %v855, %v1521
    %v1523 = vpop.f32.mrf.mxu0
    %v1524 = vadd.f32 %v859, %v1523
    %v1525 = vpop.f32.mrf.mxu0
    %v1526 = vadd.f32 %v855, %v1525
    %v1527 = vpop.f32.mrf.mxu0
    %v1528 = vadd.f32 %v859, %v1527
    %1529 = vmatprep.mubr.bf16.mxu0 %v836
    %1530 = vmatmul.mubr.bf16.gmra.mxu0 %v835
    %v1531 = vpop.f32.mrf.mxu0
    %v1532 = vadd.f32 %v855, %v1531
    %v1533 = vpop.f32.mrf.mxu0
    %v1534 = vadd.f32 %v859, %v1533
    %v1535 = vpop.f32.mrf.mxu0
    %v1536 = vadd.f32 %v855, %v1535
    %v1537 = vpop.f32.mrf.mxu0
    %v1538 = vadd.f32 %v859, %v1537
    %1539 = vmatprep.mubr.bf16.mxu0 %v838
    %1540 = vmatmul.mubr.bf16.gmra.mxu0 %v837
    %v1541 = vpop.f32.mrf.mxu0
    %v1542 = vadd.f32 %v855, %v1541
    %v1543 = vpop.f32.mrf.mxu0
    %v1544 = vadd.f32 %v859, %v1543
    %v1545 = vpop.f32.mrf.mxu0
    %v1546 = vadd.f32 %v855, %v1545
    %v1547 = vpop.f32.mrf.mxu0
    %v1548 = vadd.f32 %v859, %v1547
    %1549 = vmatprep.mubr.bf16.mxu0 %v840
    %1550 = vmatmul.mubr.bf16.gmra.mxu0 %v839
    %v1551 = vpop.f32.mrf.mxu0
    %v1552 = vadd.f32 %v855, %v1551
    %v1553 = vpop.f32.mrf.mxu0
    %v1554 = vadd.f32 %v859, %v1553
    %v1555 = vpop.f32.mrf.mxu0
    %v1556 = vadd.f32 %v855, %v1555
    %v1557 = vpop.f32.mrf.mxu0
    %v1558 = vadd.f32 %v859, %v1557
    %1559 = vmatprep.mubr.bf16.mxu0 %v842
    %1560 = vmatmul.mubr.bf16.gmra.mxu0 %v841
    %v1561 = vpop.f32.mrf.mxu0
    %v1562 = vadd.f32 %v855, %v1561
    %v1563 = vpop.f32.mrf.mxu0
    %v1564 = vadd.f32 %v859, %v1563
    %v1565 = vpop.f32.mrf.mxu0
    %v1566 = vadd.f32 %v855, %v1565
    %v1567 = vpop.f32.mrf.mxu0
    %v1568 = vadd.f32 %v859, %v1567
    %1569 = vdwg.mxu0
    %v1570 = vmax.f32 %v1219, 0.0
    %v1571 = vmax.f32 %v1221, 0.0
    %v1572 = vmax.f32 %v1412, 0.0
    %v1573 = vmax.f32 %v1414, 0.0
    %v1574 = vmax.f32 %v1223, 0.0
    %v1575 = vmax.f32 %v1225, 0.0
    %v1576 = vmax.f32 %v1416, 0.0
    %v1577 = vmax.f32 %v1418, 0.0
    %v1578 = vmax.f32 %v1229, 0.0
    %v1579 = vmax.f32 %v1231, 0.0
    %v1580 = vmax.f32 %v1422, 0.0
    %v1581 = vmax.f32 %v1424, 0.0
    %v1582 = vmax.f32 %v1233, 0.0
    %v1583 = vmax.f32 %v1235, 0.0
    %v1584 = vmax.f32 %v1426, 0.0
    %v1585 = vmax.f32 %v1428, 0.0
    %v1586 = vmax.f32 %v1239, 0.0
    %v1587 = vmax.f32 %v1241, 0.0
    %v1588 = vmax.f32 %v1432, 0.0
    %v1589 = vmax.f32 %v1434, 0.0
    %v1590 = vmax.f32 %v1243, 0.0
    %v1591 = vmax.f32 %v1245, 0.0
    %v1592 = vmax.f32 %v1436, 0.0
    %v1593 = vmax.f32 %v1438, 0.0
    %v1594 = vmax.f32 %v1249, 0.0
    %v1595 = vmax.f32 %v1251, 0.0
    %v1596 = vmax.f32 %v1442, 0.0
    %v1597 = vmax.f32 %v1444, 0.0
    %v1598 = vmax.f32 %v1253, 0.0
    %v1599 = vmax.f32 %v1255, 0.0
    %v1600 = vmax.f32 %v1446, 0.0
    %v1601 = vmax.f32 %v1448, 0.0
    %v1602 = vmax.f32 %v1259, 0.0
    %v1603 = vmax.f32 %v1261, 0.0
    %v1604 = vmax.f32 %v1452, 0.0
    %v1605 = vmax.f32 %v1454, 0.0
    %v1606 = vmax.f32 %v1263, 0.0
    %v1607 = vmax.f32 %v1265, 0.0
    %v1608 = vmax.f32 %v1456, 0.0
    %v1609 = vmax.f32 %v1458, 0.0
    %v1610 = vmax.f32 %v1269, 0.0
    %v1611 = vmax.f32 %v1271, 0.0
    %v1612 = vmax.f32 %v1462, 0.0
    %v1613 = vmax.f32 %v1464, 0.0
    %v1614 = vmax.f32 %v1273, 0.0
    %v1615 = vmax.f32 %v1275, 0.0
    %v1616 = vmax.f32 %v1466, 0.0
    %v1617 = vmax.f32 %v1468, 0.0
    %v1618 = vmax.f32 %v1279, 0.0
    %v1619 = vmax.f32 %v1281, 0.0
    %v1620 = vmax.f32 %v1472, 0.0
    %v1621 = vmax.f32 %v1474, 0.0
    %v1622 = vmax.f32 %v1283, 0.0
    %v1623 = vmax.f32 %v1285, 0.0
    %v1624 = vmax.f32 %v1476, 0.0
    %v1625 = vmax.f32 %v1478, 0.0
    %v1626 = vmax.f32 %v1289, 0.0
    %v1627 = vmax.f32 %v1291, 0.0
    %v1628 = vmax.f32 %v1482, 0.0
    %v1629 = vmax.f32 %v1484, 0.0
    %v1630 = vmax.f32 %v1293, 0.0
    %v1631 = vmax.f32 %v1295, 0.0
    %v1632 = vmax.f32 %v1486, 0.0
    %v1633 = vmax.f32 %v1488, 0.0
    %v1634 = vmax.f32 %v1299, 0.0
    %v1635 = vmax.f32 %v1301, 0.0
    %v1636 = vmax.f32 %v1492, 0.0
    %v1637 = vmax.f32 %v1494, 0.0
    %v1638 = vmax.f32 %v1303, 0.0
    %v1639 = vmax.f32 %v1305, 0.0
    %v1640 = vmax.f32 %v1496, 0.0
    %v1641 = vmax.f32 %v1498, 0.0
    %v1642 = vmax.f32 %v1309, 0.0
    %v1643 = vmax.f32 %v1311, 0.0
    %v1644 = vmax.f32 %v1502, 0.0
    %v1645 = vmax.f32 %v1504, 0.0
    %v1646 = vmax.f32 %v1313, 0.0
    %v1647 = vmax.f32 %v1315, 0.0
    %v1648 = vmax.f32 %v1506, 0.0
    %v1649 = vmax.f32 %v1508, 0.0
    %v1650 = vmax.f32 %v1319, 0.0
    %v1651 = vmax.f32 %v1321, 0.0
    %v1652 = vmax.f32 %v1512, 0.0
    %v1653 = vmax.f32 %v1514, 0.0
    %v1654 = vmax.f32 %v1323, 0.0
    %v1655 = vmax.f32 %v1325, 0.0
    %v1656 = vmax.f32 %v1516, 0.0
    %v1657 = vmax.f32 %v1518, 0.0
    %v1658 = vmax.f32 %v1329, 0.0
    %v1659 = vmax.f32 %v1331, 0.0
    %v1660 = vmax.f32 %v1522, 0.0
    %v1661 = vmax.f32 %v1524, 0.0
    %v1662 = vmax.f32 %v1333, 0.0
    %v1663 = vmax.f32 %v1335, 0.0
    %v1664 = vmax.f32 %v1526, 0.0
    %v1665 = vmax.f32 %v1528, 0.0
    %v1666 = vmax.f32 %v1339, 0.0
    %v1667 = vmax.f32 %v1341, 0.0
    %v1668 = vmax.f32 %v1532, 0.0
    %v1669 = vmax.f32 %v1534, 0.0
    %v1670 = vmax.f32 %v1343, 0.0
    %v1671 = vmax.f32 %v1345, 0.0
    %v1672 = vmax.f32 %v1536, 0.0
    %v1673 = vmax.f32 %v1538, 0.0
    %v1674 = vmax.f32 %v1349, 0.0
    %v1675 = vmax.f32 %v1351, 0.0
    %v1676 = vmax.f32 %v1542, 0.0
    %v1677 = vmax.f32 %v1544, 0.0
    %v1678 = vmax.f32 %v1353, 0.0
    %v1679 = vmax.f32 %v1355, 0.0
    %v1680 = vmax.f32 %v1546, 0.0
    %v1681 = vmax.f32 %v1548, 0.0
    %v1682 = vmax.f32 %v1359, 0.0
    %v1683 = vmax.f32 %v1361, 0.0
    %v1684 = vmax.f32 %v1552, 0.0
    %v1685 = vmax.f32 %v1554, 0.0
    %v1686 = vmax.f32 %v1363, 0.0
    %v1687 = vmax.f32 %v1365, 0.0
    %v1688 = vmax.f32 %v1556, 0.0
    %v1689 = vmax.f32 %v1558, 0.0
    %v1690 = vmax.f32 %v1369, 0.0
    %v1691 = vmax.f32 %v1371, 0.0
    %v1692 = vmax.f32 %v1562, 0.0
    %v1693 = vmax.f32 %v1564, 0.0
    %v1694 = vmax.f32 %v1373, 0.0
    %v1695 = vmax.f32 %v1375, 0.0
    %v1696 = vmax.f32 %v1566, 0.0
    %v1697 = vmax.f32 %v1568, 0.0
    %v1698 = vld [vmem:[%s4 + $0x200] sm:$0xff]
    %v1699 = vld [vmem:[%s4 + $0x208] sm:$0xff]
    %v1700 = vld [vmem:[%s4 + $0x210] sm:$0xff]
    %v1701 = vld [vmem:[%s4 + $0x218] sm:$0xff]
    %v1702 = vld [vmem:[%s4 + $0x220] sm:$0xff]
    %v1703 = vld [vmem:[%s4 + $0x228] sm:$0xff]
    %v1704 = vld [vmem:[%s4 + $0x230] sm:$0xff]
    %v1705 = vld [vmem:[%s4 + $0x238] sm:$0xff]
    %v1706 = vld [vmem:[%s4 + $0x240] sm:$0xff]
    %v1707 = vld [vmem:[%s4 + $0x248] sm:$0xff]
    %v1708 = vld [vmem:[%s4 + $0x250] sm:$0xff]
    %v1709 = vld [vmem:[%s4 + $0x258] sm:$0xff]
    %v1710 = vld [vmem:[%s4 + $0x260] sm:$0xff]
    %v1711 = vld [vmem:[%s4 + $0x268] sm:$0xff]
    %v1712 = vld [vmem:[%s4 + $0x270] sm:$0xff]
    %v1713 = vld [vmem:[%s4 + $0x278] sm:$0xff]
    %v1714 = vld [vmem:[%s4 + $0x280] sm:$0xff]
    %v1715 = vld [vmem:[%s4 + $0x288] sm:$0xff]
    %v1716 = vld [vmem:[%s4 + $0x290] sm:$0xff]
    %v1717 = vld [vmem:[%s4 + $0x298] sm:$0xff]
    %v1718 = vld [vmem:[%s4 + $0x2a0] sm:$0xff]
    %v1719 = vld [vmem:[%s4 + $0x2a8] sm:$0xff]
    %v1720 = vld [vmem:[%s4 + $0x2b0] sm:$0xff]
    %v1721 = vld [vmem:[%s4 + $0x2b8] sm:$0xff]
    %v1722 = vld [vmem:[%s4 + $0x2c0] sm:$0xff]
    %v1723 = vld [vmem:[%s4 + $0x2c8] sm:$0xff]
    %v1724 = vld [vmem:[%s4 + $0x2d0] sm:$0xff]
    %v1725 = vld [vmem:[%s4 + $0x2d8] sm:$0xff]
    %v1726 = vld [vmem:[%s4 + $0x2e0] sm:$0xff]
    %v1727 = vld [vmem:[%s4 + $0x2e8] sm:$0xff]
    %v1728 = vld [vmem:[%s4 + $0x2f0] sm:$0xff]
    %v1729 = vld [vmem:[%s4 + $0x2f8] sm:$0xff]
    %v1730 = vld [vmem:[%s4 + $0x300] sm:$0xff]
    %v1731 = vld [vmem:[%s4 + $0x308] sm:$0xff]
    %v1732 = vld [vmem:[%s4 + $0x310] sm:$0xff]
    %v1733 = vld [vmem:[%s4 + $0x318] sm:$0xff]
    %v1734 = vld [vmem:[%s4 + $0x320] sm:$0xff]
    %v1735 = vld [vmem:[%s4 + $0x328] sm:$0xff]
    %v1736 = vld [vmem:[%s4 + $0x330] sm:$0xff]
    %v1737 = vld [vmem:[%s4 + $0x338] sm:$0xff]
    %v1738 = vld [vmem:[%s4 + $0x340] sm:$0xff]
    %v1739 = vld [vmem:[%s4 + $0x348] sm:$0xff]
    %v1740 = vld [vmem:[%s4 + $0x350] sm:$0xff]
    %v1741 = vld [vmem:[%s4 + $0x358] sm:$0xff]
    %v1742 = vld [vmem:[%s4 + $0x360] sm:$0xff]
    %v1743 = vld [vmem:[%s4 + $0x368] sm:$0xff]
    %v1744 = vld [vmem:[%s4 + $0x370] sm:$0xff]
    %v1745 = vld [vmem:[%s4 + $0x378] sm:$0xff]
    %v1746 = vld [vmem:[%s4 + $0x380] sm:$0xff]
    %v1747 = vld [vmem:[%s4 + $0x388] sm:$0xff]
    %v1748 = vld [vmem:[%s4 + $0x390] sm:$0xff]
    %v1749 = vld [vmem:[%s4 + $0x398] sm:$0xff]
    %v1750 = vld [vmem:[%s4 + $0x3a0] sm:$0xff]
    %v1751 = vld [vmem:[%s4 + $0x3a8] sm:$0xff]
    %v1752 = vld [vmem:[%s4 + $0x3b0] sm:$0xff]
    %v1753 = vld [vmem:[%s4 + $0x3b8] sm:$0xff]
    %v1754 = vld [vmem:[%s4 + $0x3c0] sm:$0xff]
    %v1755 = vld [vmem:[%s4 + $0x3c8] sm:$0xff]
    %v1756 = vld [vmem:[%s4 + $0x3d0] sm:$0xff]
    %v1757 = vld [vmem:[%s4 + $0x3d8] sm:$0xff]
    %v1758 = vld [vmem:[%s4 + $0x3e0] sm:$0xff]
    %v1759 = vld [vmem:[%s4 + $0x3e8] sm:$0xff]
    %v1760 = vld [vmem:[%s4 + $0x3f0] sm:$0xff]
    %v1761 = vld [vmem:[%s4 + $0x3f8] sm:$0xff]
    %v1762 = vld [vmem:[%s8 + $0x8] sm:$0xf]
    %v1764 = vlaneseq
    %v1765 = vshrl.u32 %v1764, 7
    %v1766 = vsub.s32 0, %v1765
    %v1767 = vrot.slane %v1762, %v1766
    %v1768 = vlaneseq
    %v1769 = vshrl.u32 %v1768, 7
    %v1770 = vsub.s32 1, %v1769
    %v1771 = vrot.slane %v1762, %v1770
    %v1772 = vlaneseq
    %v1773 = vshrl.u32 %v1772, 7
    %v1774 = vsub.s32 2, %v1773
    %v1775 = vrot.slane %v1762, %v1774
    %v1776 = vlaneseq
    %v1777 = vshrl.u32 %v1776, 7
    %v1778 = vsub.s32 3, %v1777
    %v1779 = vrot.slane %v1762, %v1778
    %v1816 = vunpack.c.l.b16 %v93
    %v1817 = vunpack.c.h.b16 %v93
    %v1818 = vunpack.c.l.b16 %v94
    %v1819 = vunpack.c.h.b16 %v94
    %v1820 = vunpack.c.l.b16 %v95
    %v1821 = vunpack.c.h.b16 %v95
    %v1822 = vunpack.c.l.b16 %v96
    %v1823 = vunpack.c.h.b16 %v96
    %v1824 = vunpack.c.l.b16 %v97
    %v1825 = vunpack.c.h.b16 %v97
    %v1826 = vunpack.c.l.b16 %v98
    %v1827 = vunpack.c.h.b16 %v98
    %v1828 = vunpack.c.l.b16 %v99
    %v1829 = vunpack.c.h.b16 %v99
    %v1830 = vunpack.c.l.b16 %v100
    %v1831 = vunpack.c.h.b16 %v100
    %v1832 = vunpack.c.l.b16 %v101
    %v1833 = vunpack.c.h.b16 %v101
    %v1834 = vunpack.c.l.b16 %v102
    %v1835 = vunpack.c.h.b16 %v102
    %v1836 = vunpack.c.l.b16 %v103
    %v1837 = vunpack.c.h.b16 %v103
    %v1838 = vunpack.c.l.b16 %v104
    %v1839 = vunpack.c.h.b16 %v104
    %v1840 = vunpack.c.l.b16 %v105
    %v1841 = vunpack.c.h.b16 %v105
    %v1842 = vunpack.c.l.b16 %v106
    %v1843 = vunpack.c.h.b16 %v106
    %v1844 = vunpack.c.l.b16 %v107
    %v1845 = vunpack.c.h.b16 %v107
    %v1846 = vunpack.c.l.b16 %v108
    %v1847 = vunpack.c.h.b16 %v108
    %v1848 = vunpack.c.l.b16 %v109
    %v1849 = vunpack.c.h.b16 %v109
    %v1850 = vunpack.c.l.b16 %v110
    %v1851 = vunpack.c.h.b16 %v110
    %v1852 = vunpack.c.l.b16 %v111
    %v1853 = vunpack.c.h.b16 %v111
    %v1854 = vunpack.c.l.b16 %v112
    %v1855 = vunpack.c.h.b16 %v112
    %v1856 = vunpack.c.l.b16 %v113
    %v1857 = vunpack.c.h.b16 %v113
    %v1858 = vunpack.c.l.b16 %v114
    %v1859 = vunpack.c.h.b16 %v114
    %v1860 = vunpack.c.l.b16 %v115
    %v1861 = vunpack.c.h.b16 %v115
    %v1862 = vunpack.c.l.b16 %v116
    %v1863 = vunpack.c.h.b16 %v116
    %v1864 = vunpack.c.l.b16 %v117
    %v1865 = vunpack.c.h.b16 %v117
    %v1866 = vunpack.c.l.b16 %v118
    %v1867 = vunpack.c.h.b16 %v118
    %v1868 = vunpack.c.l.b16 %v119
    %v1869 = vunpack.c.h.b16 %v119
    %v1870 = vunpack.c.l.b16 %v120
    %v1871 = vunpack.c.h.b16 %v120
    %v1872 = vunpack.c.l.b16 %v121
    %v1873 = vunpack.c.h.b16 %v121
    %v1874 = vunpack.c.l.b16 %v122
    %v1875 = vunpack.c.h.b16 %v122
    %v1876 = vunpack.c.l.b16 %v123
    %v1877 = vunpack.c.h.b16 %v123
    %v1878 = vunpack.c.l.b16 %v124
    %v1879 = vunpack.c.h.b16 %v124
    %v1880 = vpack.c.b16 %v1818, %v1816
    %v1881 = vpack.c.b16 %v1819, %v1817
    %v1882 = vpack.c.b16 %v1822, %v1820
    %v1883 = vpack.c.b16 %v1823, %v1821
    %v1884 = vpack.c.b16 %v1826, %v1824
    %v1885 = vpack.c.b16 %v1827, %v1825
    %v1886 = vpack.c.b16 %v1830, %v1828
    %v1887 = vpack.c.b16 %v1831, %v1829
    %v1888 = vpack.c.b16 %v1834, %v1832
    %v1889 = vpack.c.b16 %v1835, %v1833
    %v1890 = vpack.c.b16 %v1838, %v1836
    %v1891 = vpack.c.b16 %v1839, %v1837
    %v1892 = vpack.c.b16 %v1842, %v1840
    %v1893 = vpack.c.b16 %v1843, %v1841
    %v1894 = vpack.c.b16 %v1846, %v1844
    %v1895 = vpack.c.b16 %v1847, %v1845
    %v1896 = vpack.c.b16 %v1850, %v1848
    %v1897 = vpack.c.b16 %v1851, %v1849
    %v1898 = vpack.c.b16 %v1854, %v1852
    %v1899 = vpack.c.b16 %v1855, %v1853
    %v1900 = vpack.c.b16 %v1858, %v1856
    %v1901 = vpack.c.b16 %v1859, %v1857
    %v1902 = vpack.c.b16 %v1862, %v1860
    %v1903 = vpack.c.b16 %v1863, %v1861
    %v1904 = vpack.c.b16 %v1866, %v1864
    %v1905 = vpack.c.b16 %v1867, %v1865
    %v1906 = vpack.c.b16 %v1870, %v1868
    %v1907 = vpack.c.b16 %v1871, %v1869
    %v1908 = vpack.c.b16 %v1874, %v1872
    %v1909 = vpack.c.b16 %v1875, %v1873
    %v1910 = vpack.c.b16 %v1878, %v1876
    %v1911 = vpack.c.b16 %v1879, %v1877
    %v2008 = vunpack.c.l.b16 %v1698
    %v2009 = vunpack.c.h.b16 %v1698
    %v2010 = vunpack.c.l.b16 %v1699
    %v2011 = vunpack.c.h.b16 %v1699
    %v2012 = vunpack.c.l.b16 %v1700
    %v2013 = vunpack.c.h.b16 %v1700
    %v2014 = vunpack.c.l.b16 %v1701
    %v2015 = vunpack.c.h.b16 %v1701
    %v2016 = vunpack.c.l.b16 %v1702
    %v2017 = vunpack.c.h.b16 %v1702
    %v2018 = vunpack.c.l.b16 %v1703
    %v2019 = vunpack.c.h.b16 %v1703
    %v2020 = vunpack.c.l.b16 %v1704
    %v2021 = vunpack.c.h.b16 %v1704
    %v2022 = vunpack.c.l.b16 %v1705
    %v2023 = vunpack.c.h.b16 %v1705
    %v2024 = vunpack.c.l.b16 %v1706
    %v2025 = vunpack.c.h.b16 %v1706
    %v2026 = vunpack.c.l.b16 %v1707
    %v2027 = vunpack.c.h.b16 %v1707
    %v2028 = vunpack.c.l.b16 %v1708
    %v2029 = vunpack.c.h.b16 %v1708
    %v2030 = vunpack.c.l.b16 %v1709
    %v2031 = vunpack.c.h.b16 %v1709
    %v2032 = vunpack.c.l.b16 %v1710
    %v2033 = vunpack.c.h.b16 %v1710
    %v2034 = vunpack.c.l.b16 %v1711
    %v2035 = vunpack.c.h.b16 %v1711
    %v2036 = vunpack.c.l.b16 %v1712
    %v2037 = vunpack.c.h.b16 %v1712
    %v2038 = vunpack.c.l.b16 %v1713
    %v2039 = vunpack.c.h.b16 %v1713
    %v2040 = vunpack.c.l.b16 %v1714
    %v2041 = vunpack.c.h.b16 %v1714
    %v2042 = vunpack.c.l.b16 %v1715
    %v2043 = vunpack.c.h.b16 %v1715
    %v2044 = vunpack.c.l.b16 %v1716
    %v2045 = vunpack.c.h.b16 %v1716
    %v2046 = vunpack.c.l.b16 %v1717
    %v2047 = vunpack.c.h.b16 %v1717
    %v2048 = vunpack.c.l.b16 %v1718
    %v2049 = vunpack.c.h.b16 %v1718
    %v2050 = vunpack.c.l.b16 %v1719
    %v2051 = vunpack.c.h.b16 %v1719
    %v2052 = vunpack.c.l.b16 %v1720
    %v2053 = vunpack.c.h.b16 %v1720
    %v2054 = vunpack.c.l.b16 %v1721
    %v2055 = vunpack.c.h.b16 %v1721
    %v2056 = vunpack.c.l.b16 %v1722
    %v2057 = vunpack.c.h.b16 %v1722
    %v2058 = vunpack.c.l.b16 %v1723
    %v2059 = vunpack.c.h.b16 %v1723
    %v2060 = vunpack.c.l.b16 %v1724
    %v2061 = vunpack.c.h.b16 %v1724
    %v2062 = vunpack.c.l.b16 %v1725
    %v2063 = vunpack.c.h.b16 %v1725
    %v2064 = vunpack.c.l.b16 %v1726
    %v2065 = vunpack.c.h.b16 %v1726
    %v2066 = vunpack.c.l.b16 %v1727
    %v2067 = vunpack.c.h.b16 %v1727
    %v2068 = vunpack.c.l.b16 %v1728
    %v2069 = vunpack.c.h.b16 %v1728
    %v2070 = vunpack.c.l.b16 %v1729
    %v2071 = vunpack.c.h.b16 %v1729
    %v2072 = vunpack.c.l.b16 %v1730
    %v2073 = vunpack.c.h.b16 %v1730
    %v2074 = vunpack.c.l.b16 %v1731
    %v2075 = vunpack.c.h.b16 %v1731
    %v2076 = vunpack.c.l.b16 %v1732
    %v2077 = vunpack.c.h.b16 %v1732
    %v2078 = vunpack.c.l.b16 %v1733
    %v2079 = vunpack.c.h.b16 %v1733
    %v2080 = vunpack.c.l.b16 %v1734
    %v2081 = vunpack.c.h.b16 %v1734
    %v2082 = vunpack.c.l.b16 %v1735
    %v2083 = vunpack.c.h.b16 %v1735
    %v2084 = vunpack.c.l.b16 %v1736
    %v2085 = vunpack.c.h.b16 %v1736
    %v2086 = vunpack.c.l.b16 %v1737
    %v2087 = vunpack.c.h.b16 %v1737
    %v2088 = vunpack.c.l.b16 %v1738
    %v2089 = vunpack.c.h.b16 %v1738
    %v2090 = vunpack.c.l.b16 %v1739
    %v2091 = vunpack.c.h.b16 %v1739
    %v2092 = vunpack.c.l.b16 %v1740
    %v2093 = vunpack.c.h.b16 %v1740
    %v2094 = vunpack.c.l.b16 %v1741
    %v2095 = vunpack.c.h.b16 %v1741
    %v2096 = vunpack.c.l.b16 %v1742
    %v2097 = vunpack.c.h.b16 %v1742
    %v2098 = vunpack.c.l.b16 %v1743
    %v2099 = vunpack.c.h.b16 %v1743
    %v2100 = vunpack.c.l.b16 %v1744
    %v2101 = vunpack.c.h.b16 %v1744
    %v2102 = vunpack.c.l.b16 %v1745
    %v2103 = vunpack.c.h.b16 %v1745
    %v2104 = vunpack.c.l.b16 %v1746
    %v2105 = vunpack.c.h.b16 %v1746
    %v2106 = vunpack.c.l.b16 %v1747
    %v2107 = vunpack.c.h.b16 %v1747
    %v2108 = vunpack.c.l.b16 %v1748
    %v2109 = vunpack.c.h.b16 %v1748
    %v2110 = vunpack.c.l.b16 %v1749
    %v2111 = vunpack.c.h.b16 %v1749
    %v2112 = vunpack.c.l.b16 %v1750
    %v2113 = vunpack.c.h.b16 %v1750
    %v2114 = vunpack.c.l.b16 %v1751
    %v2115 = vunpack.c.h.b16 %v1751
    %v2116 = vunpack.c.l.b16 %v1752
    %v2117 = vunpack.c.h.b16 %v1752
    %v2118 = vunpack.c.l.b16 %v1753
    %v2119 = vunpack.c.h.b16 %v1753
    %v2120 = vunpack.c.l.b16 %v1754
    %v2121 = vunpack.c.h.b16 %v1754
    %v2122 = vunpack.c.l.b16 %v1755
    %v2123 = vunpack.c.h.b16 %v1755
    %v2124 = vunpack.c.l.b16 %v1756
    %v2125 = vunpack.c.h.b16 %v1756
    %v2126 = vunpack.c.l.b16 %v1757
    %v2127 = vunpack.c.h.b16 %v1757
    %v2128 = vunpack.c.l.b16 %v1758
    %v2129 = vunpack.c.h.b16 %v1758
    %v2130 = vunpack.c.l.b16 %v1759
    %v2131 = vunpack.c.h.b16 %v1759
    %v2132 = vunpack.c.l.b16 %v1760
    %v2133 = vunpack.c.h.b16 %v1760
    %v2134 = vunpack.c.l.b16 %v1761
    %v2135 = vunpack.c.h.b16 %v1761
    %v2136 = vpack.c.b16 %v2012, %v2008
    %v2137 = vpack.c.b16 %v2013, %v2009
    %v2138 = vpack.c.b16 %v2014, %v2010
    %v2139 = vpack.c.b16 %v2015, %v2011
    %v2140 = vpack.c.b16 %v2020, %v2016
    %v2141 = vpack.c.b16 %v2021, %v2017
    %v2142 = vpack.c.b16 %v2022, %v2018
    %v2143 = vpack.c.b16 %v2023, %v2019
    %v2144 = vpack.c.b16 %v2028, %v2024
    %v2145 = vpack.c.b16 %v2029, %v2025
    %v2146 = vpack.c.b16 %v2030, %v2026
    %v2147 = vpack.c.b16 %v2031, %v2027
    %v2148 = vpack.c.b16 %v2036, %v2032
    %v2149 = vpack.c.b16 %v2037, %v2033
    %v2150 = vpack.c.b16 %v2038, %v2034
    %v2151 = vpack.c.b16 %v2039, %v2035
    %v2152 = vpack.c.b16 %v2044, %v2040
    %v2153 = vpack.c.b16 %v2045, %v2041
    %v2154 = vpack.c.b16 %v2046, %v2042
    %v2155 = vpack.c.b16 %v2047, %v2043
    %v2156 = vpack.c.b16 %v2052, %v2048
    %v2157 = vpack.c.b16 %v2053, %v2049
    %v2158 = vpack.c.b16 %v2054, %v2050
    %v2159 = vpack.c.b16 %v2055, %v2051
    %v2160 = vpack.c.b16 %v2060, %v2056
    %v2161 = vpack.c.b16 %v2061, %v2057
    %v2162 = vpack.c.b16 %v2062, %v2058
    %v2163 = vpack.c.b16 %v2063, %v2059
    %v2164 = vpack.c.b16 %v2068, %v2064
    %v2165 = vpack.c.b16 %v2069, %v2065
    %v2166 = vpack.c.b16 %v2070, %v2066
    %v2167 = vpack.c.b16 %v2071, %v2067
    %v2168 = vpack.c.b16 %v2076, %v2072
    %v2169 = vpack.c.b16 %v2077, %v2073
    %v2170 = vpack.c.b16 %v2078, %v2074
    %v2171 = vpack.c.b16 %v2079, %v2075
    %v2172 = vpack.c.b16 %v2084, %v2080
    %v2173 = vpack.c.b16 %v2085, %v2081
    %v2174 = vpack.c.b16 %v2086, %v2082
    %v2175 = vpack.c.b16 %v2087, %v2083
    %v2176 = vpack.c.b16 %v2092, %v2088
    %v2177 = vpack.c.b16 %v2093, %v2089
    %v2178 = vpack.c.b16 %v2094, %v2090
    %v2179 = vpack.c.b16 %v2095, %v2091
    %v2180 = vpack.c.b16 %v2100, %v2096
    %v2181 = vpack.c.b16 %v2101, %v2097
    %v2182 = vpack.c.b16 %v2102, %v2098
    %v2183 = vpack.c.b16 %v2103, %v2099
    %v2184 = vpack.c.b16 %v2108, %v2104
    %v2185 = vpack.c.b16 %v2109, %v2105
    %v2186 = vpack.c.b16 %v2110, %v2106
    %v2187 = vpack.c.b16 %v2111, %v2107
    %v2188 = vpack.c.b16 %v2116, %v2112
    %v2189 = vpack.c.b16 %v2117, %v2113
    %v2190 = vpack.c.b16 %v2118, %v2114
    %v2191 = vpack.c.b16 %v2119, %v2115
    %v2192 = vpack.c.b16 %v2124, %v2120
    %v2193 = vpack.c.b16 %v2125, %v2121
    %v2194 = vpack.c.b16 %v2126, %v2122
    %v2195 = vpack.c.b16 %v2127, %v2123
    %v2196 = vpack.c.b16 %v2132, %v2128
    %v2197 = vpack.c.b16 %v2133, %v2129
    %v2198 = vpack.c.b16 %v2134, %v2130
    %v2199 = vpack.c.b16 %v2135, %v2131
    %2264 = vmatprep.subr.bf16.mxu0 %v2165
    %2265 = vmatpush1.bf16.msra.mxu0 %v2164
    %2266 = vmatprep.subr.bf16.mxu0 %v2161
    %2267 = vmatpush1.bf16.msra.mxu0 %v2160
    %2268 = vmatprep.subr.bf16.mxu0 %v2157
    %2269 = vmatpush1.bf16.msra.mxu0 %v2156
    %2270 = vmatprep.subr.bf16.mxu0 %v2153
    %2271 = vmatpush1.bf16.msra.mxu0 %v2152
    %2272 = vmatprep.subr.bf16.mxu0 %v2149
    %2273 = vmatpush1.bf16.msra.mxu0 %v2148
    %2274 = vmatprep.subr.bf16.mxu0 %v2145
    %2275 = vmatpush1.bf16.msra.mxu0 %v2144
    %2276 = vmatprep.subr.bf16.mxu0 %v2141
    %2277 = vmatpush1.bf16.msra.mxu0 %v2140
    %2278 = vmatprep.subr.bf16.mxu0 %v2137
    %2279 = vmatpush1.bf16.msra.mxu0 %v2136
    %2280 = vmatprep.subr.bf16.mxu0 %v2197
    %2281 = vmatpush2.bf16.msra.mxu0 %v2196
    %2282 = vmatprep.subr.bf16.mxu0 %v2193
    %2283 = vmatpush2.bf16.msra.mxu0 %v2192
    %2284 = vmatprep.subr.bf16.mxu0 %v2189
    %2285 = vmatpush2.bf16.msra.mxu0 %v2188
    %2286 = vmatprep.subr.bf16.mxu0 %v2185
    %2287 = vmatpush2.bf16.msra.mxu0 %v2184
    %2288 = vmatprep.subr.bf16.mxu0 %v2181
    %2289 = vmatpush2.bf16.msra.mxu0 %v2180
    %2290 = vmatprep.subr.bf16.mxu0 %v2177
    %2291 = vmatpush2.bf16.msra.mxu0 %v2176
    %2292 = vmatprep.subr.bf16.mxu0 %v2173
    %2293 = vmatpush2.bf16.msra.mxu0 %v2172
    %2294 = vmatprep.subr.bf16.mxu0 %v2169
    %2295 = vmatpush2.bf16.msra.mxu0 %v2168
    %2296 = vmatprep.mubr.bf16.mxu0 %v1881
    %2297 = vmatmul.mubr.bf16.gmra.mxu0 %v1880
    %v2298 = vpop.f32.mrf.mxu0
    %v2299 = vadd.f32 %v1767, %v2298
    %v2300 = vpop.f32.mrf.mxu0
    %v2301 = vadd.f32 %v1771, %v2300
    %v2302 = vpop.f32.mrf.mxu0
    %v2303 = vadd.f32 %v1767, %v2302
    %v2304 = vpop.f32.mrf.mxu0
    %v2305 = vadd.f32 %v1771, %v2304
    %2306 = vmatprep.mubr.bf16.mxu0 %v1883
    %2307 = vmatmul.mubr.bf16.gmra.mxu0 %v1882
    %v2308 = vpop.f32.mrf.mxu0
    %v2309 = vadd.f32 %v1767, %v2308
    %v2310 = vpop.f32.mrf.mxu0
    %v2311 = vadd.f32 %v1771, %v2310
    %v2312 = vpop.f32.mrf.mxu0
    %v2313 = vadd.f32 %v1767, %v2312
    %v2314 = vpop.f32.mrf.mxu0
    %v2315 = vadd.f32 %v1771, %v2314
    %2316 = vmatprep.mubr.bf16.mxu0 %v1885
    %2317 = vmatmul.mubr.bf16.gmra.mxu0 %v1884
    %v2318 = vpop.f32.mrf.mxu0
    %v2319 = vadd.f32 %v1767, %v2318
    %v2320 = vpop.f32.mrf.mxu0
    %v2321 = vadd.f32 %v1771, %v2320
    %v2322 = vpop.f32.mrf.mxu0
    %v2323 = vadd.f32 %v1767, %v2322
    %v2324 = vpop.f32.mrf.mxu0
    %v2325 = vadd.f32 %v1771, %v2324
    %2326 = vmatprep.mubr.bf16.mxu0 %v1887
    %2327 = vmatmul.mubr.bf16.gmra.mxu0 %v1886
    %v2328 = vpop.f32.mrf.mxu0
    %v2329 = vadd.f32 %v1767, %v2328
    %v2330 = vpop.f32.mrf.mxu0
    %v2331 = vadd.f32 %v1771, %v2330
    %v2332 = vpop.f32.mrf.mxu0
    %v2333 = vadd.f32 %v1767, %v2332
    %v2334 = vpop.f32.mrf.mxu0
    %v2335 = vadd.f32 %v1771, %v2334
    %2336 = vmatprep.mubr.bf16.mxu0 %v1889
    %2337 = vmatmul.mubr.bf16.gmra.mxu0 %v1888
    %v2338 = vpop.f32.mrf.mxu0
    %v2339 = vadd.f32 %v1767, %v2338
    %v2340 = vpop.f32.mrf.mxu0
    %v2341 = vadd.f32 %v1771, %v2340
    %v2342 = vpop.f32.mrf.mxu0
    %v2343 = vadd.f32 %v1767, %v2342
    %v2344 = vpop.f32.mrf.mxu0
    %v2345 = vadd.f32 %v1771, %v2344
    %2346 = vmatprep.mubr.bf16.mxu0 %v1891
    %2347 = vmatmul.mubr.bf16.gmra.mxu0 %v1890
    %v2348 = vpop.f32.mrf.mxu0
    %v2349 = vadd.f32 %v1767, %v2348
    %v2350 = vpop.f32.mrf.mxu0
    %v2351 = vadd.f32 %v1771, %v2350
    %v2352 = vpop.f32.mrf.mxu0
    %v2353 = vadd.f32 %v1767, %v2352
    %v2354 = vpop.f32.mrf.mxu0
    %v2355 = vadd.f32 %v1771, %v2354
    %2356 = vmatprep.mubr.bf16.mxu0 %v1893
    %2357 = vmatmul.mubr.bf16.gmra.mxu0 %v1892
    %v2358 = vpop.f32.mrf.mxu0
    %v2359 = vadd.f32 %v1767, %v2358
    %v2360 = vpop.f32.mrf.mxu0
    %v2361 = vadd.f32 %v1771, %v2360
    %v2362 = vpop.f32.mrf.mxu0
    %v2363 = vadd.f32 %v1767, %v2362
    %v2364 = vpop.f32.mrf.mxu0
    %v2365 = vadd.f32 %v1771, %v2364
    %2366 = vmatprep.mubr.bf16.mxu0 %v1895
    %2367 = vmatmul.mubr.bf16.gmra.mxu0 %v1894
    %v2368 = vpop.f32.mrf.mxu0
    %v2369 = vadd.f32 %v1767, %v2368
    %v2370 = vpop.f32.mrf.mxu0
    %v2371 = vadd.f32 %v1771, %v2370
    %v2372 = vpop.f32.mrf.mxu0
    %v2373 = vadd.f32 %v1767, %v2372
    %v2374 = vpop.f32.mrf.mxu0
    %v2375 = vadd.f32 %v1771, %v2374
    %2376 = vmatprep.mubr.bf16.mxu0 %v1897
    %2377 = vmatmul.mubr.bf16.gmra.mxu0 %v1896
    %v2378 = vpop.f32.mrf.mxu0
    %v2379 = vadd.f32 %v1767, %v2378
    %v2380 = vpop.f32.mrf.mxu0
    %v2381 = vadd.f32 %v1771, %v2380
    %v2382 = vpop.f32.mrf.mxu0
    %v2383 = vadd.f32 %v1767, %v2382
    %v2384 = vpop.f32.mrf.mxu0
    %v2385 = vadd.f32 %v1771, %v2384
    %2386 = vmatprep.mubr.bf16.mxu0 %v1899
    %2387 = vmatmul.mubr.bf16.gmra.mxu0 %v1898
    %v2388 = vpop.f32.mrf.mxu0
    %v2389 = vadd.f32 %v1767, %v2388
    %v2390 = vpop.f32.mrf.mxu0
    %v2391 = vadd.f32 %v1771, %v2390
    %v2392 = vpop.f32.mrf.mxu0
    %v2393 = vadd.f32 %v1767, %v2392
    %v2394 = vpop.f32.mrf.mxu0
    %v2395 = vadd.f32 %v1771, %v2394
    %2396 = vmatprep.mubr.bf16.mxu0 %v1901
    %2397 = vmatmul.mubr.bf16.gmra.mxu0 %v1900
    %v2398 = vpop.f32.mrf.mxu0
    %v2399 = vadd.f32 %v1767, %v2398
    %v2400 = vpop.f32.mrf.mxu0
    %v2401 = vadd.f32 %v1771, %v2400
    %v2402 = vpop.f32.mrf.mxu0
    %v2403 = vadd.f32 %v1767, %v2402
    %v2404 = vpop.f32.mrf.mxu0
    %v2405 = vadd.f32 %v1771, %v2404
    %2406 = vmatprep.mubr.bf16.mxu0 %v1903
    %2407 = vmatmul.mubr.bf16.gmra.mxu0 %v1902
    %v2408 = vpop.f32.mrf.mxu0
    %v2409 = vadd.f32 %v1767, %v2408
    %v2410 = vpop.f32.mrf.mxu0
    %v2411 = vadd.f32 %v1771, %v2410
    %v2412 = vpop.f32.mrf.mxu0
    %v2413 = vadd.f32 %v1767, %v2412
    %v2414 = vpop.f32.mrf.mxu0
    %v2415 = vadd.f32 %v1771, %v2414
    %2416 = vmatprep.mubr.bf16.mxu0 %v1905
    %2417 = vmatmul.mubr.bf16.gmra.mxu0 %v1904
    %v2418 = vpop.f32.mrf.mxu0
    %v2419 = vadd.f32 %v1767, %v2418
    %v2420 = vpop.f32.mrf.mxu0
    %v2421 = vadd.f32 %v1771, %v2420
    %v2422 = vpop.f32.mrf.mxu0
    %v2423 = vadd.f32 %v1767, %v2422
    %v2424 = vpop.f32.mrf.mxu0
    %v2425 = vadd.f32 %v1771, %v2424
    %2426 = vmatprep.mubr.bf16.mxu0 %v1907
    %2427 = vmatmul.mubr.bf16.gmra.mxu0 %v1906
    %v2428 = vpop.f32.mrf.mxu0
    %v2429 = vadd.f32 %v1767, %v2428
    %v2430 = vpop.f32.mrf.mxu0
    %v2431 = vadd.f32 %v1771, %v2430
    %v2432 = vpop.f32.mrf.mxu0
    %v2433 = vadd.f32 %v1767, %v2432
    %v2434 = vpop.f32.mrf.mxu0
    %v2435 = vadd.f32 %v1771, %v2434
    %2436 = vmatprep.mubr.bf16.mxu0 %v1909
    %2437 = vmatmul.mubr.bf16.gmra.mxu0 %v1908
    %v2438 = vpop.f32.mrf.mxu0
    %v2439 = vadd.f32 %v1767, %v2438
    %v2440 = vpop.f32.mrf.mxu0
    %v2441 = vadd.f32 %v1771, %v2440
    %v2442 = vpop.f32.mrf.mxu0
    %v2443 = vadd.f32 %v1767, %v2442
    %v2444 = vpop.f32.mrf.mxu0
    %v2445 = vadd.f32 %v1771, %v2444
    %2446 = vmatprep.mubr.bf16.mxu0 %v1911
    %2447 = vmatmul.mubr.bf16.gmra.mxu0 %v1910
    %v2448 = vpop.f32.mrf.mxu0
    %v2449 = vadd.f32 %v1767, %v2448
    %v2450 = vpop.f32.mrf.mxu0
    %v2451 = vadd.f32 %v1771, %v2450
    %v2452 = vpop.f32.mrf.mxu0
    %v2453 = vadd.f32 %v1767, %v2452
    %v2454 = vpop.f32.mrf.mxu0
    %v2455 = vadd.f32 %v1771, %v2454
    %2456 = vdwg.mxu0
    %2457 = vmatprep.subr.bf16.mxu0 %v2167
    %2458 = vmatpush1.bf16.msra.mxu0 %v2166
    %2459 = vmatprep.subr.bf16.mxu0 %v2163
    %2460 = vmatpush1.bf16.msra.mxu0 %v2162
    %2461 = vmatprep.subr.bf16.mxu0 %v2159
    %2462 = vmatpush1.bf16.msra.mxu0 %v2158
    %2463 = vmatprep.subr.bf16.mxu0 %v2155
    %2464 = vmatpush1.bf16.msra.mxu0 %v2154
    %2465 = vmatprep.subr.bf16.mxu0 %v2151
    %2466 = vmatpush1.bf16.msra.mxu0 %v2150
    %2467 = vmatprep.subr.bf16.mxu0 %v2147
    %2468 = vmatpush1.bf16.msra.mxu0 %v2146
    %2469 = vmatprep.subr.bf16.mxu0 %v2143
    %2470 = vmatpush1.bf16.msra.mxu0 %v2142
    %2471 = vmatprep.subr.bf16.mxu0 %v2139
    %2472 = vmatpush1.bf16.msra.mxu0 %v2138
    %2473 = vmatprep.subr.bf16.mxu0 %v2199
    %2474 = vmatpush2.bf16.msra.mxu0 %v2198
    %2475 = vmatprep.subr.bf16.mxu0 %v2195
    %2476 = vmatpush2.bf16.msra.mxu0 %v2194
    %2477 = vmatprep.subr.bf16.mxu0 %v2191
    %2478 = vmatpush2.bf16.msra.mxu0 %v2190
    %2479 = vmatprep.subr.bf16.mxu0 %v2187
    %2480 = vmatpush2.bf16.msra.mxu0 %v2186
    %2481 = vmatprep.subr.bf16.mxu0 %v2183
    %2482 = vmatpush2.bf16.msra.mxu0 %v2182
    %2483 = vmatprep.subr.bf16.mxu0 %v2179
    %2484 = vmatpush2.bf16.msra.mxu0 %v2178
    %2485 = vmatprep.subr.bf16.mxu0 %v2175
    %2486 = vmatpush2.bf16.msra.mxu0 %v2174
    %2487 = vmatprep.subr.bf16.mxu0 %v2171
    %2488 = vmatpush2.bf16.msra.mxu0 %v2170
    %2489 = vmatprep.mubr.bf16.mxu0 %v1881
    %2490 = vmatmul.mubr.bf16.gmra.mxu0 %v1880
    %v2491 = vpop.f32.mrf.mxu0
    %v2492 = vadd.f32 %v1775, %v2491
    %v2493 = vpop.f32.mrf.mxu0
    %v2494 = vadd.f32 %v1779, %v2493
    %v2495 = vpop.f32.mrf.mxu0
    %v2496 = vadd.f32 %v1775, %v2495
    %v2497 = vpop.f32.mrf.mxu0
    %v2498 = vadd.f32 %v1779, %v2497
    %2499 = vmatprep.mubr.bf16.mxu0 %v1883
    %2500 = vmatmul.mubr.bf16.gmra.mxu0 %v1882
    %v2501 = vpop.f32.mrf.mxu0
    %v2502 = vadd.f32 %v1775, %v2501
    %v2503 = vpop.f32.mrf.mxu0
    %v2504 = vadd.f32 %v1779, %v2503
    %v2505 = vpop.f32.mrf.mxu0
    %v2506 = vadd.f32 %v1775, %v2505
    %v2507 = vpop.f32.mrf.mxu0
    %v2508 = vadd.f32 %v1779, %v2507
    %2509 = vmatprep.mubr.bf16.mxu0 %v1885
    %2510 = vmatmul.mubr.bf16.gmra.mxu0 %v1884
    %v2511 = vpop.f32.mrf.mxu0
    %v2512 = vadd.f32 %v1775, %v2511
    %v2513 = vpop.f32.mrf.mxu0
    %v2514 = vadd.f32 %v1779, %v2513
    %v2515 = vpop.f32.mrf.mxu0
    %v2516 = vadd.f32 %v1775, %v2515
    %v2517 = vpop.f32.mrf.mxu0
    %v2518 = vadd.f32 %v1779, %v2517
    %2519 = vmatprep.mubr.bf16.mxu0 %v1887
    %2520 = vmatmul.mubr.bf16.gmra.mxu0 %v1886
    %v2521 = vpop.f32.mrf.mxu0
    %v2522 = vadd.f32 %v1775, %v2521
    %v2523 = vpop.f32.mrf.mxu0
    %v2524 = vadd.f32 %v1779, %v2523
    %v2525 = vpop.f32.mrf.mxu0
    %v2526 = vadd.f32 %v1775, %v2525
    %v2527 = vpop.f32.mrf.mxu0
    %v2528 = vadd.f32 %v1779, %v2527
    %2529 = vmatprep.mubr.bf16.mxu0 %v1889
    %2530 = vmatmul.mubr.bf16.gmra.mxu0 %v1888
    %v2531 = vpop.f32.mrf.mxu0
    %v2532 = vadd.f32 %v1775, %v2531
    %v2533 = vpop.f32.mrf.mxu0
    %v2534 = vadd.f32 %v1779, %v2533
    %v2535 = vpop.f32.mrf.mxu0
    %v2536 = vadd.f32 %v1775, %v2535
    %v2537 = vpop.f32.mrf.mxu0
    %v2538 = vadd.f32 %v1779, %v2537
    %2539 = vmatprep.mubr.bf16.mxu0 %v1891
    %2540 = vmatmul.mubr.bf16.gmra.mxu0 %v1890
    %v2541 = vpop.f32.mrf.mxu0
    %v2542 = vadd.f32 %v1775, %v2541
    %v2543 = vpop.f32.mrf.mxu0
    %v2544 = vadd.f32 %v1779, %v2543
    %v2545 = vpop.f32.mrf.mxu0
    %v2546 = vadd.f32 %v1775, %v2545
    %v2547 = vpop.f32.mrf.mxu0
    %v2548 = vadd.f32 %v1779, %v2547
    %2549 = vmatprep.mubr.bf16.mxu0 %v1893
    %2550 = vmatmul.mubr.bf16.gmra.mxu0 %v1892
    %v2551 = vpop.f32.mrf.mxu0
    %v2552 = vadd.f32 %v1775, %v2551
    %v2553 = vpop.f32.mrf.mxu0
    %v2554 = vadd.f32 %v1779, %v2553
    %v2555 = vpop.f32.mrf.mxu0
    %v2556 = vadd.f32 %v1775, %v2555
    %v2557 = vpop.f32.mrf.mxu0
    %v2558 = vadd.f32 %v1779, %v2557
    %2559 = vmatprep.mubr.bf16.mxu0 %v1895
    %2560 = vmatmul.mubr.bf16.gmra.mxu0 %v1894
    %v2561 = vpop.f32.mrf.mxu0
    %v2562 = vadd.f32 %v1775, %v2561
    %v2563 = vpop.f32.mrf.mxu0
    %v2564 = vadd.f32 %v1779, %v2563
    %v2565 = vpop.f32.mrf.mxu0
    %v2566 = vadd.f32 %v1775, %v2565
    %v2567 = vpop.f32.mrf.mxu0
    %v2568 = vadd.f32 %v1779, %v2567
    %2569 = vmatprep.mubr.bf16.mxu0 %v1897
    %2570 = vmatmul.mubr.bf16.gmra.mxu0 %v1896
    %v2571 = vpop.f32.mrf.mxu0
    %v2572 = vadd.f32 %v1775, %v2571
    %v2573 = vpop.f32.mrf.mxu0
    %v2574 = vadd.f32 %v1779, %v2573
    %v2575 = vpop.f32.mrf.mxu0
    %v2576 = vadd.f32 %v1775, %v2575
    %v2577 = vpop.f32.mrf.mxu0
    %v2578 = vadd.f32 %v1779, %v2577
    %2579 = vmatprep.mubr.bf16.mxu0 %v1899
    %2580 = vmatmul.mubr.bf16.gmra.mxu0 %v1898
    %v2581 = vpop.f32.mrf.mxu0
    %v2582 = vadd.f32 %v1775, %v2581
    %v2583 = vpop.f32.mrf.mxu0
    %v2584 = vadd.f32 %v1779, %v2583
    %v2585 = vpop.f32.mrf.mxu0
    %v2586 = vadd.f32 %v1775, %v2585
    %v2587 = vpop.f32.mrf.mxu0
    %v2588 = vadd.f32 %v1779, %v2587
    %2589 = vmatprep.mubr.bf16.mxu0 %v1901
    %2590 = vmatmul.mubr.bf16.gmra.mxu0 %v1900
    %v2591 = vpop.f32.mrf.mxu0
    %v2592 = vadd.f32 %v1775, %v2591
    %v2593 = vpop.f32.mrf.mxu0
    %v2594 = vadd.f32 %v1779, %v2593
    %v2595 = vpop.f32.mrf.mxu0
    %v2596 = vadd.f32 %v1775, %v2595
    %v2597 = vpop.f32.mrf.mxu0
    %v2598 = vadd.f32 %v1779, %v2597
    %2599 = vmatprep.mubr.bf16.mxu0 %v1903
    %2600 = vmatmul.mubr.bf16.gmra.mxu0 %v1902
    %v2601 = vpop.f32.mrf.mxu0
    %v2602 = vadd.f32 %v1775, %v2601
    %v2603 = vpop.f32.mrf.mxu0
    %v2604 = vadd.f32 %v1779, %v2603
    %v2605 = vpop.f32.mrf.mxu0
    %v2606 = vadd.f32 %v1775, %v2605
    %v2607 = vpop.f32.mrf.mxu0
    %v2608 = vadd.f32 %v1779, %v2607
    %2609 = vmatprep.mubr.bf16.mxu0 %v1905
    %2610 = vmatmul.mubr.bf16.gmra.mxu0 %v1904
    %v2611 = vpop.f32.mrf.mxu0
    %v2612 = vadd.f32 %v1775, %v2611
    %v2613 = vpop.f32.mrf.mxu0
    %v2614 = vadd.f32 %v1779, %v2613
    %v2615 = vpop.f32.mrf.mxu0
    %v2616 = vadd.f32 %v1775, %v2615
    %v2617 = vpop.f32.mrf.mxu0
    %v2618 = vadd.f32 %v1779, %v2617
    %2619 = vmatprep.mubr.bf16.mxu0 %v1907
    %2620 = vmatmul.mubr.bf16.gmra.mxu0 %v1906
    %v2621 = vpop.f32.mrf.mxu0
    %v2622 = vadd.f32 %v1775, %v2621
    %v2623 = vpop.f32.mrf.mxu0
    %v2624 = vadd.f32 %v1779, %v2623
    %v2625 = vpop.f32.mrf.mxu0
    %v2626 = vadd.f32 %v1775, %v2625
    %v2627 = vpop.f32.mrf.mxu0
    %v2628 = vadd.f32 %v1779, %v2627
    %2629 = vmatprep.mubr.bf16.mxu0 %v1909
    %2630 = vmatmul.mubr.bf16.gmra.mxu0 %v1908
    %v2631 = vpop.f32.mrf.mxu0
    %v2632 = vadd.f32 %v1775, %v2631
    %v2633 = vpop.f32.mrf.mxu0
    %v2634 = vadd.f32 %v1779, %v2633
    %v2635 = vpop.f32.mrf.mxu0
    %v2636 = vadd.f32 %v1775, %v2635
    %v2637 = vpop.f32.mrf.mxu0
    %v2638 = vadd.f32 %v1779, %v2637
    %2639 = vmatprep.mubr.bf16.mxu0 %v1911
    %2640 = vmatmul.mubr.bf16.gmra.mxu0 %v1910
    %v2641 = vpop.f32.mrf.mxu0
    %v2642 = vadd.f32 %v1775, %v2641
    %v2643 = vpop.f32.mrf.mxu0
    %v2644 = vadd.f32 %v1779, %v2643
    %v2645 = vpop.f32.mrf.mxu0
    %v2646 = vadd.f32 %v1775, %v2645
    %v2647 = vpop.f32.mrf.mxu0
    %v2648 = vadd.f32 %v1779, %v2647
    %2649 = vdwg.mxu0
    %v2650 = vmax.f32 %v2299, 0.0
    %v2651 = vmax.f32 %v2301, 0.0
    %v2652 = vmax.f32 %v2492, 0.0
    %v2653 = vmax.f32 %v2494, 0.0
    %v2654 = vmax.f32 %v2303, 0.0
    %v2655 = vmax.f32 %v2305, 0.0
    %v2656 = vmax.f32 %v2496, 0.0
    %v2657 = vmax.f32 %v2498, 0.0
    %v2658 = vmax.f32 %v2309, 0.0
    %v2659 = vmax.f32 %v2311, 0.0
    %v2660 = vmax.f32 %v2502, 0.0
    %v2661 = vmax.f32 %v2504, 0.0
    %v2662 = vmax.f32 %v2313, 0.0
    %v2663 = vmax.f32 %v2315, 0.0
    %v2664 = vmax.f32 %v2506, 0.0
    %v2665 = vmax.f32 %v2508, 0.0
    %v2666 = vmax.f32 %v2319, 0.0
    %v2667 = vmax.f32 %v2321, 0.0
    %v2668 = vmax.f32 %v2512, 0.0
    %v2669 = vmax.f32 %v2514, 0.0
    %v2670 = vmax.f32 %v2323, 0.0
    %v2671 = vmax.f32 %v2325, 0.0
    %v2672 = vmax.f32 %v2516, 0.0
    %v2673 = vmax.f32 %v2518, 0.0
    %v2674 = vmax.f32 %v2329, 0.0
    %v2675 = vmax.f32 %v2331, 0.0
    %v2676 = vmax.f32 %v2522, 0.0
    %v2677 = vmax.f32 %v2524, 0.0
    %v2678 = vmax.f32 %v2333, 0.0
    %v2679 = vmax.f32 %v2335, 0.0
    %v2680 = vmax.f32 %v2526, 0.0
    %v2681 = vmax.f32 %v2528, 0.0
    %v2682 = vmax.f32 %v2339, 0.0
    %v2683 = vmax.f32 %v2341, 0.0
    %v2684 = vmax.f32 %v2532, 0.0
    %v2685 = vmax.f32 %v2534, 0.0
    %v2686 = vmax.f32 %v2343, 0.0
    %v2687 = vmax.f32 %v2345, 0.0
    %v2688 = vmax.f32 %v2536, 0.0
    %v2689 = vmax.f32 %v2538, 0.0
    %v2690 = vmax.f32 %v2349, 0.0
    %v2691 = vmax.f32 %v2351, 0.0
    %v2692 = vmax.f32 %v2542, 0.0
    %v2693 = vmax.f32 %v2544, 0.0
    %v2694 = vmax.f32 %v2353, 0.0
    %v2695 = vmax.f32 %v2355, 0.0
    %v2696 = vmax.f32 %v2546, 0.0
    %v2697 = vmax.f32 %v2548, 0.0
    %v2698 = vmax.f32 %v2359, 0.0
    %v2699 = vmax.f32 %v2361, 0.0
    %v2700 = vmax.f32 %v2552, 0.0
    %v2701 = vmax.f32 %v2554, 0.0
    %v2702 = vmax.f32 %v2363, 0.0
    %v2703 = vmax.f32 %v2365, 0.0
    %v2704 = vmax.f32 %v2556, 0.0
    %v2705 = vmax.f32 %v2558, 0.0
    %v2706 = vmax.f32 %v2369, 0.0
    %v2707 = vmax.f32 %v2371, 0.0
    %v2708 = vmax.f32 %v2562, 0.0
    %v2709 = vmax.f32 %v2564, 0.0
    %v2710 = vmax.f32 %v2373, 0.0
    %v2711 = vmax.f32 %v2375, 0.0
    %v2712 = vmax.f32 %v2566, 0.0
    %v2713 = vmax.f32 %v2568, 0.0
    %v2714 = vmax.f32 %v2379, 0.0
    %v2715 = vmax.f32 %v2381, 0.0
    %v2716 = vmax.f32 %v2572, 0.0
    %v2717 = vmax.f32 %v2574, 0.0
    %v2718 = vmax.f32 %v2383, 0.0
    %v2719 = vmax.f32 %v2385, 0.0
    %v2720 = vmax.f32 %v2576, 0.0
    %v2721 = vmax.f32 %v2578, 0.0
    %v2722 = vmax.f32 %v2389, 0.0
    %v2723 = vmax.f32 %v2391, 0.0
    %v2724 = vmax.f32 %v2582, 0.0
    %v2725 = vmax.f32 %v2584, 0.0
    %v2726 = vmax.f32 %v2393, 0.0
    %v2727 = vmax.f32 %v2395, 0.0
    %v2728 = vmax.f32 %v2586, 0.0
    %v2729 = vmax.f32 %v2588, 0.0
    %v2730 = vmax.f32 %v2399, 0.0
    %v2731 = vmax.f32 %v2401, 0.0
    %v2732 = vmax.f32 %v2592, 0.0
    %v2733 = vmax.f32 %v2594, 0.0
    %v2734 = vmax.f32 %v2403, 0.0
    %v2735 = vmax.f32 %v2405, 0.0
    %v2736 = vmax.f32 %v2596, 0.0
    %v2737 = vmax.f32 %v2598, 0.0
    %v2738 = vmax.f32 %v2409, 0.0
    %v2739 = vmax.f32 %v2411, 0.0
    %v2740 = vmax.f32 %v2602, 0.0
    %v2741 = vmax.f32 %v2604, 0.0
    %v2742 = vmax.f32 %v2413, 0.0
    %v2743 = vmax.f32 %v2415, 0.0
    %v2744 = vmax.f32 %v2606, 0.0
    %v2745 = vmax.f32 %v2608, 0.0
    %v2746 = vmax.f32 %v2419, 0.0
    %v2747 = vmax.f32 %v2421, 0.0
    %v2748 = vmax.f32 %v2612, 0.0
    %v2749 = vmax.f32 %v2614, 0.0
    %v2750 = vmax.f32 %v2423, 0.0
    %v2751 = vmax.f32 %v2425, 0.0
    %v2752 = vmax.f32 %v2616, 0.0
    %v2753 = vmax.f32 %v2618, 0.0
    %v2754 = vmax.f32 %v2429, 0.0
    %v2755 = vmax.f32 %v2431, 0.0
    %v2756 = vmax.f32 %v2622, 0.0
    %v2757 = vmax.f32 %v2624, 0.0
    %v2758 = vmax.f32 %v2433, 0.0
    %v2759 = vmax.f32 %v2435, 0.0
    %v2760 = vmax.f32 %v2626, 0.0
    %v2761 = vmax.f32 %v2628, 0.0
    %v2762 = vmax.f32 %v2439, 0.0
    %v2763 = vmax.f32 %v2441, 0.0
    %v2764 = vmax.f32 %v2632, 0.0
    %v2765 = vmax.f32 %v2634, 0.0
    %v2766 = vmax.f32 %v2443, 0.0
    %v2767 = vmax.f32 %v2445, 0.0
    %v2768 = vmax.f32 %v2636, 0.0
    %v2769 = vmax.f32 %v2638, 0.0
    %v2770 = vmax.f32 %v2449, 0.0
    %v2771 = vmax.f32 %v2451, 0.0
    %v2772 = vmax.f32 %v2642, 0.0
    %v2773 = vmax.f32 %v2644, 0.0
    %v2774 = vmax.f32 %v2453, 0.0
    %v2775 = vmax.f32 %v2455, 0.0
    %v2776 = vmax.f32 %v2646, 0.0
    %v2777 = vmax.f32 %v2648, 0.0
    %v2778 = vld [vmem:[%s5] sm:$0xff]
    %v2779 = vld [vmem:[%s5 + $0x8] sm:$0xff]
    %v2780 = vld [vmem:[%s5 + $0x10] sm:$0xff]
    %v2781 = vld [vmem:[%s5 + $0x18] sm:$0xff]
    %v2782 = vld [vmem:[%s5 + $0x20] sm:$0xff]
    %v2783 = vld [vmem:[%s5 + $0x28] sm:$0xff]
    %v2784 = vld [vmem:[%s5 + $0x30] sm:$0xff]
    %v2785 = vld [vmem:[%s5 + $0x38] sm:$0xff]
    %v2786 = vld [vmem:[%s5 + $0x40] sm:$0xff]
    %v2787 = vld [vmem:[%s5 + $0x48] sm:$0xff]
    %v2788 = vld [vmem:[%s5 + $0x50] sm:$0xff]
    %v2789 = vld [vmem:[%s5 + $0x58] sm:$0xff]
    %v2790 = vld [vmem:[%s5 + $0x60] sm:$0xff]
    %v2791 = vld [vmem:[%s5 + $0x68] sm:$0xff]
    %v2792 = vld [vmem:[%s5 + $0x70] sm:$0xff]
    %v2793 = vld [vmem:[%s5 + $0x78] sm:$0xff]
    %v2794 = vld [vmem:[%s5 + $0x80] sm:$0xff]
    %v2795 = vld [vmem:[%s5 + $0x88] sm:$0xff]
    %v2796 = vld [vmem:[%s5 + $0x90] sm:$0xff]
    %v2797 = vld [vmem:[%s5 + $0x98] sm:$0xff]
    %v2798 = vld [vmem:[%s5 + $0xa0] sm:$0xff]
    %v2799 = vld [vmem:[%s5 + $0xa8] sm:$0xff]
    %v2800 = vld [vmem:[%s5 + $0xb0] sm:$0xff]
    %v2801 = vld [vmem:[%s5 + $0xb8] sm:$0xff]
    %v2802 = vld [vmem:[%s5 + $0xc0] sm:$0xff]
    %v2803 = vld [vmem:[%s5 + $0xc8] sm:$0xff]
    %v2804 = vld [vmem:[%s5 + $0xd0] sm:$0xff]
    %v2805 = vld [vmem:[%s5 + $0xd8] sm:$0xff]
    %v2806 = vld [vmem:[%s5 + $0xe0] sm:$0xff]
    %v2807 = vld [vmem:[%s5 + $0xe8] sm:$0xff]
    %v2808 = vld [vmem:[%s5 + $0xf0] sm:$0xff]
    %v2809 = vld [vmem:[%s5 + $0xf8] sm:$0xff]
    %v2810 = vld [vmem:[%s5 + $0x100] sm:$0xff]
    %v2811 = vld [vmem:[%s5 + $0x108] sm:$0xff]
    %v2812 = vld [vmem:[%s5 + $0x110] sm:$0xff]
    %v2813 = vld [vmem:[%s5 + $0x118] sm:$0xff]
    %v2814 = vld [vmem:[%s5 + $0x120] sm:$0xff]
    %v2815 = vld [vmem:[%s5 + $0x128] sm:$0xff]
    %v2816 = vld [vmem:[%s5 + $0x130] sm:$0xff]
    %v2817 = vld [vmem:[%s5 + $0x138] sm:$0xff]
    %v2818 = vld [vmem:[%s5 + $0x140] sm:$0xff]
    %v2819 = vld [vmem:[%s5 + $0x148] sm:$0xff]
    %v2820 = vld [vmem:[%s5 + $0x150] sm:$0xff]
    %v2821 = vld [vmem:[%s5 + $0x158] sm:$0xff]
    %v2822 = vld [vmem:[%s5 + $0x160] sm:$0xff]
    %v2823 = vld [vmem:[%s5 + $0x168] sm:$0xff]
    %v2824 = vld [vmem:[%s5 + $0x170] sm:$0xff]
    %v2825 = vld [vmem:[%s5 + $0x178] sm:$0xff]
    %v2826 = vld [vmem:[%s5 + $0x180] sm:$0xff]
    %v2827 = vld [vmem:[%s5 + $0x188] sm:$0xff]
    %v2828 = vld [vmem:[%s5 + $0x190] sm:$0xff]
    %v2829 = vld [vmem:[%s5 + $0x198] sm:$0xff]
    %v2830 = vld [vmem:[%s5 + $0x1a0] sm:$0xff]
    %v2831 = vld [vmem:[%s5 + $0x1a8] sm:$0xff]
    %v2832 = vld [vmem:[%s5 + $0x1b0] sm:$0xff]
    %v2833 = vld [vmem:[%s5 + $0x1b8] sm:$0xff]
    %v2834 = vld [vmem:[%s5 + $0x1c0] sm:$0xff]
    %v2835 = vld [vmem:[%s5 + $0x1c8] sm:$0xff]
    %v2836 = vld [vmem:[%s5 + $0x1d0] sm:$0xff]
    %v2837 = vld [vmem:[%s5 + $0x1d8] sm:$0xff]
    %v2838 = vld [vmem:[%s5 + $0x1e0] sm:$0xff]
    %v2839 = vld [vmem:[%s5 + $0x1e8] sm:$0xff]
    %v2840 = vld [vmem:[%s5 + $0x1f0] sm:$0xff]
    %v2841 = vld [vmem:[%s5 + $0x1f8] sm:$0xff]
    %v2842 = vld [vmem:[%s8 + $0x6] sm:$0x3]
    %v2843 = vpack.c.bf16 %v1574, %v1570
    %v2844 = vpack.c.bf16 %v1575, %v1571
    %v2845 = vpack.c.bf16 %v1576, %v1572
    %v2846 = vpack.c.bf16 %v1577, %v1573
    %v2847 = vpack.c.bf16 %v1582, %v1578
    %v2848 = vpack.c.bf16 %v1583, %v1579
    %v2849 = vpack.c.bf16 %v1584, %v1580
    %v2850 = vpack.c.bf16 %v1585, %v1581
    %v2851 = vpack.c.bf16 %v1590, %v1586
    %v2852 = vpack.c.bf16 %v1591, %v1587
    %v2853 = vpack.c.bf16 %v1592, %v1588
    %v2854 = vpack.c.bf16 %v1593, %v1589
    %v2855 = vpack.c.bf16 %v1598, %v1594
    %v2856 = vpack.c.bf16 %v1599, %v1595
    %v2857 = vpack.c.bf16 %v1600, %v1596
    %v2858 = vpack.c.bf16 %v1601, %v1597
    %v2859 = vpack.c.bf16 %v1606, %v1602
    %v2860 = vpack.c.bf16 %v1607, %v1603
    %v2861 = vpack.c.bf16 %v1608, %v1604
    %v2862 = vpack.c.bf16 %v1609, %v1605
    %v2863 = vpack.c.bf16 %v1614, %v1610
    %v2864 = vpack.c.bf16 %v1615, %v1611
    %v2865 = vpack.c.bf16 %v1616, %v1612
    %v2866 = vpack.c.bf16 %v1617, %v1613
    %v2867 = vpack.c.bf16 %v1622, %v1618
    %v2868 = vpack.c.bf16 %v1623, %v1619
    %v2869 = vpack.c.bf16 %v1624, %v1620
    %v2870 = vpack.c.bf16 %v1625, %v1621
    %v2871 = vpack.c.bf16 %v1630, %v1626
    %v2872 = vpack.c.bf16 %v1631, %v1627
    %v2873 = vpack.c.bf16 %v1632, %v1628
    %v2874 = vpack.c.bf16 %v1633, %v1629
    %v2875 = vpack.c.bf16 %v1638, %v1634
    %v2876 = vpack.c.bf16 %v1639, %v1635
    %v2877 = vpack.c.bf16 %v1640, %v1636
    %v2878 = vpack.c.bf16 %v1641, %v1637
    %v2879 = vpack.c.bf16 %v1646, %v1642
    %v2880 = vpack.c.bf16 %v1647, %v1643
    %v2881 = vpack.c.bf16 %v1648, %v1644
    %v2882 = vpack.c.bf16 %v1649, %v1645
    %v2883 = vpack.c.bf16 %v1654, %v1650
    %v2884 = vpack.c.bf16 %v1655, %v1651
    %v2885 = vpack.c.bf16 %v1656, %v1652
    %v2886 = vpack.c.bf16 %v1657, %v1653
    %v2887 = vpack.c.bf16 %v1662, %v1658
    %v2888 = vpack.c.bf16 %v1663, %v1659
    %v2889 = vpack.c.bf16 %v1664, %v1660
    %v2890 = vpack.c.bf16 %v1665, %v1661
    %v2891 = vpack.c.bf16 %v1670, %v1666
    %v2892 = vpack.c.bf16 %v1671, %v1667
    %v2893 = vpack.c.bf16 %v1672, %v1668
    %v2894 = vpack.c.bf16 %v1673, %v1669
    %v2895 = vpack.c.bf16 %v1678, %v1674
    %v2896 = vpack.c.bf16 %v1679, %v1675
    %v2897 = vpack.c.bf16 %v1680, %v1676
    %v2898 = vpack.c.bf16 %v1681, %v1677
    %v2899 = vpack.c.bf16 %v1686, %v1682
    %v2900 = vpack.c.bf16 %v1687, %v1683
    %v2901 = vpack.c.bf16 %v1688, %v1684
    %v2902 = vpack.c.bf16 %v1689, %v1685
    %v2903 = vpack.c.bf16 %v1694, %v1690
    %v2904 = vpack.c.bf16 %v1695, %v1691
    %v2905 = vpack.c.bf16 %v1696, %v1692
    %v2906 = vpack.c.bf16 %v1697, %v1693
    %v2908 = vlaneseq
    %v2909 = vshrl.u32 %v2908, 7
    %v2910 = vsub.s32 0, %v2909
    %v2911 = vrot.slane %v2842, %v2910
    %v2912 = vlaneseq
    %v2913 = vshrl.u32 %v2912, 7
    %v2914 = vsub.s32 1, %v2913
    %v2915 = vrot.slane %v2842, %v2914
    %v2982 = vunpack.c.l.b16 %v2778
    %v2983 = vunpack.c.h.b16 %v2778
    %v2984 = vunpack.c.l.b16 %v2779
    %v2985 = vunpack.c.h.b16 %v2779
    %v2986 = vunpack.c.l.b16 %v2780
    %v2987 = vunpack.c.h.b16 %v2780
    %v2988 = vunpack.c.l.b16 %v2781
    %v2989 = vunpack.c.h.b16 %v2781
    %v2990 = vunpack.c.l.b16 %v2782
    %v2991 = vunpack.c.h.b16 %v2782
    %v2992 = vunpack.c.l.b16 %v2783
    %v2993 = vunpack.c.h.b16 %v2783
    %v2994 = vunpack.c.l.b16 %v2784
    %v2995 = vunpack.c.h.b16 %v2784
    %v2996 = vunpack.c.l.b16 %v2785
    %v2997 = vunpack.c.h.b16 %v2785
    %v2998 = vunpack.c.l.b16 %v2786
    %v2999 = vunpack.c.h.b16 %v2786
    %v3000 = vunpack.c.l.b16 %v2787
    %v3001 = vunpack.c.h.b16 %v2787
    %v3002 = vunpack.c.l.b16 %v2788
    %v3003 = vunpack.c.h.b16 %v2788
    %v3004 = vunpack.c.l.b16 %v2789
    %v3005 = vunpack.c.h.b16 %v2789
    %v3006 = vunpack.c.l.b16 %v2790
    %v3007 = vunpack.c.h.b16 %v2790
    %v3008 = vunpack.c.l.b16 %v2791
    %v3009 = vunpack.c.h.b16 %v2791
    %v3010 = vunpack.c.l.b16 %v2792
    %v3011 = vunpack.c.h.b16 %v2792
    %v3012 = vunpack.c.l.b16 %v2793
    %v3013 = vunpack.c.h.b16 %v2793
    %v3014 = vunpack.c.l.b16 %v2794
    %v3015 = vunpack.c.h.b16 %v2794
    %v3016 = vunpack.c.l.b16 %v2795
    %v3017 = vunpack.c.h.b16 %v2795
    %v3018 = vunpack.c.l.b16 %v2796
    %v3019 = vunpack.c.h.b16 %v2796
    %v3020 = vunpack.c.l.b16 %v2797
    %v3021 = vunpack.c.h.b16 %v2797
    %v3022 = vunpack.c.l.b16 %v2798
    %v3023 = vunpack.c.h.b16 %v2798
    %v3024 = vunpack.c.l.b16 %v2799
    %v3025 = vunpack.c.h.b16 %v2799
    %v3026 = vunpack.c.l.b16 %v2800
    %v3027 = vunpack.c.h.b16 %v2800
    %v3028 = vunpack.c.l.b16 %v2801
    %v3029 = vunpack.c.h.b16 %v2801
    %v3030 = vunpack.c.l.b16 %v2802
    %v3031 = vunpack.c.h.b16 %v2802
    %v3032 = vunpack.c.l.b16 %v2803
    %v3033 = vunpack.c.h.b16 %v2803
    %v3034 = vunpack.c.l.b16 %v2804
    %v3035 = vunpack.c.h.b16 %v2804
    %v3036 = vunpack.c.l.b16 %v2805
    %v3037 = vunpack.c.h.b16 %v2805
    %v3038 = vunpack.c.l.b16 %v2806
    %v3039 = vunpack.c.h.b16 %v2806
    %v3040 = vunpack.c.l.b16 %v2807
    %v3041 = vunpack.c.h.b16 %v2807
    %v3042 = vunpack.c.l.b16 %v2808
    %v3043 = vunpack.c.h.b16 %v2808
    %v3044 = vunpack.c.l.b16 %v2809
    %v3045 = vunpack.c.h.b16 %v2809
    %v3046 = vunpack.c.l.b16 %v2810
    %v3047 = vunpack.c.h.b16 %v2810
    %v3048 = vunpack.c.l.b16 %v2811
    %v3049 = vunpack.c.h.b16 %v2811
    %v3050 = vunpack.c.l.b16 %v2812
    %v3051 = vunpack.c.h.b16 %v2812
    %v3052 = vunpack.c.l.b16 %v2813
    %v3053 = vunpack.c.h.b16 %v2813
    %v3054 = vunpack.c.l.b16 %v2814
    %v3055 = vunpack.c.h.b16 %v2814
    %v3056 = vunpack.c.l.b16 %v2815
    %v3057 = vunpack.c.h.b16 %v2815
    %v3058 = vunpack.c.l.b16 %v2816
    %v3059 = vunpack.c.h.b16 %v2816
    %v3060 = vunpack.c.l.b16 %v2817
    %v3061 = vunpack.c.h.b16 %v2817
    %v3062 = vunpack.c.l.b16 %v2818
    %v3063 = vunpack.c.h.b16 %v2818
    %v3064 = vunpack.c.l.b16 %v2819
    %v3065 = vunpack.c.h.b16 %v2819
    %v3066 = vunpack.c.l.b16 %v2820
    %v3067 = vunpack.c.h.b16 %v2820
    %v3068 = vunpack.c.l.b16 %v2821
    %v3069 = vunpack.c.h.b16 %v2821
    %v3070 = vunpack.c.l.b16 %v2822
    %v3071 = vunpack.c.h.b16 %v2822
    %v3072 = vunpack.c.l.b16 %v2823
    %v3073 = vunpack.c.h.b16 %v2823
    %v3074 = vunpack.c.l.b16 %v2824
    %v3075 = vunpack.c.h.b16 %v2824
    %v3076 = vunpack.c.l.b16 %v2825
    %v3077 = vunpack.c.h.b16 %v2825
    %v3078 = vunpack.c.l.b16 %v2826
    %v3079 = vunpack.c.h.b16 %v2826
    %v3080 = vunpack.c.l.b16 %v2827
    %v3081 = vunpack.c.h.b16 %v2827
    %v3082 = vunpack.c.l.b16 %v2828
    %v3083 = vunpack.c.h.b16 %v2828
    %v3084 = vunpack.c.l.b16 %v2829
    %v3085 = vunpack.c.h.b16 %v2829
    %v3086 = vunpack.c.l.b16 %v2830
    %v3087 = vunpack.c.h.b16 %v2830
    %v3088 = vunpack.c.l.b16 %v2831
    %v3089 = vunpack.c.h.b16 %v2831
    %v3090 = vunpack.c.l.b16 %v2832
    %v3091 = vunpack.c.h.b16 %v2832
    %v3092 = vunpack.c.l.b16 %v2833
    %v3093 = vunpack.c.h.b16 %v2833
    %v3094 = vunpack.c.l.b16 %v2834
    %v3095 = vunpack.c.h.b16 %v2834
    %v3096 = vunpack.c.l.b16 %v2835
    %v3097 = vunpack.c.h.b16 %v2835
    %v3098 = vunpack.c.l.b16 %v2836
    %v3099 = vunpack.c.h.b16 %v2836
    %v3100 = vunpack.c.l.b16 %v2837
    %v3101 = vunpack.c.h.b16 %v2837
    %v3102 = vunpack.c.l.b16 %v2838
    %v3103 = vunpack.c.h.b16 %v2838
    %v3104 = vunpack.c.l.b16 %v2839
    %v3105 = vunpack.c.h.b16 %v2839
    %v3106 = vunpack.c.l.b16 %v2840
    %v3107 = vunpack.c.h.b16 %v2840
    %v3108 = vunpack.c.l.b16 %v2841
    %v3109 = vunpack.c.h.b16 %v2841
    %v3110 = vpack.c.b16 %v2984, %v2982
    %v3111 = vpack.c.b16 %v2985, %v2983
    %v3112 = vpack.c.b16 %v2988, %v2986
    %v3113 = vpack.c.b16 %v2989, %v2987
    %v3114 = vpack.c.b16 %v2992, %v2990
    %v3115 = vpack.c.b16 %v2993, %v2991
    %v3116 = vpack.c.b16 %v2996, %v2994
    %v3117 = vpack.c.b16 %v2997, %v2995
    %v3118 = vpack.c.b16 %v3000, %v2998
    %v3119 = vpack.c.b16 %v3001, %v2999
    %v3120 = vpack.c.b16 %v3004, %v3002
    %v3121 = vpack.c.b16 %v3005, %v3003
    %v3122 = vpack.c.b16 %v3008, %v3006
    %v3123 = vpack.c.b16 %v3009, %v3007
    %v3124 = vpack.c.b16 %v3012, %v3010
    %v3125 = vpack.c.b16 %v3013, %v3011
    %v3126 = vpack.c.b16 %v3016, %v3014
    %v3127 = vpack.c.b16 %v3017, %v3015
    %v3128 = vpack.c.b16 %v3020, %v3018
    %v3129 = vpack.c.b16 %v3021, %v3019
    %v3130 = vpack.c.b16 %v3024, %v3022
    %v3131 = vpack.c.b16 %v3025, %v3023
    %v3132 = vpack.c.b16 %v3028, %v3026
    %v3133 = vpack.c.b16 %v3029, %v3027
    %v3134 = vpack.c.b16 %v3032, %v3030
    %v3135 = vpack.c.b16 %v3033, %v3031
    %v3136 = vpack.c.b16 %v3036, %v3034
    %v3137 = vpack.c.b16 %v3037, %v3035
    %v3138 = vpack.c.b16 %v3040, %v3038
    %v3139 = vpack.c.b16 %v3041, %v3039
    %v3140 = vpack.c.b16 %v3044, %v3042
    %v3141 = vpack.c.b16 %v3045, %v3043
    %v3142 = vpack.c.b16 %v3048, %v3046
    %v3143 = vpack.c.b16 %v3049, %v3047
    %v3144 = vpack.c.b16 %v3052, %v3050
    %v3145 = vpack.c.b16 %v3053, %v3051
    %v3146 = vpack.c.b16 %v3056, %v3054
    %v3147 = vpack.c.b16 %v3057, %v3055
    %v3148 = vpack.c.b16 %v3060, %v3058
    %v3149 = vpack.c.b16 %v3061, %v3059
    %v3150 = vpack.c.b16 %v3064, %v3062
    %v3151 = vpack.c.b16 %v3065, %v3063
    %v3152 = vpack.c.b16 %v3068, %v3066
    %v3153 = vpack.c.b16 %v3069, %v3067
    %v3154 = vpack.c.b16 %v3072, %v3070
    %v3155 = vpack.c.b16 %v3073, %v3071
    %v3156 = vpack.c.b16 %v3076, %v3074
    %v3157 = vpack.c.b16 %v3077, %v3075
    %v3158 = vpack.c.b16 %v3080, %v3078
    %v3159 = vpack.c.b16 %v3081, %v3079
    %v3160 = vpack.c.b16 %v3084, %v3082
    %v3161 = vpack.c.b16 %v3085, %v3083
    %v3162 = vpack.c.b16 %v3088, %v3086
    %v3163 = vpack.c.b16 %v3089, %v3087
    %v3164 = vpack.c.b16 %v3092, %v3090
    %v3165 = vpack.c.b16 %v3093, %v3091
    %v3166 = vpack.c.b16 %v3096, %v3094
    %v3167 = vpack.c.b16 %v3097, %v3095
    %v3168 = vpack.c.b16 %v3100, %v3098
    %v3169 = vpack.c.b16 %v3101, %v3099
    %v3170 = vpack.c.b16 %v3104, %v3102
    %v3171 = vpack.c.b16 %v3105, %v3103
    %v3172 = vpack.c.b16 %v3108, %v3106
    %v3173 = vpack.c.b16 %v3109, %v3107
    %3238 = vmatprep.subr.bf16.mxu0 %v3125
    %3239 = vmatpush1.bf16.msra.mxu0 %v3124
    %3240 = vmatprep.subr.bf16.mxu0 %v3123
    %3241 = vmatpush1.bf16.msra.mxu0 %v3122
    %3242 = vmatprep.subr.bf16.mxu0 %v3121
    %3243 = vmatpush1.bf16.msra.mxu0 %v3120
    %3244 = vmatprep.subr.bf16.mxu0 %v3119
    %3245 = vmatpush1.bf16.msra.mxu0 %v3118
    %3246 = vmatprep.subr.bf16.mxu0 %v3117
    %3247 = vmatpush1.bf16.msra.mxu0 %v3116
    %3248 = vmatprep.subr.bf16.mxu0 %v3115
    %3249 = vmatpush1.bf16.msra.mxu0 %v3114
    %3250 = vmatprep.subr.bf16.mxu0 %v3113
    %3251 = vmatpush1.bf16.msra.mxu0 %v3112
    %3252 = vmatprep.subr.bf16.mxu0 %v3111
    %3253 = vmatpush1.bf16.msra.mxu0 %v3110
    %3254 = vmatprep.subr.bf16.mxu0 %v3141
    %3255 = vmatpush2.bf16.msra.mxu0 %v3140
    %3256 = vmatprep.subr.bf16.mxu0 %v3139
    %3257 = vmatpush2.bf16.msra.mxu0 %v3138
    %3258 = vmatprep.subr.bf16.mxu0 %v3137
    %3259 = vmatpush2.bf16.msra.mxu0 %v3136
    %3260 = vmatprep.subr.bf16.mxu0 %v3135
    %3261 = vmatpush2.bf16.msra.mxu0 %v3134
    %3262 = vmatprep.subr.bf16.mxu0 %v3133
    %3263 = vmatpush2.bf16.msra.mxu0 %v3132
    %3264 = vmatprep.subr.bf16.mxu0 %v3131
    %3265 = vmatpush2.bf16.msra.mxu0 %v3130
    %3266 = vmatprep.subr.bf16.mxu0 %v3129
    %3267 = vmatpush2.bf16.msra.mxu0 %v3128
    %3268 = vmatprep.subr.bf16.mxu0 %v3127
    %3269 = vmatpush2.bf16.msra.mxu0 %v3126
    %3270 = vmatprep.mubr.bf16.mxu0 %v2844
    %3271 = vmatmul.mubr.bf16.gmra.mxu0 %v2843
    %v3272 = vpop.f32.mrf.mxu0
    %v3273 = vadd.f32 %v2911, %v3272
    %v3274 = vpop.f32.mrf.mxu0
    %v3275 = vadd.f32 %v2915, %v3274
    %v3276 = vpop.f32.mrf.mxu0
    %v3277 = vadd.f32 %v2911, %v3276
    %v3278 = vpop.f32.mrf.mxu0
    %v3279 = vadd.f32 %v2915, %v3278
    %3280 = vmatprep.mubr.bf16.mxu0 %v2848
    %3281 = vmatmul.mubr.bf16.gmra.mxu0 %v2847
    %v3282 = vpop.f32.mrf.mxu0
    %v3283 = vadd.f32 %v2911, %v3282
    %v3284 = vpop.f32.mrf.mxu0
    %v3285 = vadd.f32 %v2915, %v3284
    %v3286 = vpop.f32.mrf.mxu0
    %v3287 = vadd.f32 %v2911, %v3286
    %v3288 = vpop.f32.mrf.mxu0
    %v3289 = vadd.f32 %v2915, %v3288
    %3290 = vmatprep.mubr.bf16.mxu0 %v2852
    %3291 = vmatmul.mubr.bf16.gmra.mxu0 %v2851
    %v3292 = vpop.f32.mrf.mxu0
    %v3293 = vadd.f32 %v2911, %v3292
    %v3294 = vpop.f32.mrf.mxu0
    %v3295 = vadd.f32 %v2915, %v3294
    %v3296 = vpop.f32.mrf.mxu0
    %v3297 = vadd.f32 %v2911, %v3296
    %v3298 = vpop.f32.mrf.mxu0
    %v3299 = vadd.f32 %v2915, %v3298
    %3300 = vmatprep.mubr.bf16.mxu0 %v2856
    %3301 = vmatmul.mubr.bf16.gmra.mxu0 %v2855
    %v3302 = vpop.f32.mrf.mxu0
    %v3303 = vadd.f32 %v2911, %v3302
    %v3304 = vpop.f32.mrf.mxu0
    %v3305 = vadd.f32 %v2915, %v3304
    %v3306 = vpop.f32.mrf.mxu0
    %v3307 = vadd.f32 %v2911, %v3306
    %v3308 = vpop.f32.mrf.mxu0
    %v3309 = vadd.f32 %v2915, %v3308
    %3310 = vmatprep.mubr.bf16.mxu0 %v2860
    %3311 = vmatmul.mubr.bf16.gmra.mxu0 %v2859
    %v3312 = vpop.f32.mrf.mxu0
    %v3313 = vadd.f32 %v2911, %v3312
    %v3314 = vpop.f32.mrf.mxu0
    %v3315 = vadd.f32 %v2915, %v3314
    %v3316 = vpop.f32.mrf.mxu0
    %v3317 = vadd.f32 %v2911, %v3316
    %v3318 = vpop.f32.mrf.mxu0
    %v3319 = vadd.f32 %v2915, %v3318
    %3320 = vmatprep.mubr.bf16.mxu0 %v2864
    %3321 = vmatmul.mubr.bf16.gmra.mxu0 %v2863
    %v3322 = vpop.f32.mrf.mxu0
    %v3323 = vadd.f32 %v2911, %v3322
    %v3324 = vpop.f32.mrf.mxu0
    %v3325 = vadd.f32 %v2915, %v3324
    %v3326 = vpop.f32.mrf.mxu0
    %v3327 = vadd.f32 %v2911, %v3326
    %v3328 = vpop.f32.mrf.mxu0
    %v3329 = vadd.f32 %v2915, %v3328
    %3330 = vmatprep.mubr.bf16.mxu0 %v2868
    %3331 = vmatmul.mubr.bf16.gmra.mxu0 %v2867
    %v3332 = vpop.f32.mrf.mxu0
    %v3333 = vadd.f32 %v2911, %v3332
    %v3334 = vpop.f32.mrf.mxu0
    %v3335 = vadd.f32 %v2915, %v3334
    %v3336 = vpop.f32.mrf.mxu0
    %v3337 = vadd.f32 %v2911, %v3336
    %v3338 = vpop.f32.mrf.mxu0
    %v3339 = vadd.f32 %v2915, %v3338
    %3340 = vmatprep.mubr.bf16.mxu0 %v2872
    %3341 = vmatmul.mubr.bf16.gmra.mxu0 %v2871
    %v3342 = vpop.f32.mrf.mxu0
    %v3343 = vadd.f32 %v2911, %v3342
    %v3344 = vpop.f32.mrf.mxu0
    %v3345 = vadd.f32 %v2915, %v3344
    %v3346 = vpop.f32.mrf.mxu0
    %v3347 = vadd.f32 %v2911, %v3346
    %v3348 = vpop.f32.mrf.mxu0
    %v3349 = vadd.f32 %v2915, %v3348
    %3350 = vmatprep.mubr.bf16.mxu0 %v2876
    %3351 = vmatmul.mubr.bf16.gmra.mxu0 %v2875
    %v3352 = vpop.f32.mrf.mxu0
    %v3353 = vadd.f32 %v2911, %v3352
    %v3354 = vpop.f32.mrf.mxu0
    %v3355 = vadd.f32 %v2915, %v3354
    %v3356 = vpop.f32.mrf.mxu0
    %v3357 = vadd.f32 %v2911, %v3356
    %v3358 = vpop.f32.mrf.mxu0
    %v3359 = vadd.f32 %v2915, %v3358
    %3360 = vmatprep.mubr.bf16.mxu0 %v2880
    %3361 = vmatmul.mubr.bf16.gmra.mxu0 %v2879
    %v3362 = vpop.f32.mrf.mxu0
    %v3363 = vadd.f32 %v2911, %v3362
    %v3364 = vpop.f32.mrf.mxu0
    %v3365 = vadd.f32 %v2915, %v3364
    %v3366 = vpop.f32.mrf.mxu0
    %v3367 = vadd.f32 %v2911, %v3366
    %v3368 = vpop.f32.mrf.mxu0
    %v3369 = vadd.f32 %v2915, %v3368
    %3370 = vmatprep.mubr.bf16.mxu0 %v2884
    %3371 = vmatmul.mubr.bf16.gmra.mxu0 %v2883
    %v3372 = vpop.f32.mrf.mxu0
    %v3373 = vadd.f32 %v2911, %v3372
    %v3374 = vpop.f32.mrf.mxu0
    %v3375 = vadd.f32 %v2915, %v3374
    %v3376 = vpop.f32.mrf.mxu0
    %v3377 = vadd.f32 %v2911, %v3376
    %v3378 = vpop.f32.mrf.mxu0
    %v3379 = vadd.f32 %v2915, %v3378
    %3380 = vmatprep.mubr.bf16.mxu0 %v2888
    %3381 = vmatmul.mubr.bf16.gmra.mxu0 %v2887
    %v3382 = vpop.f32.mrf.mxu0
    %v3383 = vadd.f32 %v2911, %v3382
    %v3384 = vpop.f32.mrf.mxu0
    %v3385 = vadd.f32 %v2915, %v3384
    %v3386 = vpop.f32.mrf.mxu0
    %v3387 = vadd.f32 %v2911, %v3386
    %v3388 = vpop.f32.mrf.mxu0
    %v3389 = vadd.f32 %v2915, %v3388
    %3390 = vmatprep.mubr.bf16.mxu0 %v2892
    %3391 = vmatmul.mubr.bf16.gmra.mxu0 %v2891
    %v3392 = vpop.f32.mrf.mxu0
    %v3393 = vadd.f32 %v2911, %v3392
    %v3394 = vpop.f32.mrf.mxu0
    %v3395 = vadd.f32 %v2915, %v3394
    %v3396 = vpop.f32.mrf.mxu0
    %v3397 = vadd.f32 %v2911, %v3396
    %v3398 = vpop.f32.mrf.mxu0
    %v3399 = vadd.f32 %v2915, %v3398
    %3400 = vmatprep.mubr.bf16.mxu0 %v2896
    %3401 = vmatmul.mubr.bf16.gmra.mxu0 %v2895
    %v3402 = vpop.f32.mrf.mxu0
    %v3403 = vadd.f32 %v2911, %v3402
    %v3404 = vpop.f32.mrf.mxu0
    %v3405 = vadd.f32 %v2915, %v3404
    %v3406 = vpop.f32.mrf.mxu0
    %v3407 = vadd.f32 %v2911, %v3406
    %v3408 = vpop.f32.mrf.mxu0
    %v3409 = vadd.f32 %v2915, %v3408
    %3410 = vmatprep.mubr.bf16.mxu0 %v2900
    %3411 = vmatmul.mubr.bf16.gmra.mxu0 %v2899
    %v3412 = vpop.f32.mrf.mxu0
    %v3413 = vadd.f32 %v2911, %v3412
    %v3414 = vpop.f32.mrf.mxu0
    %v3415 = vadd.f32 %v2915, %v3414
    %v3416 = vpop.f32.mrf.mxu0
    %v3417 = vadd.f32 %v2911, %v3416
    %v3418 = vpop.f32.mrf.mxu0
    %v3419 = vadd.f32 %v2915, %v3418
    %3420 = vmatprep.mubr.bf16.mxu0 %v2904
    %3421 = vmatmul.mubr.bf16.gmra.mxu0 %v2903
    %v3422 = vpop.f32.mrf.mxu0
    %v3423 = vadd.f32 %v2911, %v3422
    %v3424 = vpop.f32.mrf.mxu0
    %v3425 = vadd.f32 %v2915, %v3424
    %v3426 = vpop.f32.mrf.mxu0
    %v3427 = vadd.f32 %v2911, %v3426
    %v3428 = vpop.f32.mrf.mxu0
    %v3429 = vadd.f32 %v2915, %v3428
    %3430 = vdwg.mxu0
    %3431 = vmatprep.subr.bf16.mxu0 %v3157
    %3432 = vmatpush1.bf16.msra.mxu0 %v3156
    %3433 = vmatprep.subr.bf16.mxu0 %v3155
    %3434 = vmatpush1.bf16.msra.mxu0 %v3154
    %3435 = vmatprep.subr.bf16.mxu0 %v3153
    %3436 = vmatpush1.bf16.msra.mxu0 %v3152
    %3437 = vmatprep.subr.bf16.mxu0 %v3151
    %3438 = vmatpush1.bf16.msra.mxu0 %v3150
    %3439 = vmatprep.subr.bf16.mxu0 %v3149
    %3440 = vmatpush1.bf16.msra.mxu0 %v3148
    %3441 = vmatprep.subr.bf16.mxu0 %v3147
    %3442 = vmatpush1.bf16.msra.mxu0 %v3146
    %3443 = vmatprep.subr.bf16.mxu0 %v3145
    %3444 = vmatpush1.bf16.msra.mxu0 %v3144
    %3445 = vmatprep.subr.bf16.mxu0 %v3143
    %3446 = vmatpush1.bf16.msra.mxu0 %v3142
    %3447 = vmatprep.subr.bf16.mxu0 %v3173
    %3448 = vmatpush2.bf16.msra.mxu0 %v3172
    %3449 = vmatprep.subr.bf16.mxu0 %v3171
    %3450 = vmatpush2.bf16.msra.mxu0 %v3170
    %3451 = vmatprep.subr.bf16.mxu0 %v3169
    %3452 = vmatpush2.bf16.msra.mxu0 %v3168
    %3453 = vmatprep.subr.bf16.mxu0 %v3167
    %3454 = vmatpush2.bf16.msra.mxu0 %v3166
    %3455 = vmatprep.subr.bf16.mxu0 %v3165
    %3456 = vmatpush2.bf16.msra.mxu0 %v3164
    %3457 = vmatprep.subr.bf16.mxu0 %v3163
    %3458 = vmatpush2.bf16.msra.mxu0 %v3162
    %3459 = vmatprep.subr.bf16.mxu0 %v3161
    %3460 = vmatpush2.bf16.msra.mxu0 %v3160
    %3461 = vmatprep.subr.bf16.mxu0 %v3159
    %3462 = vmatpush2.bf16.msra.mxu0 %v3158
    %3463 = vmatprep.mubr.bf16.mxu0 %v2846
    %3464 = vmatmul.mubr.bf16.gmra.mxu0 %v2845
    %v3465 = vpop.f32.mrf.mxu0
    %v3466 = vadd.f32 %v3273, %v3465
    %v3467 = vpop.f32.mrf.mxu0
    %v3468 = vadd.f32 %v3275, %v3467
    %v3469 = vpop.f32.mrf.mxu0
    %v3470 = vadd.f32 %v3277, %v3469
    %v3471 = vpop.f32.mrf.mxu0
    %v3472 = vadd.f32 %v3279, %v3471
    %3473 = vmatprep.mubr.bf16.mxu0 %v2850
    %3474 = vmatmul.mubr.bf16.gmra.mxu0 %v2849
    %v3475 = vpop.f32.mrf.mxu0
    %v3476 = vadd.f32 %v3283, %v3475
    %v3477 = vpop.f32.mrf.mxu0
    %v3478 = vadd.f32 %v3285, %v3477
    %v3479 = vpop.f32.mrf.mxu0
    %v3480 = vadd.f32 %v3287, %v3479
    %v3481 = vpop.f32.mrf.mxu0
    %v3482 = vadd.f32 %v3289, %v3481
    %3483 = vmatprep.mubr.bf16.mxu0 %v2854
    %3484 = vmatmul.mubr.bf16.gmra.mxu0 %v2853
    %v3485 = vpop.f32.mrf.mxu0
    %v3486 = vadd.f32 %v3293, %v3485
    %v3487 = vpop.f32.mrf.mxu0
    %v3488 = vadd.f32 %v3295, %v3487
    %v3489 = vpop.f32.mrf.mxu0
    %v3490 = vadd.f32 %v3297, %v3489
    %v3491 = vpop.f32.mrf.mxu0
    %v3492 = vadd.f32 %v3299, %v3491
    %3493 = vmatprep.mubr.bf16.mxu0 %v2858
    %3494 = vmatmul.mubr.bf16.gmra.mxu0 %v2857
    %v3495 = vpop.f32.mrf.mxu0
    %v3496 = vadd.f32 %v3303, %v3495
    %v3497 = vpop.f32.mrf.mxu0
    %v3498 = vadd.f32 %v3305, %v3497
    %v3499 = vpop.f32.mrf.mxu0
    %v3500 = vadd.f32 %v3307, %v3499
    %v3501 = vpop.f32.mrf.mxu0
    %v3502 = vadd.f32 %v3309, %v3501
    %3503 = vmatprep.mubr.bf16.mxu0 %v2862
    %3504 = vmatmul.mubr.bf16.gmra.mxu0 %v2861
    %v3505 = vpop.f32.mrf.mxu0
    %v3506 = vadd.f32 %v3313, %v3505
    %v3507 = vpop.f32.mrf.mxu0
    %v3508 = vadd.f32 %v3315, %v3507
    %v3509 = vpop.f32.mrf.mxu0
    %v3510 = vadd.f32 %v3317, %v3509
    %v3511 = vpop.f32.mrf.mxu0
    %v3512 = vadd.f32 %v3319, %v3511
    %3513 = vmatprep.mubr.bf16.mxu0 %v2866
    %3514 = vmatmul.mubr.bf16.gmra.mxu0 %v2865
    %v3515 = vpop.f32.mrf.mxu0
    %v3516 = vadd.f32 %v3323, %v3515
    %v3517 = vpop.f32.mrf.mxu0
    %v3518 = vadd.f32 %v3325, %v3517
    %v3519 = vpop.f32.mrf.mxu0
    %v3520 = vadd.f32 %v3327, %v3519
    %v3521 = vpop.f32.mrf.mxu0
    %v3522 = vadd.f32 %v3329, %v3521
    %3523 = vmatprep.mubr.bf16.mxu0 %v2870
    %3524 = vmatmul.mubr.bf16.gmra.mxu0 %v2869
    %v3525 = vpop.f32.mrf.mxu0
    %v3526 = vadd.f32 %v3333, %v3525
    %v3527 = vpop.f32.mrf.mxu0
    %v3528 = vadd.f32 %v3335, %v3527
    %v3529 = vpop.f32.mrf.mxu0
    %v3530 = vadd.f32 %v3337, %v3529
    %v3531 = vpop.f32.mrf.mxu0
    %v3532 = vadd.f32 %v3339, %v3531
    %3533 = vmatprep.mubr.bf16.mxu0 %v2874
    %3534 = vmatmul.mubr.bf16.gmra.mxu0 %v2873
    %v3535 = vpop.f32.mrf.mxu0
    %v3536 = vadd.f32 %v3343, %v3535
    %v3537 = vpop.f32.mrf.mxu0
    %v3538 = vadd.f32 %v3345, %v3537
    %v3539 = vpop.f32.mrf.mxu0
    %v3540 = vadd.f32 %v3347, %v3539
    %v3541 = vpop.f32.mrf.mxu0
    %v3542 = vadd.f32 %v3349, %v3541
    %3543 = vmatprep.mubr.bf16.mxu0 %v2878
    %3544 = vmatmul.mubr.bf16.gmra.mxu0 %v2877
    %v3545 = vpop.f32.mrf.mxu0
    %v3546 = vadd.f32 %v3353, %v3545
    %v3547 = vpop.f32.mrf.mxu0
    %v3548 = vadd.f32 %v3355, %v3547
    %v3549 = vpop.f32.mrf.mxu0
    %v3550 = vadd.f32 %v3357, %v3549
    %v3551 = vpop.f32.mrf.mxu0
    %v3552 = vadd.f32 %v3359, %v3551
    %3553 = vmatprep.mubr.bf16.mxu0 %v2882
    %3554 = vmatmul.mubr.bf16.gmra.mxu0 %v2881
    %v3555 = vpop.f32.mrf.mxu0
    %v3556 = vadd.f32 %v3363, %v3555
    %v3557 = vpop.f32.mrf.mxu0
    %v3558 = vadd.f32 %v3365, %v3557
    %v3559 = vpop.f32.mrf.mxu0
    %v3560 = vadd.f32 %v3367, %v3559
    %v3561 = vpop.f32.mrf.mxu0
    %v3562 = vadd.f32 %v3369, %v3561
    %3563 = vmatprep.mubr.bf16.mxu0 %v2886
    %3564 = vmatmul.mubr.bf16.gmra.mxu0 %v2885
    %v3565 = vpop.f32.mrf.mxu0
    %v3566 = vadd.f32 %v3373, %v3565
    %v3567 = vpop.f32.mrf.mxu0
    %v3568 = vadd.f32 %v3375, %v3567
    %v3569 = vpop.f32.mrf.mxu0
    %v3570 = vadd.f32 %v3377, %v3569
    %v3571 = vpop.f32.mrf.mxu0
    %v3572 = vadd.f32 %v3379, %v3571
    %3573 = vmatprep.mubr.bf16.mxu0 %v2890
    %3574 = vmatmul.mubr.bf16.gmra.mxu0 %v2889
    %v3575 = vpop.f32.mrf.mxu0
    %v3576 = vadd.f32 %v3383, %v3575
    %v3577 = vpop.f32.mrf.mxu0
    %v3578 = vadd.f32 %v3385, %v3577
    %v3579 = vpop.f32.mrf.mxu0
    %v3580 = vadd.f32 %v3387, %v3579
    %v3581 = vpop.f32.mrf.mxu0
    %v3582 = vadd.f32 %v3389, %v3581
    %3583 = vmatprep.mubr.bf16.mxu0 %v2894
    %3584 = vmatmul.mubr.bf16.gmra.mxu0 %v2893
    %v3585 = vpop.f32.mrf.mxu0
    %v3586 = vadd.f32 %v3393, %v3585
    %v3587 = vpop.f32.mrf.mxu0
    %v3588 = vadd.f32 %v3395, %v3587
    %v3589 = vpop.f32.mrf.mxu0
    %v3590 = vadd.f32 %v3397, %v3589
    %v3591 = vpop.f32.mrf.mxu0
    %v3592 = vadd.f32 %v3399, %v3591
    %3593 = vmatprep.mubr.bf16.mxu0 %v2898
    %3594 = vmatmul.mubr.bf16.gmra.mxu0 %v2897
    %v3595 = vpop.f32.mrf.mxu0
    %v3596 = vadd.f32 %v3403, %v3595
    %v3597 = vpop.f32.mrf.mxu0
    %v3598 = vadd.f32 %v3405, %v3597
    %v3599 = vpop.f32.mrf.mxu0
    %v3600 = vadd.f32 %v3407, %v3599
    %v3601 = vpop.f32.mrf.mxu0
    %v3602 = vadd.f32 %v3409, %v3601
    %3603 = vmatprep.mubr.bf16.mxu0 %v2902
    %3604 = vmatmul.mubr.bf16.gmra.mxu0 %v2901
    %v3605 = vpop.f32.mrf.mxu0
    %v3606 = vadd.f32 %v3413, %v3605
    %v3607 = vpop.f32.mrf.mxu0
    %v3608 = vadd.f32 %v3415, %v3607
    %v3609 = vpop.f32.mrf.mxu0
    %v3610 = vadd.f32 %v3417, %v3609
    %v3611 = vpop.f32.mrf.mxu0
    %v3612 = vadd.f32 %v3419, %v3611
    %3613 = vmatprep.mubr.bf16.mxu0 %v2906
    %3614 = vmatmul.mubr.bf16.gmra.mxu0 %v2905
    %v3615 = vpop.f32.mrf.mxu0
    %v3616 = vadd.f32 %v3423, %v3615
    %v3617 = vpop.f32.mrf.mxu0
    %v3618 = vadd.f32 %v3425, %v3617
    %v3619 = vpop.f32.mrf.mxu0
    %v3620 = vadd.f32 %v3427, %v3619
    %v3621 = vpop.f32.mrf.mxu0
    %v3622 = vadd.f32 %v3429, %v3621
    %3623 = vdwg.mxu0
    %v3624 = vmax.f32 %v3466, 0.0
    %v3625 = vmax.f32 %v3468, 0.0
    %v3626 = vmax.f32 %v3470, 0.0
    %v3627 = vmax.f32 %v3472, 0.0
    %v3628 = vmax.f32 %v3476, 0.0
    %v3629 = vmax.f32 %v3478, 0.0
    %v3630 = vmax.f32 %v3480, 0.0
    %v3631 = vmax.f32 %v3482, 0.0
    %v3632 = vmax.f32 %v3486, 0.0
    %v3633 = vmax.f32 %v3488, 0.0
    %v3634 = vmax.f32 %v3490, 0.0
    %v3635 = vmax.f32 %v3492, 0.0
    %v3636 = vmax.f32 %v3496, 0.0
    %v3637 = vmax.f32 %v3498, 0.0
    %v3638 = vmax.f32 %v3500, 0.0
    %v3639 = vmax.f32 %v3502, 0.0
    %v3640 = vmax.f32 %v3506, 0.0
    %v3641 = vmax.f32 %v3508, 0.0
    %v3642 = vmax.f32 %v3510, 0.0
    %v3643 = vmax.f32 %v3512, 0.0
    %v3644 = vmax.f32 %v3516, 0.0
    %v3645 = vmax.f32 %v3518, 0.0
    %v3646 = vmax.f32 %v3520, 0.0
    %v3647 = vmax.f32 %v3522, 0.0
    %v3648 = vmax.f32 %v3526, 0.0
    %v3649 = vmax.f32 %v3528, 0.0
    %v3650 = vmax.f32 %v3530, 0.0
    %v3651 = vmax.f32 %v3532, 0.0
    %v3652 = vmax.f32 %v3536, 0.0
    %v3653 = vmax.f32 %v3538, 0.0
    %v3654 = vmax.f32 %v3540, 0.0
    %v3655 = vmax.f32 %v3542, 0.0
    %v3656 = vmax.f32 %v3546, 0.0
    %v3657 = vmax.f32 %v3548, 0.0
    %v3658 = vmax.f32 %v3550, 0.0
    %v3659 = vmax.f32 %v3552, 0.0
    %v3660 = vmax.f32 %v3556, 0.0
    %v3661 = vmax.f32 %v3558, 0.0
    %v3662 = vmax.f32 %v3560, 0.0
    %v3663 = vmax.f32 %v3562, 0.0
    %v3664 = vmax.f32 %v3566, 0.0
    %v3665 = vmax.f32 %v3568, 0.0
    %v3666 = vmax.f32 %v3570, 0.0
    %v3667 = vmax.f32 %v3572, 0.0
    %v3668 = vmax.f32 %v3576, 0.0
    %v3669 = vmax.f32 %v3578, 0.0
    %v3670 = vmax.f32 %v3580, 0.0
    %v3671 = vmax.f32 %v3582, 0.0
    %v3672 = vmax.f32 %v3586, 0.0
    %v3673 = vmax.f32 %v3588, 0.0
    %v3674 = vmax.f32 %v3590, 0.0
    %v3675 = vmax.f32 %v3592, 0.0
    %v3676 = vmax.f32 %v3596, 0.0
    %v3677 = vmax.f32 %v3598, 0.0
    %v3678 = vmax.f32 %v3600, 0.0
    %v3679 = vmax.f32 %v3602, 0.0
    %v3680 = vmax.f32 %v3606, 0.0
    %v3681 = vmax.f32 %v3608, 0.0
    %v3682 = vmax.f32 %v3610, 0.0
    %v3683 = vmax.f32 %v3612, 0.0
    %v3684 = vmax.f32 %v3616, 0.0
    %v3685 = vmax.f32 %v3618, 0.0
    %v3686 = vmax.f32 %v3620, 0.0
    %v3687 = vmax.f32 %v3622, 0.0
    %v3688 = vld [vmem:[%s5 + $0x200] sm:$0xff]
    %v3689 = vld [vmem:[%s5 + $0x208] sm:$0xff]
    %v3690 = vld [vmem:[%s5 + $0x210] sm:$0xff]
    %v3691 = vld [vmem:[%s5 + $0x218] sm:$0xff]
    %v3692 = vld [vmem:[%s5 + $0x220] sm:$0xff]
    %v3693 = vld [vmem:[%s5 + $0x228] sm:$0xff]
    %v3694 = vld [vmem:[%s5 + $0x230] sm:$0xff]
    %v3695 = vld [vmem:[%s5 + $0x238] sm:$0xff]
    %v3696 = vld [vmem:[%s5 + $0x240] sm:$0xff]
    %v3697 = vld [vmem:[%s5 + $0x248] sm:$0xff]
    %v3698 = vld [vmem:[%s5 + $0x250] sm:$0xff]
    %v3699 = vld [vmem:[%s5 + $0x258] sm:$0xff]
    %v3700 = vld [vmem:[%s5 + $0x260] sm:$0xff]
    %v3701 = vld [vmem:[%s5 + $0x268] sm:$0xff]
    %v3702 = vld [vmem:[%s5 + $0x270] sm:$0xff]
    %v3703 = vld [vmem:[%s5 + $0x278] sm:$0xff]
    %v3704 = vld [vmem:[%s5 + $0x280] sm:$0xff]
    %v3705 = vld [vmem:[%s5 + $0x288] sm:$0xff]
    %v3706 = vld [vmem:[%s5 + $0x290] sm:$0xff]
    %v3707 = vld [vmem:[%s5 + $0x298] sm:$0xff]
    %v3708 = vld [vmem:[%s5 + $0x2a0] sm:$0xff]
    %v3709 = vld [vmem:[%s5 + $0x2a8] sm:$0xff]
    %v3710 = vld [vmem:[%s5 + $0x2b0] sm:$0xff]
    %v3711 = vld [vmem:[%s5 + $0x2b8] sm:$0xff]
    %v3712 = vld [vmem:[%s5 + $0x2c0] sm:$0xff]
    %v3713 = vld [vmem:[%s5 + $0x2c8] sm:$0xff]
    %v3714 = vld [vmem:[%s5 + $0x2d0] sm:$0xff]
    %v3715 = vld [vmem:[%s5 + $0x2d8] sm:$0xff]
    %v3716 = vld [vmem:[%s5 + $0x2e0] sm:$0xff]
    %v3717 = vld [vmem:[%s5 + $0x2e8] sm:$0xff]
    %v3718 = vld [vmem:[%s5 + $0x2f0] sm:$0xff]
    %v3719 = vld [vmem:[%s5 + $0x2f8] sm:$0xff]
    %v3720 = vld [vmem:[%s5 + $0x300] sm:$0xff]
    %v3721 = vld [vmem:[%s5 + $0x308] sm:$0xff]
    %v3722 = vld [vmem:[%s5 + $0x310] sm:$0xff]
    %v3723 = vld [vmem:[%s5 + $0x318] sm:$0xff]
    %v3724 = vld [vmem:[%s5 + $0x320] sm:$0xff]
    %v3725 = vld [vmem:[%s5 + $0x328] sm:$0xff]
    %v3726 = vld [vmem:[%s5 + $0x330] sm:$0xff]
    %v3727 = vld [vmem:[%s5 + $0x338] sm:$0xff]
    %v3728 = vld [vmem:[%s5 + $0x340] sm:$0xff]
    %v3729 = vld [vmem:[%s5 + $0x348] sm:$0xff]
    %v3730 = vld [vmem:[%s5 + $0x350] sm:$0xff]
    %v3731 = vld [vmem:[%s5 + $0x358] sm:$0xff]
    %v3732 = vld [vmem:[%s5 + $0x360] sm:$0xff]
    %v3733 = vld [vmem:[%s5 + $0x368] sm:$0xff]
    %v3734 = vld [vmem:[%s5 + $0x370] sm:$0xff]
    %v3735 = vld [vmem:[%s5 + $0x378] sm:$0xff]
    %v3736 = vld [vmem:[%s5 + $0x380] sm:$0xff]
    %v3737 = vld [vmem:[%s5 + $0x388] sm:$0xff]
    %v3738 = vld [vmem:[%s5 + $0x390] sm:$0xff]
    %v3739 = vld [vmem:[%s5 + $0x398] sm:$0xff]
    %v3740 = vld [vmem:[%s5 + $0x3a0] sm:$0xff]
    %v3741 = vld [vmem:[%s5 + $0x3a8] sm:$0xff]
    %v3742 = vld [vmem:[%s5 + $0x3b0] sm:$0xff]
    %v3743 = vld [vmem:[%s5 + $0x3b8] sm:$0xff]
    %v3744 = vld [vmem:[%s5 + $0x3c0] sm:$0xff]
    %v3745 = vld [vmem:[%s5 + $0x3c8] sm:$0xff]
    %v3746 = vld [vmem:[%s5 + $0x3d0] sm:$0xff]
    %v3747 = vld [vmem:[%s5 + $0x3d8] sm:$0xff]
    %v3748 = vld [vmem:[%s5 + $0x3e0] sm:$0xff]
    %v3749 = vld [vmem:[%s5 + $0x3e8] sm:$0xff]
    %v3750 = vld [vmem:[%s5 + $0x3f0] sm:$0xff]
    %v3751 = vld [vmem:[%s5 + $0x3f8] sm:$0xff]
    %v3752 = vld [vmem:[%s8 + $0xc] sm:$0x3]
    %v3753 = vpack.c.bf16 %v2654, %v2650
    %v3754 = vpack.c.bf16 %v2655, %v2651
    %v3755 = vpack.c.bf16 %v2656, %v2652
    %v3756 = vpack.c.bf16 %v2657, %v2653
    %v3757 = vpack.c.bf16 %v2662, %v2658
    %v3758 = vpack.c.bf16 %v2663, %v2659
    %v3759 = vpack.c.bf16 %v2664, %v2660
    %v3760 = vpack.c.bf16 %v2665, %v2661
    %v3761 = vpack.c.bf16 %v2670, %v2666
    %v3762 = vpack.c.bf16 %v2671, %v2667
    %v3763 = vpack.c.bf16 %v2672, %v2668
    %v3764 = vpack.c.bf16 %v2673, %v2669
    %v3765 = vpack.c.bf16 %v2678, %v2674
    %v3766 = vpack.c.bf16 %v2679, %v2675
    %v3767 = vpack.c.bf16 %v2680, %v2676
    %v3768 = vpack.c.bf16 %v2681, %v2677
    %v3769 = vpack.c.bf16 %v2686, %v2682
    %v3770 = vpack.c.bf16 %v2687, %v2683
    %v3771 = vpack.c.bf16 %v2688, %v2684
    %v3772 = vpack.c.bf16 %v2689, %v2685
    %v3773 = vpack.c.bf16 %v2694, %v2690
    %v3774 = vpack.c.bf16 %v2695, %v2691
    %v3775 = vpack.c.bf16 %v2696, %v2692
    %v3776 = vpack.c.bf16 %v2697, %v2693
    %v3777 = vpack.c.bf16 %v2702, %v2698
    %v3778 = vpack.c.bf16 %v2703, %v2699
    %v3779 = vpack.c.bf16 %v2704, %v2700
    %v3780 = vpack.c.bf16 %v2705, %v2701
    %v3781 = vpack.c.bf16 %v2710, %v2706
    %v3782 = vpack.c.bf16 %v2711, %v2707
    %v3783 = vpack.c.bf16 %v2712, %v2708
    %v3784 = vpack.c.bf16 %v2713, %v2709
    %v3785 = vpack.c.bf16 %v2718, %v2714
    %v3786 = vpack.c.bf16 %v2719, %v2715
    %v3787 = vpack.c.bf16 %v2720, %v2716
    %v3788 = vpack.c.bf16 %v2721, %v2717
    %v3789 = vpack.c.bf16 %v2726, %v2722
    %v3790 = vpack.c.bf16 %v2727, %v2723
    %v3791 = vpack.c.bf16 %v2728, %v2724
    %v3792 = vpack.c.bf16 %v2729, %v2725
    %v3793 = vpack.c.bf16 %v2734, %v2730
    %v3794 = vpack.c.bf16 %v2735, %v2731
    %v3795 = vpack.c.bf16 %v2736, %v2732
    %v3796 = vpack.c.bf16 %v2737, %v2733
    %v3797 = vpack.c.bf16 %v2742, %v2738
    %v3798 = vpack.c.bf16 %v2743, %v2739
    %v3799 = vpack.c.bf16 %v2744, %v2740
    %v3800 = vpack.c.bf16 %v2745, %v2741
    %v3801 = vpack.c.bf16 %v2750, %v2746
    %v3802 = vpack.c.bf16 %v2751, %v2747
    %v3803 = vpack.c.bf16 %v2752, %v2748
    %v3804 = vpack.c.bf16 %v2753, %v2749
    %v3805 = vpack.c.bf16 %v2758, %v2754
    %v3806 = vpack.c.bf16 %v2759, %v2755
    %v3807 = vpack.c.bf16 %v2760, %v2756
    %v3808 = vpack.c.bf16 %v2761, %v2757
    %v3809 = vpack.c.bf16 %v2766, %v2762
    %v3810 = vpack.c.bf16 %v2767, %v2763
    %v3811 = vpack.c.bf16 %v2768, %v2764
    %v3812 = vpack.c.bf16 %v2769, %v2765
    %v3813 = vpack.c.bf16 %v2774, %v2770
    %v3814 = vpack.c.bf16 %v2775, %v2771
    %v3815 = vpack.c.bf16 %v2776, %v2772
    %v3816 = vpack.c.bf16 %v2777, %v2773
    %v3818 = vlaneseq
    %v3819 = vshrl.u32 %v3818, 7
    %v3820 = vsub.s32 0, %v3819
    %v3821 = vrot.slane %v3752, %v3820
    %v3822 = vlaneseq
    %v3823 = vshrl.u32 %v3822, 7
    %v3824 = vsub.s32 1, %v3823
    %v3825 = vrot.slane %v3752, %v3824
    %v3892 = vunpack.c.l.b16 %v3688
    %v3893 = vunpack.c.h.b16 %v3688
    %v3894 = vunpack.c.l.b16 %v3689
    %v3895 = vunpack.c.h.b16 %v3689
    %v3896 = vunpack.c.l.b16 %v3690
    %v3897 = vunpack.c.h.b16 %v3690
    %v3898 = vunpack.c.l.b16 %v3691
    %v3899 = vunpack.c.h.b16 %v3691
    %v3900 = vunpack.c.l.b16 %v3692
    %v3901 = vunpack.c.h.b16 %v3692
    %v3902 = vunpack.c.l.b16 %v3693
    %v3903 = vunpack.c.h.b16 %v3693
    %v3904 = vunpack.c.l.b16 %v3694
    %v3905 = vunpack.c.h.b16 %v3694
    %v3906 = vunpack.c.l.b16 %v3695
    %v3907 = vunpack.c.h.b16 %v3695
    %v3908 = vunpack.c.l.b16 %v3696
    %v3909 = vunpack.c.h.b16 %v3696
    %v3910 = vunpack.c.l.b16 %v3697
    %v3911 = vunpack.c.h.b16 %v3697
    %v3912 = vunpack.c.l.b16 %v3698
    %v3913 = vunpack.c.h.b16 %v3698
    %v3914 = vunpack.c.l.b16 %v3699
    %v3915 = vunpack.c.h.b16 %v3699
    %v3916 = vunpack.c.l.b16 %v3700
    %v3917 = vunpack.c.h.b16 %v3700
    %v3918 = vunpack.c.l.b16 %v3701
    %v3919 = vunpack.c.h.b16 %v3701
    %v3920 = vunpack.c.l.b16 %v3702
    %v3921 = vunpack.c.h.b16 %v3702
    %v3922 = vunpack.c.l.b16 %v3703
    %v3923 = vunpack.c.h.b16 %v3703
    %v3924 = vunpack.c.l.b16 %v3704
    %v3925 = vunpack.c.h.b16 %v3704
    %v3926 = vunpack.c.l.b16 %v3705
    %v3927 = vunpack.c.h.b16 %v3705
    %v3928 = vunpack.c.l.b16 %v3706
    %v3929 = vunpack.c.h.b16 %v3706
    %v3930 = vunpack.c.l.b16 %v3707
    %v3931 = vunpack.c.h.b16 %v3707
    %v3932 = vunpack.c.l.b16 %v3708
    %v3933 = vunpack.c.h.b16 %v3708
    %v3934 = vunpack.c.l.b16 %v3709
    %v3935 = vunpack.c.h.b16 %v3709
    %v3936 = vunpack.c.l.b16 %v3710
    %v3937 = vunpack.c.h.b16 %v3710
    %v3938 = vunpack.c.l.b16 %v3711
    %v3939 = vunpack.c.h.b16 %v3711
    %v3940 = vunpack.c.l.b16 %v3712
    %v3941 = vunpack.c.h.b16 %v3712
    %v3942 = vunpack.c.l.b16 %v3713
    %v3943 = vunpack.c.h.b16 %v3713
    %v3944 = vunpack.c.l.b16 %v3714
    %v3945 = vunpack.c.h.b16 %v3714
    %v3946 = vunpack.c.l.b16 %v3715
    %v3947 = vunpack.c.h.b16 %v3715
    %v3948 = vunpack.c.l.b16 %v3716
    %v3949 = vunpack.c.h.b16 %v3716
    %v3950 = vunpack.c.l.b16 %v3717
    %v3951 = vunpack.c.h.b16 %v3717
    %v3952 = vunpack.c.l.b16 %v3718
    %v3953 = vunpack.c.h.b16 %v3718
    %v3954 = vunpack.c.l.b16 %v3719
    %v3955 = vunpack.c.h.b16 %v3719
    %v3956 = vunpack.c.l.b16 %v3720
    %v3957 = vunpack.c.h.b16 %v3720
    %v3958 = vunpack.c.l.b16 %v3721
    %v3959 = vunpack.c.h.b16 %v3721
    %v3960 = vunpack.c.l.b16 %v3722
    %v3961 = vunpack.c.h.b16 %v3722
    %v3962 = vunpack.c.l.b16 %v3723
    %v3963 = vunpack.c.h.b16 %v3723
    %v3964 = vunpack.c.l.b16 %v3724
    %v3965 = vunpack.c.h.b16 %v3724
    %v3966 = vunpack.c.l.b16 %v3725
    %v3967 = vunpack.c.h.b16 %v3725
    %v3968 = vunpack.c.l.b16 %v3726
    %v3969 = vunpack.c.h.b16 %v3726
    %v3970 = vunpack.c.l.b16 %v3727
    %v3971 = vunpack.c.h.b16 %v3727
    %v3972 = vunpack.c.l.b16 %v3728
    %v3973 = vunpack.c.h.b16 %v3728
    %v3974 = vunpack.c.l.b16 %v3729
    %v3975 = vunpack.c.h.b16 %v3729
    %v3976 = vunpack.c.l.b16 %v3730
    %v3977 = vunpack.c.h.b16 %v3730
    %v3978 = vunpack.c.l.b16 %v3731
    %v3979 = vunpack.c.h.b16 %v3731
    %v3980 = vunpack.c.l.b16 %v3732
    %v3981 = vunpack.c.h.b16 %v3732
    %v3982 = vunpack.c.l.b16 %v3733
    %v3983 = vunpack.c.h.b16 %v3733
    %v3984 = vunpack.c.l.b16 %v3734
    %v3985 = vunpack.c.h.b16 %v3734
    %v3986 = vunpack.c.l.b16 %v3735
    %v3987 = vunpack.c.h.b16 %v3735
    %v3988 = vunpack.c.l.b16 %v3736
    %v3989 = vunpack.c.h.b16 %v3736
    %v3990 = vunpack.c.l.b16 %v3737
    %v3991 = vunpack.c.h.b16 %v3737
    %v3992 = vunpack.c.l.b16 %v3738
    %v3993 = vunpack.c.h.b16 %v3738
    %v3994 = vunpack.c.l.b16 %v3739
    %v3995 = vunpack.c.h.b16 %v3739
    %v3996 = vunpack.c.l.b16 %v3740
    %v3997 = vunpack.c.h.b16 %v3740
    %v3998 = vunpack.c.l.b16 %v3741
    %v3999 = vunpack.c.h.b16 %v3741
    %v4000 = vunpack.c.l.b16 %v3742
    %v4001 = vunpack.c.h.b16 %v3742
    %v4002 = vunpack.c.l.b16 %v3743
    %v4003 = vunpack.c.h.b16 %v3743
    %v4004 = vunpack.c.l.b16 %v3744
    %v4005 = vunpack.c.h.b16 %v3744
    %v4006 = vunpack.c.l.b16 %v3745
    %v4007 = vunpack.c.h.b16 %v3745
    %v4008 = vunpack.c.l.b16 %v3746
    %v4009 = vunpack.c.h.b16 %v3746
    %v4010 = vunpack.c.l.b16 %v3747
    %v4011 = vunpack.c.h.b16 %v3747
    %v4012 = vunpack.c.l.b16 %v3748
    %v4013 = vunpack.c.h.b16 %v3748
    %v4014 = vunpack.c.l.b16 %v3749
    %v4015 = vunpack.c.h.b16 %v3749
    %v4016 = vunpack.c.l.b16 %v3750
    %v4017 = vunpack.c.h.b16 %v3750
    %v4018 = vunpack.c.l.b16 %v3751
    %v4019 = vunpack.c.h.b16 %v3751
    %v4020 = vpack.c.b16 %v3894, %v3892
    %v4021 = vpack.c.b16 %v3895, %v3893
    %v4022 = vpack.c.b16 %v3898, %v3896
    %v4023 = vpack.c.b16 %v3899, %v3897
    %v4024 = vpack.c.b16 %v3902, %v3900
    %v4025 = vpack.c.b16 %v3903, %v3901
    %v4026 = vpack.c.b16 %v3906, %v3904
    %v4027 = vpack.c.b16 %v3907, %v3905
    %v4028 = vpack.c.b16 %v3910, %v3908
    %v4029 = vpack.c.b16 %v3911, %v3909
    %v4030 = vpack.c.b16 %v3914, %v3912
    %v4031 = vpack.c.b16 %v3915, %v3913
    %v4032 = vpack.c.b16 %v3918, %v3916
    %v4033 = vpack.c.b16 %v3919, %v3917
    %v4034 = vpack.c.b16 %v3922, %v3920
    %v4035 = vpack.c.b16 %v3923, %v3921
    %v4036 = vpack.c.b16 %v3926, %v3924
    %v4037 = vpack.c.b16 %v3927, %v3925
    %v4038 = vpack.c.b16 %v3930, %v3928
    %v4039 = vpack.c.b16 %v3931, %v3929
    %v4040 = vpack.c.b16 %v3934, %v3932
    %v4041 = vpack.c.b16 %v3935, %v3933
    %v4042 = vpack.c.b16 %v3938, %v3936
    %v4043 = vpack.c.b16 %v3939, %v3937
    %v4044 = vpack.c.b16 %v3942, %v3940
    %v4045 = vpack.c.b16 %v3943, %v3941
    %v4046 = vpack.c.b16 %v3946, %v3944
    %v4047 = vpack.c.b16 %v3947, %v3945
    %v4048 = vpack.c.b16 %v3950, %v3948
    %v4049 = vpack.c.b16 %v3951, %v3949
    %v4050 = vpack.c.b16 %v3954, %v3952
    %v4051 = vpack.c.b16 %v3955, %v3953
    %v4052 = vpack.c.b16 %v3958, %v3956
    %v4053 = vpack.c.b16 %v3959, %v3957
    %v4054 = vpack.c.b16 %v3962, %v3960
    %v4055 = vpack.c.b16 %v3963, %v3961
    %v4056 = vpack.c.b16 %v3966, %v3964
    %v4057 = vpack.c.b16 %v3967, %v3965
    %v4058 = vpack.c.b16 %v3970, %v3968
    %v4059 = vpack.c.b16 %v3971, %v3969
    %v4060 = vpack.c.b16 %v3974, %v3972
    %v4061 = vpack.c.b16 %v3975, %v3973
    %v4062 = vpack.c.b16 %v3978, %v3976
    %v4063 = vpack.c.b16 %v3979, %v3977
    %v4064 = vpack.c.b16 %v3982, %v3980
    %v4065 = vpack.c.b16 %v3983, %v3981
    %v4066 = vpack.c.b16 %v3986, %v3984
    %v4067 = vpack.c.b16 %v3987, %v3985
    %v4068 = vpack.c.b16 %v3990, %v3988
    %v4069 = vpack.c.b16 %v3991, %v3989
    %v4070 = vpack.c.b16 %v3994, %v3992
    %v4071 = vpack.c.b16 %v3995, %v3993
    %v4072 = vpack.c.b16 %v3998, %v3996
    %v4073 = vpack.c.b16 %v3999, %v3997
    %v4074 = vpack.c.b16 %v4002, %v4000
    %v4075 = vpack.c.b16 %v4003, %v4001
    %v4076 = vpack.c.b16 %v4006, %v4004
    %v4077 = vpack.c.b16 %v4007, %v4005
    %v4078 = vpack.c.b16 %v4010, %v4008
    %v4079 = vpack.c.b16 %v4011, %v4009
    %v4080 = vpack.c.b16 %v4014, %v4012
    %v4081 = vpack.c.b16 %v4015, %v4013
    %v4082 = vpack.c.b16 %v4018, %v4016
    %v4083 = vpack.c.b16 %v4019, %v4017
    %4148 = vmatprep.subr.bf16.mxu0 %v4035
    %4149 = vmatpush1.bf16.msra.mxu0 %v4034
    %4150 = vmatprep.subr.bf16.mxu0 %v4033
    %4151 = vmatpush1.bf16.msra.mxu0 %v4032
    %4152 = vmatprep.subr.bf16.mxu0 %v4031
    %4153 = vmatpush1.bf16.msra.mxu0 %v4030
    %4154 = vmatprep.subr.bf16.mxu0 %v4029
    %4155 = vmatpush1.bf16.msra.mxu0 %v4028
    %4156 = vmatprep.subr.bf16.mxu0 %v4027
    %4157 = vmatpush1.bf16.msra.mxu0 %v4026
    %4158 = vmatprep.subr.bf16.mxu0 %v4025
    %4159 = vmatpush1.bf16.msra.mxu0 %v4024
    %4160 = vmatprep.subr.bf16.mxu0 %v4023
    %4161 = vmatpush1.bf16.msra.mxu0 %v4022
    %4162 = vmatprep.subr.bf16.mxu0 %v4021
    %4163 = vmatpush1.bf16.msra.mxu0 %v4020
    %4164 = vmatprep.subr.bf16.mxu0 %v4051
    %4165 = vmatpush2.bf16.msra.mxu0 %v4050
    %4166 = vmatprep.subr.bf16.mxu0 %v4049
    %4167 = vmatpush2.bf16.msra.mxu0 %v4048
    %4168 = vmatprep.subr.bf16.mxu0 %v4047
    %4169 = vmatpush2.bf16.msra.mxu0 %v4046
    %4170 = vmatprep.subr.bf16.mxu0 %v4045
    %4171 = vmatpush2.bf16.msra.mxu0 %v4044
    %4172 = vmatprep.subr.bf16.mxu0 %v4043
    %4173 = vmatpush2.bf16.msra.mxu0 %v4042
    %4174 = vmatprep.subr.bf16.mxu0 %v4041
    %4175 = vmatpush2.bf16.msra.mxu0 %v4040
    %4176 = vmatprep.subr.bf16.mxu0 %v4039
    %4177 = vmatpush2.bf16.msra.mxu0 %v4038
    %4178 = vmatprep.subr.bf16.mxu0 %v4037
    %4179 = vmatpush2.bf16.msra.mxu0 %v4036
    %4180 = vmatprep.mubr.bf16.mxu0 %v3754
    %4181 = vmatmul.mubr.bf16.gmra.mxu0 %v3753
    %v4182 = vpop.f32.mrf.mxu0
    %v4183 = vadd.f32 %v3821, %v4182
    %v4184 = vpop.f32.mrf.mxu0
    %v4185 = vadd.f32 %v3825, %v4184
    %v4186 = vpop.f32.mrf.mxu0
    %v4187 = vadd.f32 %v3821, %v4186
    %v4188 = vpop.f32.mrf.mxu0
    %v4189 = vadd.f32 %v3825, %v4188
    %4190 = vmatprep.mubr.bf16.mxu0 %v3758
    %4191 = vmatmul.mubr.bf16.gmra.mxu0 %v3757
    %v4192 = vpop.f32.mrf.mxu0
    %v4193 = vadd.f32 %v3821, %v4192
    %v4194 = vpop.f32.mrf.mxu0
    %v4195 = vadd.f32 %v3825, %v4194
    %v4196 = vpop.f32.mrf.mxu0
    %v4197 = vadd.f32 %v3821, %v4196
    %v4198 = vpop.f32.mrf.mxu0
    %v4199 = vadd.f32 %v3825, %v4198
    %4200 = vmatprep.mubr.bf16.mxu0 %v3762
    %4201 = vmatmul.mubr.bf16.gmra.mxu0 %v3761
    %v4202 = vpop.f32.mrf.mxu0
    %v4203 = vadd.f32 %v3821, %v4202
    %v4204 = vpop.f32.mrf.mxu0
    %v4205 = vadd.f32 %v3825, %v4204
    %v4206 = vpop.f32.mrf.mxu0
    %v4207 = vadd.f32 %v3821, %v4206
    %v4208 = vpop.f32.mrf.mxu0
    %v4209 = vadd.f32 %v3825, %v4208
    %4210 = vmatprep.mubr.bf16.mxu0 %v3766
    %4211 = vmatmul.mubr.bf16.gmra.mxu0 %v3765
    %v4212 = vpop.f32.mrf.mxu0
    %v4213 = vadd.f32 %v3821, %v4212
    %v4214 = vpop.f32.mrf.mxu0
    %v4215 = vadd.f32 %v3825, %v4214
    %v4216 = vpop.f32.mrf.mxu0
    %v4217 = vadd.f32 %v3821, %v4216
    %v4218 = vpop.f32.mrf.mxu0
    %v4219 = vadd.f32 %v3825, %v4218
    %4220 = vmatprep.mubr.bf16.mxu0 %v3770
    %4221 = vmatmul.mubr.bf16.gmra.mxu0 %v3769
    %v4222 = vpop.f32.mrf.mxu0
    %v4223 = vadd.f32 %v3821, %v4222
    %v4224 = vpop.f32.mrf.mxu0
    %v4225 = vadd.f32 %v3825, %v4224
    %v4226 = vpop.f32.mrf.mxu0
    %v4227 = vadd.f32 %v3821, %v4226
    %v4228 = vpop.f32.mrf.mxu0
    %v4229 = vadd.f32 %v3825, %v4228
    %4230 = vmatprep.mubr.bf16.mxu0 %v3774
    %4231 = vmatmul.mubr.bf16.gmra.mxu0 %v3773
    %v4232 = vpop.f32.mrf.mxu0
    %v4233 = vadd.f32 %v3821, %v4232
    %v4234 = vpop.f32.mrf.mxu0
    %v4235 = vadd.f32 %v3825, %v4234
    %v4236 = vpop.f32.mrf.mxu0
    %v4237 = vadd.f32 %v3821, %v4236
    %v4238 = vpop.f32.mrf.mxu0
    %v4239 = vadd.f32 %v3825, %v4238
    %4240 = vmatprep.mubr.bf16.mxu0 %v3778
    %4241 = vmatmul.mubr.bf16.gmra.mxu0 %v3777
    %v4242 = vpop.f32.mrf.mxu0
    %v4243 = vadd.f32 %v3821, %v4242
    %v4244 = vpop.f32.mrf.mxu0
    %v4245 = vadd.f32 %v3825, %v4244
    %v4246 = vpop.f32.mrf.mxu0
    %v4247 = vadd.f32 %v3821, %v4246
    %v4248 = vpop.f32.mrf.mxu0
    %v4249 = vadd.f32 %v3825, %v4248
    %4250 = vmatprep.mubr.bf16.mxu0 %v3782
    %4251 = vmatmul.mubr.bf16.gmra.mxu0 %v3781
    %v4252 = vpop.f32.mrf.mxu0
    %v4253 = vadd.f32 %v3821, %v4252
    %v4254 = vpop.f32.mrf.mxu0
    %v4255 = vadd.f32 %v3825, %v4254
    %v4256 = vpop.f32.mrf.mxu0
    %v4257 = vadd.f32 %v3821, %v4256
    %v4258 = vpop.f32.mrf.mxu0
    %v4259 = vadd.f32 %v3825, %v4258
    %4260 = vmatprep.mubr.bf16.mxu0 %v3786
    %4261 = vmatmul.mubr.bf16.gmra.mxu0 %v3785
    %v4262 = vpop.f32.mrf.mxu0
    %v4263 = vadd.f32 %v3821, %v4262
    %v4264 = vpop.f32.mrf.mxu0
    %v4265 = vadd.f32 %v3825, %v4264
    %v4266 = vpop.f32.mrf.mxu0
    %v4267 = vadd.f32 %v3821, %v4266
    %v4268 = vpop.f32.mrf.mxu0
    %v4269 = vadd.f32 %v3825, %v4268
    %4270 = vmatprep.mubr.bf16.mxu0 %v3790
    %4271 = vmatmul.mubr.bf16.gmra.mxu0 %v3789
    %v4272 = vpop.f32.mrf.mxu0
    %v4273 = vadd.f32 %v3821, %v4272
    %v4274 = vpop.f32.mrf.mxu0
    %v4275 = vadd.f32 %v3825, %v4274
    %v4276 = vpop.f32.mrf.mxu0
    %v4277 = vadd.f32 %v3821, %v4276
    %v4278 = vpop.f32.mrf.mxu0
    %v4279 = vadd.f32 %v3825, %v4278
    %4280 = vmatprep.mubr.bf16.mxu0 %v3794
    %4281 = vmatmul.mubr.bf16.gmra.mxu0 %v3793
    %v4282 = vpop.f32.mrf.mxu0
    %v4283 = vadd.f32 %v3821, %v4282
    %v4284 = vpop.f32.mrf.mxu0
    %v4285 = vadd.f32 %v3825, %v4284
    %v4286 = vpop.f32.mrf.mxu0
    %v4287 = vadd.f32 %v3821, %v4286
    %v4288 = vpop.f32.mrf.mxu0
    %v4289 = vadd.f32 %v3825, %v4288
    %4290 = vmatprep.mubr.bf16.mxu0 %v3798
    %4291 = vmatmul.mubr.bf16.gmra.mxu0 %v3797
    %v4292 = vpop.f32.mrf.mxu0
    %v4293 = vadd.f32 %v3821, %v4292
    %v4294 = vpop.f32.mrf.mxu0
    %v4295 = vadd.f32 %v3825, %v4294
    %v4296 = vpop.f32.mrf.mxu0
    %v4297 = vadd.f32 %v3821, %v4296
    %v4298 = vpop.f32.mrf.mxu0
    %v4299 = vadd.f32 %v3825, %v4298
    %4300 = vmatprep.mubr.bf16.mxu0 %v3802
    %4301 = vmatmul.mubr.bf16.gmra.mxu0 %v3801
    %v4302 = vpop.f32.mrf.mxu0
    %v4303 = vadd.f32 %v3821, %v4302
    %v4304 = vpop.f32.mrf.mxu0
    %v4305 = vadd.f32 %v3825, %v4304
    %v4306 = vpop.f32.mrf.mxu0
    %v4307 = vadd.f32 %v3821, %v4306
    %v4308 = vpop.f32.mrf.mxu0
    %v4309 = vadd.f32 %v3825, %v4308
    %4310 = vmatprep.mubr.bf16.mxu0 %v3806
    %4311 = vmatmul.mubr.bf16.gmra.mxu0 %v3805
    %v4312 = vpop.f32.mrf.mxu0
    %v4313 = vadd.f32 %v3821, %v4312
    %v4314 = vpop.f32.mrf.mxu0
    %v4315 = vadd.f32 %v3825, %v4314
    %v4316 = vpop.f32.mrf.mxu0
    %v4317 = vadd.f32 %v3821, %v4316
    %v4318 = vpop.f32.mrf.mxu0
    %v4319 = vadd.f32 %v3825, %v4318
    %4320 = vmatprep.mubr.bf16.mxu0 %v3810
    %4321 = vmatmul.mubr.bf16.gmra.mxu0 %v3809
    %v4322 = vpop.f32.mrf.mxu0
    %v4323 = vadd.f32 %v3821, %v4322
    %v4324 = vpop.f32.mrf.mxu0
    %v4325 = vadd.f32 %v3825, %v4324
    %v4326 = vpop.f32.mrf.mxu0
    %v4327 = vadd.f32 %v3821, %v4326
    %v4328 = vpop.f32.mrf.mxu0
    %v4329 = vadd.f32 %v3825, %v4328
    %4330 = vmatprep.mubr.bf16.mxu0 %v3814
    %4331 = vmatmul.mubr.bf16.gmra.mxu0 %v3813
    %v4332 = vpop.f32.mrf.mxu0
    %v4333 = vadd.f32 %v3821, %v4332
    %v4334 = vpop.f32.mrf.mxu0
    %v4335 = vadd.f32 %v3825, %v4334
    %v4336 = vpop.f32.mrf.mxu0
    %v4337 = vadd.f32 %v3821, %v4336
    %v4338 = vpop.f32.mrf.mxu0
    %v4339 = vadd.f32 %v3825, %v4338
    %4340 = vdwg.mxu0
    %4341 = vmatprep.subr.bf16.mxu0 %v4067
    %4342 = vmatpush1.bf16.msra.mxu0 %v4066
    %4343 = vmatprep.subr.bf16.mxu0 %v4065
    %4344 = vmatpush1.bf16.msra.mxu0 %v4064
    %4345 = vmatprep.subr.bf16.mxu0 %v4063
    %4346 = vmatpush1.bf16.msra.mxu0 %v4062
    %4347 = vmatprep.subr.bf16.mxu0 %v4061
    %4348 = vmatpush1.bf16.msra.mxu0 %v4060
    %4349 = vmatprep.subr.bf16.mxu0 %v4059
    %4350 = vmatpush1.bf16.msra.mxu0 %v4058
    %4351 = vmatprep.subr.bf16.mxu0 %v4057
    %4352 = vmatpush1.bf16.msra.mxu0 %v4056
    %4353 = vmatprep.subr.bf16.mxu0 %v4055
    %4354 = vmatpush1.bf16.msra.mxu0 %v4054
    %4355 = vmatprep.subr.bf16.mxu0 %v4053
    %4356 = vmatpush1.bf16.msra.mxu0 %v4052
    %4357 = vmatprep.subr.bf16.mxu0 %v4083
    %4358 = vmatpush2.bf16.msra.mxu0 %v4082
    %4359 = vmatprep.subr.bf16.mxu0 %v4081
    %4360 = vmatpush2.bf16.msra.mxu0 %v4080
    %4361 = vmatprep.subr.bf16.mxu0 %v4079
    %4362 = vmatpush2.bf16.msra.mxu0 %v4078
    %4363 = vmatprep.subr.bf16.mxu0 %v4077
    %4364 = vmatpush2.bf16.msra.mxu0 %v4076
    %4365 = vmatprep.subr.bf16.mxu0 %v4075
    %4366 = vmatpush2.bf16.msra.mxu0 %v4074
    %4367 = vmatprep.subr.bf16.mxu0 %v4073
    %4368 = vmatpush2.bf16.msra.mxu0 %v4072
    %4369 = vmatprep.subr.bf16.mxu0 %v4071
    %4370 = vmatpush2.bf16.msra.mxu0 %v4070
    %4371 = vmatprep.subr.bf16.mxu0 %v4069
    %4372 = vmatpush2.bf16.msra.mxu0 %v4068
    %4373 = vmatprep.mubr.bf16.mxu0 %v3756
    %4374 = vmatmul.mubr.bf16.gmra.mxu0 %v3755
    %v4375 = vpop.f32.mrf.mxu0
    %v4376 = vadd.f32 %v4183, %v4375
    %v4377 = vpop.f32.mrf.mxu0
    %v4378 = vadd.f32 %v4185, %v4377
    %v4379 = vpop.f32.mrf.mxu0
    %v4380 = vadd.f32 %v4187, %v4379
    %v4381 = vpop.f32.mrf.mxu0
    %v4382 = vadd.f32 %v4189, %v4381
    %4383 = vmatprep.mubr.bf16.mxu0 %v3760
    %4384 = vmatmul.mubr.bf16.gmra.mxu0 %v3759
    %v4385 = vpop.f32.mrf.mxu0
    %v4386 = vadd.f32 %v4193, %v4385
    %v4387 = vpop.f32.mrf.mxu0
    %v4388 = vadd.f32 %v4195, %v4387
    %v4389 = vpop.f32.mrf.mxu0
    %v4390 = vadd.f32 %v4197, %v4389
    %v4391 = vpop.f32.mrf.mxu0
    %v4392 = vadd.f32 %v4199, %v4391
    %4393 = vmatprep.mubr.bf16.mxu0 %v3764
    %4394 = vmatmul.mubr.bf16.gmra.mxu0 %v3763
    %v4395 = vpop.f32.mrf.mxu0
    %v4396 = vadd.f32 %v4203, %v4395
    %v4397 = vpop.f32.mrf.mxu0
    %v4398 = vadd.f32 %v4205, %v4397
    %v4399 = vpop.f32.mrf.mxu0
    %v4400 = vadd.f32 %v4207, %v4399
    %v4401 = vpop.f32.mrf.mxu0
    %v4402 = vadd.f32 %v4209, %v4401
    %4403 = vmatprep.mubr.bf16.mxu0 %v3768
    %4404 = vmatmul.mubr.bf16.gmra.mxu0 %v3767
    %v4405 = vpop.f32.mrf.mxu0
    %v4406 = vadd.f32 %v4213, %v4405
    %v4407 = vpop.f32.mrf.mxu0
    %v4408 = vadd.f32 %v4215, %v4407
    %v4409 = vpop.f32.mrf.mxu0
    %v4410 = vadd.f32 %v4217, %v4409
    %v4411 = vpop.f32.mrf.mxu0
    %v4412 = vadd.f32 %v4219, %v4411
    %4413 = vmatprep.mubr.bf16.mxu0 %v3772
    %4414 = vmatmul.mubr.bf16.gmra.mxu0 %v3771
    %v4415 = vpop.f32.mrf.mxu0
    %v4416 = vadd.f32 %v4223, %v4415
    %v4417 = vpop.f32.mrf.mxu0
    %v4418 = vadd.f32 %v4225, %v4417
    %v4419 = vpop.f32.mrf.mxu0
    %v4420 = vadd.f32 %v4227, %v4419
    %v4421 = vpop.f32.mrf.mxu0
    %v4422 = vadd.f32 %v4229, %v4421
    %4423 = vmatprep.mubr.bf16.mxu0 %v3776
    %4424 = vmatmul.mubr.bf16.gmra.mxu0 %v3775
    %v4425 = vpop.f32.mrf.mxu0
    %v4426 = vadd.f32 %v4233, %v4425
    %v4427 = vpop.f32.mrf.mxu0
    %v4428 = vadd.f32 %v4235, %v4427
    %v4429 = vpop.f32.mrf.mxu0
    %v4430 = vadd.f32 %v4237, %v4429
    %v4431 = vpop.f32.mrf.mxu0
    %v4432 = vadd.f32 %v4239, %v4431
    %4433 = vmatprep.mubr.bf16.mxu0 %v3780
    %4434 = vmatmul.mubr.bf16.gmra.mxu0 %v3779
    %v4435 = vpop.f32.mrf.mxu0
    %v4436 = vadd.f32 %v4243, %v4435
    %v4437 = vpop.f32.mrf.mxu0
    %v4438 = vadd.f32 %v4245, %v4437
    %v4439 = vpop.f32.mrf.mxu0
    %v4440 = vadd.f32 %v4247, %v4439
    %v4441 = vpop.f32.mrf.mxu0
    %v4442 = vadd.f32 %v4249, %v4441
    %4443 = vmatprep.mubr.bf16.mxu0 %v3784
    %4444 = vmatmul.mubr.bf16.gmra.mxu0 %v3783
    %v4445 = vpop.f32.mrf.mxu0
    %v4446 = vadd.f32 %v4253, %v4445
    %v4447 = vpop.f32.mrf.mxu0
    %v4448 = vadd.f32 %v4255, %v4447
    %v4449 = vpop.f32.mrf.mxu0
    %v4450 = vadd.f32 %v4257, %v4449
    %v4451 = vpop.f32.mrf.mxu0
    %v4452 = vadd.f32 %v4259, %v4451
    %4453 = vmatprep.mubr.bf16.mxu0 %v3788
    %4454 = vmatmul.mubr.bf16.gmra.mxu0 %v3787
    %v4455 = vpop.f32.mrf.mxu0
    %v4456 = vadd.f32 %v4263, %v4455
    %v4457 = vpop.f32.mrf.mxu0
    %v4458 = vadd.f32 %v4265, %v4457
    %v4459 = vpop.f32.mrf.mxu0
    %v4460 = vadd.f32 %v4267, %v4459
    %v4461 = vpop.f32.mrf.mxu0
    %v4462 = vadd.f32 %v4269, %v4461
    %4463 = vmatprep.mubr.bf16.mxu0 %v3792
    %4464 = vmatmul.mubr.bf16.gmra.mxu0 %v3791
    %v4465 = vpop.f32.mrf.mxu0
    %v4466 = vadd.f32 %v4273, %v4465
    %v4467 = vpop.f32.mrf.mxu0
    %v4468 = vadd.f32 %v4275, %v4467
    %v4469 = vpop.f32.mrf.mxu0
    %v4470 = vadd.f32 %v4277, %v4469
    %v4471 = vpop.f32.mrf.mxu0
    %v4472 = vadd.f32 %v4279, %v4471
    %4473 = vmatprep.mubr.bf16.mxu0 %v3796
    %4474 = vmatmul.mubr.bf16.gmra.mxu0 %v3795
    %v4475 = vpop.f32.mrf.mxu0
    %v4476 = vadd.f32 %v4283, %v4475
    %v4477 = vpop.f32.mrf.mxu0
    %v4478 = vadd.f32 %v4285, %v4477
    %v4479 = vpop.f32.mrf.mxu0
    %v4480 = vadd.f32 %v4287, %v4479
    %v4481 = vpop.f32.mrf.mxu0
    %v4482 = vadd.f32 %v4289, %v4481
    %4483 = vmatprep.mubr.bf16.mxu0 %v3800
    %4484 = vmatmul.mubr.bf16.gmra.mxu0 %v3799
    %v4485 = vpop.f32.mrf.mxu0
    %v4486 = vadd.f32 %v4293, %v4485
    %v4487 = vpop.f32.mrf.mxu0
    %v4488 = vadd.f32 %v4295, %v4487
    %v4489 = vpop.f32.mrf.mxu0
    %v4490 = vadd.f32 %v4297, %v4489
    %v4491 = vpop.f32.mrf.mxu0
    %v4492 = vadd.f32 %v4299, %v4491
    %4493 = vmatprep.mubr.bf16.mxu0 %v3804
    %4494 = vmatmul.mubr.bf16.gmra.mxu0 %v3803
    %v4495 = vpop.f32.mrf.mxu0
    %v4496 = vadd.f32 %v4303, %v4495
    %v4497 = vpop.f32.mrf.mxu0
    %v4498 = vadd.f32 %v4305, %v4497
    %v4499 = vpop.f32.mrf.mxu0
    %v4500 = vadd.f32 %v4307, %v4499
    %v4501 = vpop.f32.mrf.mxu0
    %v4502 = vadd.f32 %v4309, %v4501
    %4503 = vmatprep.mubr.bf16.mxu0 %v3808
    %4504 = vmatmul.mubr.bf16.gmra.mxu0 %v3807
    %v4505 = vpop.f32.mrf.mxu0
    %v4506 = vadd.f32 %v4313, %v4505
    %v4507 = vpop.f32.mrf.mxu0
    %v4508 = vadd.f32 %v4315, %v4507
    %v4509 = vpop.f32.mrf.mxu0
    %v4510 = vadd.f32 %v4317, %v4509
    %v4511 = vpop.f32.mrf.mxu0
    %v4512 = vadd.f32 %v4319, %v4511
    %4513 = vmatprep.mubr.bf16.mxu0 %v3812
    %4514 = vmatmul.mubr.bf16.gmra.mxu0 %v3811
    %v4515 = vpop.f32.mrf.mxu0
    %v4516 = vadd.f32 %v4323, %v4515
    %v4517 = vpop.f32.mrf.mxu0
    %v4518 = vadd.f32 %v4325, %v4517
    %v4519 = vpop.f32.mrf.mxu0
    %v4520 = vadd.f32 %v4327, %v4519
    %v4521 = vpop.f32.mrf.mxu0
    %v4522 = vadd.f32 %v4329, %v4521
    %4523 = vmatprep.mubr.bf16.mxu0 %v3816
    %4524 = vmatmul.mubr.bf16.gmra.mxu0 %v3815
    %v4525 = vpop.f32.mrf.mxu0
    %v4526 = vadd.f32 %v4333, %v4525
    %v4527 = vpop.f32.mrf.mxu0
    %v4528 = vadd.f32 %v4335, %v4527
    %v4529 = vpop.f32.mrf.mxu0
    %v4530 = vadd.f32 %v4337, %v4529
    %v4531 = vpop.f32.mrf.mxu0
    %v4532 = vadd.f32 %v4339, %v4531
    %4533 = vdwg.mxu0
    %v4534 = vmax.f32 %v4376, 0.0
    %v4535 = vmax.f32 %v4378, 0.0
    %v4536 = vmax.f32 %v4380, 0.0
    %v4537 = vmax.f32 %v4382, 0.0
    %v4538 = vmax.f32 %v4386, 0.0
    %v4539 = vmax.f32 %v4388, 0.0
    %v4540 = vmax.f32 %v4390, 0.0
    %v4541 = vmax.f32 %v4392, 0.0
    %v4542 = vmax.f32 %v4396, 0.0
    %v4543 = vmax.f32 %v4398, 0.0
    %v4544 = vmax.f32 %v4400, 0.0
    %v4545 = vmax.f32 %v4402, 0.0
    %v4546 = vmax.f32 %v4406, 0.0
    %v4547 = vmax.f32 %v4408, 0.0
    %v4548 = vmax.f32 %v4410, 0.0
    %v4549 = vmax.f32 %v4412, 0.0
    %v4550 = vmax.f32 %v4416, 0.0
    %v4551 = vmax.f32 %v4418, 0.0
    %v4552 = vmax.f32 %v4420, 0.0
    %v4553 = vmax.f32 %v4422, 0.0
    %v4554 = vmax.f32 %v4426, 0.0
    %v4555 = vmax.f32 %v4428, 0.0
    %v4556 = vmax.f32 %v4430, 0.0
    %v4557 = vmax.f32 %v4432, 0.0
    %v4558 = vmax.f32 %v4436, 0.0
    %v4559 = vmax.f32 %v4438, 0.0
    %v4560 = vmax.f32 %v4440, 0.0
    %v4561 = vmax.f32 %v4442, 0.0
    %v4562 = vmax.f32 %v4446, 0.0
    %v4563 = vmax.f32 %v4448, 0.0
    %v4564 = vmax.f32 %v4450, 0.0
    %v4565 = vmax.f32 %v4452, 0.0
    %v4566 = vmax.f32 %v4456, 0.0
    %v4567 = vmax.f32 %v4458, 0.0
    %v4568 = vmax.f32 %v4460, 0.0
    %v4569 = vmax.f32 %v4462, 0.0
    %v4570 = vmax.f32 %v4466, 0.0
    %v4571 = vmax.f32 %v4468, 0.0
    %v4572 = vmax.f32 %v4470, 0.0
    %v4573 = vmax.f32 %v4472, 0.0
    %v4574 = vmax.f32 %v4476, 0.0
    %v4575 = vmax.f32 %v4478, 0.0
    %v4576 = vmax.f32 %v4480, 0.0
    %v4577 = vmax.f32 %v4482, 0.0
    %v4578 = vmax.f32 %v4486, 0.0
    %v4579 = vmax.f32 %v4488, 0.0
    %v4580 = vmax.f32 %v4490, 0.0
    %v4581 = vmax.f32 %v4492, 0.0
    %v4582 = vmax.f32 %v4496, 0.0
    %v4583 = vmax.f32 %v4498, 0.0
    %v4584 = vmax.f32 %v4500, 0.0
    %v4585 = vmax.f32 %v4502, 0.0
    %v4586 = vmax.f32 %v4506, 0.0
    %v4587 = vmax.f32 %v4508, 0.0
    %v4588 = vmax.f32 %v4510, 0.0
    %v4589 = vmax.f32 %v4512, 0.0
    %v4590 = vmax.f32 %v4516, 0.0
    %v4591 = vmax.f32 %v4518, 0.0
    %v4592 = vmax.f32 %v4520, 0.0
    %v4593 = vmax.f32 %v4522, 0.0
    %v4594 = vmax.f32 %v4526, 0.0
    %v4595 = vmax.f32 %v4528, 0.0
    %v4596 = vmax.f32 %v4530, 0.0
    %v4597 = vmax.f32 %v4532, 0.0
    %v4598 = vld [vmem:[#allocation2] sm:$0xff]
    %v4599 = vld [vmem:[#allocation2 + $0x8] sm:$0xff]
    %v4600 = vld [vmem:[#allocation2 + $0x10] sm:$0xff]
    %v4601 = vld [vmem:[#allocation2 + $0x18] sm:$0xff]
    %v4602 = vld [vmem:[#allocation2 + $0x20] sm:$0xff]
    %v4603 = vld [vmem:[#allocation2 + $0x28] sm:$0xff]
    %v4604 = vld [vmem:[#allocation2 + $0x30] sm:$0xff]
    %v4605 = vld [vmem:[#allocation2 + $0x38] sm:$0xff]
    %v4606 = vld [vmem:[#allocation2 + $0x40] sm:$0xff]
    %v4607 = vld [vmem:[#allocation2 + $0x48] sm:$0xff]
    %v4608 = vld [vmem:[#allocation2 + $0x50] sm:$0xff]
    %v4609 = vld [vmem:[#allocation2 + $0x58] sm:$0xff]
    %v4610 = vld [vmem:[#allocation2 + $0x60] sm:$0xff]
    %v4611 = vld [vmem:[#allocation2 + $0x68] sm:$0xff]
    %v4612 = vld [vmem:[#allocation2 + $0x70] sm:$0xff]
    %v4613 = vld [vmem:[#allocation2 + $0x78] sm:$0xff]
    %v4614 = vld [vmem:[#allocation2 + $0x80] sm:$0xff]
    %v4615 = vld [vmem:[#allocation2 + $0x88] sm:$0xff]
    %v4616 = vld [vmem:[#allocation2 + $0x90] sm:$0xff]
    %v4617 = vld [vmem:[#allocation2 + $0x98] sm:$0xff]
    %v4618 = vld [vmem:[#allocation2 + $0xa0] sm:$0xff]
    %v4619 = vld [vmem:[#allocation2 + $0xa8] sm:$0xff]
    %v4620 = vld [vmem:[#allocation2 + $0xb0] sm:$0xff]
    %v4621 = vld [vmem:[#allocation2 + $0xb8] sm:$0xff]
    %v4622 = vld [vmem:[#allocation2 + $0xc0] sm:$0xff]
    %v4623 = vld [vmem:[#allocation2 + $0xc8] sm:$0xff]
    %v4624 = vld [vmem:[#allocation2 + $0xd0] sm:$0xff]
    %v4625 = vld [vmem:[#allocation2 + $0xd8] sm:$0xff]
    %v4626 = vld [vmem:[#allocation2 + $0xe0] sm:$0xff]
    %v4627 = vld [vmem:[#allocation2 + $0xe8] sm:$0xff]
    %v4628 = vld [vmem:[#allocation2 + $0xf0] sm:$0xff]
    %v4629 = vld [vmem:[#allocation2 + $0xf8] sm:$0xff]
    %v4630 = vld [vmem:[%s8 + $0xe] sm:$0x3]
    %v4631 = vpack.c.bf16 %v3626, %v3624
    %v4632 = vpack.c.bf16 %v3627, %v3625
    %v4633 = vpack.c.bf16 %v3630, %v3628
    %v4634 = vpack.c.bf16 %v3631, %v3629
    %v4635 = vpack.c.bf16 %v3634, %v3632
    %v4636 = vpack.c.bf16 %v3635, %v3633
    %v4637 = vpack.c.bf16 %v3638, %v3636
    %v4638 = vpack.c.bf16 %v3639, %v3637
    %v4639 = vpack.c.bf16 %v3642, %v3640
    %v4640 = vpack.c.bf16 %v3643, %v3641
    %v4641 = vpack.c.bf16 %v3646, %v3644
    %v4642 = vpack.c.bf16 %v3647, %v3645
    %v4643 = vpack.c.bf16 %v3650, %v3648
    %v4644 = vpack.c.bf16 %v3651, %v3649
    %v4645 = vpack.c.bf16 %v3654, %v3652
    %v4646 = vpack.c.bf16 %v3655, %v3653
    %v4647 = vpack.c.bf16 %v3658, %v3656
    %v4648 = vpack.c.bf16 %v3659, %v3657
    %v4649 = vpack.c.bf16 %v3662, %v3660
    %v4650 = vpack.c.bf16 %v3663, %v3661
    %v4651 = vpack.c.bf16 %v3666, %v3664
    %v4652 = vpack.c.bf16 %v3667, %v3665
    %v4653 = vpack.c.bf16 %v3670, %v3668
    %v4654 = vpack.c.bf16 %v3671, %v3669
    %v4655 = vpack.c.bf16 %v3674, %v3672
    %v4656 = vpack.c.bf16 %v3675, %v3673
    %v4657 = vpack.c.bf16 %v3678, %v3676
    %v4658 = vpack.c.bf16 %v3679, %v3677
    %v4659 = vpack.c.bf16 %v3682, %v3680
    %v4660 = vpack.c.bf16 %v3683, %v3681
    %v4661 = vpack.c.bf16 %v3686, %v3684
    %v4662 = vpack.c.bf16 %v3687, %v3685
    %v4664 = vlaneseq
    %v4665 = vshrl.u32 %v4664, 7
    %v4666 = vsub.s32 0, %v4665
    %v4667 = vrot.slane %v4630, %v4666
    %v4668 = vlaneseq
    %v4669 = vshrl.u32 %v4668, 7
    %v4670 = vsub.s32 1, %v4669
    %v4671 = vrot.slane %v4630, %v4670
    %v4706 = vunpack.c.l.b16 %v4598
    %v4707 = vunpack.c.h.b16 %v4598
    %v4708 = vunpack.c.l.b16 %v4599
    %v4709 = vunpack.c.h.b16 %v4599
    %v4710 = vunpack.c.l.b16 %v4600
    %v4711 = vunpack.c.h.b16 %v4600
    %v4712 = vunpack.c.l.b16 %v4601
    %v4713 = vunpack.c.h.b16 %v4601
    %v4714 = vunpack.c.l.b16 %v4602
    %v4715 = vunpack.c.h.b16 %v4602
    %v4716 = vunpack.c.l.b16 %v4603
    %v4717 = vunpack.c.h.b16 %v4603
    %v4718 = vunpack.c.l.b16 %v4604
    %v4719 = vunpack.c.h.b16 %v4604
    %v4720 = vunpack.c.l.b16 %v4605
    %v4721 = vunpack.c.h.b16 %v4605
    %v4722 = vunpack.c.l.b16 %v4606
    %v4723 = vunpack.c.h.b16 %v4606
    %v4724 = vunpack.c.l.b16 %v4607
    %v4725 = vunpack.c.h.b16 %v4607
    %v4726 = vunpack.c.l.b16 %v4608
    %v4727 = vunpack.c.h.b16 %v4608
    %v4728 = vunpack.c.l.b16 %v4609
    %v4729 = vunpack.c.h.b16 %v4609
    %v4730 = vunpack.c.l.b16 %v4610
    %v4731 = vunpack.c.h.b16 %v4610
    %v4732 = vunpack.c.l.b16 %v4611
    %v4733 = vunpack.c.h.b16 %v4611
    %v4734 = vunpack.c.l.b16 %v4612
    %v4735 = vunpack.c.h.b16 %v4612
    %v4736 = vunpack.c.l.b16 %v4613
    %v4737 = vunpack.c.h.b16 %v4613
    %v4738 = vunpack.c.l.b16 %v4614
    %v4739 = vunpack.c.h.b16 %v4614
    %v4740 = vunpack.c.l.b16 %v4615
    %v4741 = vunpack.c.h.b16 %v4615
    %v4742 = vunpack.c.l.b16 %v4616
    %v4743 = vunpack.c.h.b16 %v4616
    %v4744 = vunpack.c.l.b16 %v4617
    %v4745 = vunpack.c.h.b16 %v4617
    %v4746 = vunpack.c.l.b16 %v4618
    %v4747 = vunpack.c.h.b16 %v4618
    %v4748 = vunpack.c.l.b16 %v4619
    %v4749 = vunpack.c.h.b16 %v4619
    %v4750 = vunpack.c.l.b16 %v4620
    %v4751 = vunpack.c.h.b16 %v4620
    %v4752 = vunpack.c.l.b16 %v4621
    %v4753 = vunpack.c.h.b16 %v4621
    %v4754 = vunpack.c.l.b16 %v4622
    %v4755 = vunpack.c.h.b16 %v4622
    %v4756 = vunpack.c.l.b16 %v4623
    %v4757 = vunpack.c.h.b16 %v4623
    %v4758 = vunpack.c.l.b16 %v4624
    %v4759 = vunpack.c.h.b16 %v4624
    %v4760 = vunpack.c.l.b16 %v4625
    %v4761 = vunpack.c.h.b16 %v4625
    %v4762 = vunpack.c.l.b16 %v4626
    %v4763 = vunpack.c.h.b16 %v4626
    %v4764 = vunpack.c.l.b16 %v4627
    %v4765 = vunpack.c.h.b16 %v4627
    %v4766 = vunpack.c.l.b16 %v4628
    %v4767 = vunpack.c.h.b16 %v4628
    %v4768 = vunpack.c.l.b16 %v4629
    %v4769 = vunpack.c.h.b16 %v4629
    %v4770 = vpack.c.b16 %v4708, %v4706
    %v4771 = vpack.c.b16 %v4709, %v4707
    %v4772 = vpack.c.b16 %v4712, %v4710
    %v4773 = vpack.c.b16 %v4713, %v4711
    %v4774 = vpack.c.b16 %v4716, %v4714
    %v4775 = vpack.c.b16 %v4717, %v4715
    %v4776 = vpack.c.b16 %v4720, %v4718
    %v4777 = vpack.c.b16 %v4721, %v4719
    %v4778 = vpack.c.b16 %v4724, %v4722
    %v4779 = vpack.c.b16 %v4725, %v4723
    %v4780 = vpack.c.b16 %v4728, %v4726
    %v4781 = vpack.c.b16 %v4729, %v4727
    %v4782 = vpack.c.b16 %v4732, %v4730
    %v4783 = vpack.c.b16 %v4733, %v4731
    %v4784 = vpack.c.b16 %v4736, %v4734
    %v4785 = vpack.c.b16 %v4737, %v4735
    %v4786 = vpack.c.b16 %v4740, %v4738
    %v4787 = vpack.c.b16 %v4741, %v4739
    %v4788 = vpack.c.b16 %v4744, %v4742
    %v4789 = vpack.c.b16 %v4745, %v4743
    %v4790 = vpack.c.b16 %v4748, %v4746
    %v4791 = vpack.c.b16 %v4749, %v4747
    %v4792 = vpack.c.b16 %v4752, %v4750
    %v4793 = vpack.c.b16 %v4753, %v4751
    %v4794 = vpack.c.b16 %v4756, %v4754
    %v4795 = vpack.c.b16 %v4757, %v4755
    %v4796 = vpack.c.b16 %v4760, %v4758
    %v4797 = vpack.c.b16 %v4761, %v4759
    %v4798 = vpack.c.b16 %v4764, %v4762
    %v4799 = vpack.c.b16 %v4765, %v4763
    %v4800 = vpack.c.b16 %v4768, %v4766
    %v4801 = vpack.c.b16 %v4769, %v4767
    %4834 = vmatprep.subr.bf16.mxu0 %v4785
    %4835 = vmatpush1.bf16.msra.mxu0 %v4784
    %4836 = vmatprep.subr.bf16.mxu0 %v4783
    %4837 = vmatpush1.bf16.msra.mxu0 %v4782
    %4838 = vmatprep.subr.bf16.mxu0 %v4781
    %4839 = vmatpush1.bf16.msra.mxu0 %v4780
    %4840 = vmatprep.subr.bf16.mxu0 %v4779
    %4841 = vmatpush1.bf16.msra.mxu0 %v4778
    %4842 = vmatprep.subr.bf16.mxu0 %v4777
    %4843 = vmatpush1.bf16.msra.mxu0 %v4776
    %4844 = vmatprep.subr.bf16.mxu0 %v4775
    %4845 = vmatpush1.bf16.msra.mxu0 %v4774
    %4846 = vmatprep.subr.bf16.mxu0 %v4773
    %4847 = vmatpush1.bf16.msra.mxu0 %v4772
    %4848 = vmatprep.subr.bf16.mxu0 %v4771
    %4849 = vmatpush1.bf16.msra.mxu0 %v4770
    %4850 = vmatprep.subr.bf16.mxu0 %v4801
    %4851 = vmatpush2.bf16.msra.mxu0 %v4800
    %4852 = vmatprep.subr.bf16.mxu0 %v4799
    %4853 = vmatpush2.bf16.msra.mxu0 %v4798
    %4854 = vmatprep.subr.bf16.mxu0 %v4797
    %4855 = vmatpush2.bf16.msra.mxu0 %v4796
    %4856 = vmatprep.subr.bf16.mxu0 %v4795
    %4857 = vmatpush2.bf16.msra.mxu0 %v4794
    %4858 = vmatprep.subr.bf16.mxu0 %v4793
    %4859 = vmatpush2.bf16.msra.mxu0 %v4792
    %4860 = vmatprep.subr.bf16.mxu0 %v4791
    %4861 = vmatpush2.bf16.msra.mxu0 %v4790
    %4862 = vmatprep.subr.bf16.mxu0 %v4789
    %4863 = vmatpush2.bf16.msra.mxu0 %v4788
    %4864 = vmatprep.subr.bf16.mxu0 %v4787
    %4865 = vmatpush2.bf16.msra.mxu0 %v4786
    %4866 = vmatprep.mubr.bf16.mxu0 %v4632
    %4867 = vmatmul.mubr.bf16.gmra.mxu0 %v4631
    %v4868 = vpop.f32.mrf.mxu0
    %v4869 = vadd.f32 %v4667, %v4868
    %v4870 = vpop.f32.mrf.mxu0
    %v4871 = vadd.f32 %v4671, %v4870
    %v4872 = vpop.f32.mrf.mxu0
    %v4873 = vadd.f32 %v4667, %v4872
    %v4874 = vpop.f32.mrf.mxu0
    %v4875 = vadd.f32 %v4671, %v4874
    %4876 = vmatprep.mubr.bf16.mxu0 %v4634
    %4877 = vmatmul.mubr.bf16.gmra.mxu0 %v4633
    %v4878 = vpop.f32.mrf.mxu0
    %v4879 = vadd.f32 %v4667, %v4878
    %v4880 = vpop.f32.mrf.mxu0
    %v4881 = vadd.f32 %v4671, %v4880
    %v4882 = vpop.f32.mrf.mxu0
    %v4883 = vadd.f32 %v4667, %v4882
    %v4884 = vpop.f32.mrf.mxu0
    %v4885 = vadd.f32 %v4671, %v4884
    %4886 = vmatprep.mubr.bf16.mxu0 %v4636
    %4887 = vmatmul.mubr.bf16.gmra.mxu0 %v4635
    %v4888 = vpop.f32.mrf.mxu0
    %v4889 = vadd.f32 %v4667, %v4888
    %v4890 = vpop.f32.mrf.mxu0
    %v4891 = vadd.f32 %v4671, %v4890
    %v4892 = vpop.f32.mrf.mxu0
    %v4893 = vadd.f32 %v4667, %v4892
    %v4894 = vpop.f32.mrf.mxu0
    %v4895 = vadd.f32 %v4671, %v4894
    %4896 = vmatprep.mubr.bf16.mxu0 %v4638
    %4897 = vmatmul.mubr.bf16.gmra.mxu0 %v4637
    %v4898 = vpop.f32.mrf.mxu0
    %v4899 = vadd.f32 %v4667, %v4898
    %v4900 = vpop.f32.mrf.mxu0
    %v4901 = vadd.f32 %v4671, %v4900
    %v4902 = vpop.f32.mrf.mxu0
    %v4903 = vadd.f32 %v4667, %v4902
    %v4904 = vpop.f32.mrf.mxu0
    %v4905 = vadd.f32 %v4671, %v4904
    %4906 = vmatprep.mubr.bf16.mxu0 %v4640
    %4907 = vmatmul.mubr.bf16.gmra.mxu0 %v4639
    %v4908 = vpop.f32.mrf.mxu0
    %v4909 = vadd.f32 %v4667, %v4908
    %v4910 = vpop.f32.mrf.mxu0
    %v4911 = vadd.f32 %v4671, %v4910
    %v4912 = vpop.f32.mrf.mxu0
    %v4913 = vadd.f32 %v4667, %v4912
    %v4914 = vpop.f32.mrf.mxu0
    %v4915 = vadd.f32 %v4671, %v4914
    %4916 = vmatprep.mubr.bf16.mxu0 %v4642
    %4917 = vmatmul.mubr.bf16.gmra.mxu0 %v4641
    %v4918 = vpop.f32.mrf.mxu0
    %v4919 = vadd.f32 %v4667, %v4918
    %v4920 = vpop.f32.mrf.mxu0
    %v4921 = vadd.f32 %v4671, %v4920
    %v4922 = vpop.f32.mrf.mxu0
    %v4923 = vadd.f32 %v4667, %v4922
    %v4924 = vpop.f32.mrf.mxu0
    %v4925 = vadd.f32 %v4671, %v4924
    %4926 = vmatprep.mubr.bf16.mxu0 %v4644
    %4927 = vmatmul.mubr.bf16.gmra.mxu0 %v4643
    %v4928 = vpop.f32.mrf.mxu0
    %v4929 = vadd.f32 %v4667, %v4928
    %v4930 = vpop.f32.mrf.mxu0
    %v4931 = vadd.f32 %v4671, %v4930
    %v4932 = vpop.f32.mrf.mxu0
    %v4933 = vadd.f32 %v4667, %v4932
    %v4934 = vpop.f32.mrf.mxu0
    %v4935 = vadd.f32 %v4671, %v4934
    %4936 = vmatprep.mubr.bf16.mxu0 %v4646
    %4937 = vmatmul.mubr.bf16.gmra.mxu0 %v4645
    %v4938 = vpop.f32.mrf.mxu0
    %v4939 = vadd.f32 %v4667, %v4938
    %v4940 = vpop.f32.mrf.mxu0
    %v4941 = vadd.f32 %v4671, %v4940
    %v4942 = vpop.f32.mrf.mxu0
    %v4943 = vadd.f32 %v4667, %v4942
    %v4944 = vpop.f32.mrf.mxu0
    %v4945 = vadd.f32 %v4671, %v4944
    %4946 = vmatprep.mubr.bf16.mxu0 %v4648
    %4947 = vmatmul.mubr.bf16.gmra.mxu0 %v4647
    %v4948 = vpop.f32.mrf.mxu0
    %v4949 = vadd.f32 %v4667, %v4948
    %v4950 = vpop.f32.mrf.mxu0
    %v4951 = vadd.f32 %v4671, %v4950
    %v4952 = vpop.f32.mrf.mxu0
    %v4953 = vadd.f32 %v4667, %v4952
    %v4954 = vpop.f32.mrf.mxu0
    %v4955 = vadd.f32 %v4671, %v4954
    %4956 = vmatprep.mubr.bf16.mxu0 %v4650
    %4957 = vmatmul.mubr.bf16.gmra.mxu0 %v4649
    %v4958 = vpop.f32.mrf.mxu0
    %v4959 = vadd.f32 %v4667, %v4958
    %v4960 = vpop.f32.mrf.mxu0
    %v4961 = vadd.f32 %v4671, %v4960
    %v4962 = vpop.f32.mrf.mxu0
    %v4963 = vadd.f32 %v4667, %v4962
    %v4964 = vpop.f32.mrf.mxu0
    %v4965 = vadd.f32 %v4671, %v4964
    %4966 = vmatprep.mubr.bf16.mxu0 %v4652
    %4967 = vmatmul.mubr.bf16.gmra.mxu0 %v4651
    %v4968 = vpop.f32.mrf.mxu0
    %v4969 = vadd.f32 %v4667, %v4968
    %v4970 = vpop.f32.mrf.mxu0
    %v4971 = vadd.f32 %v4671, %v4970
    %v4972 = vpop.f32.mrf.mxu0
    %v4973 = vadd.f32 %v4667, %v4972
    %v4974 = vpop.f32.mrf.mxu0
    %v4975 = vadd.f32 %v4671, %v4974
    %4976 = vmatprep.mubr.bf16.mxu0 %v4654
    %4977 = vmatmul.mubr.bf16.gmra.mxu0 %v4653
    %v4978 = vpop.f32.mrf.mxu0
    %v4979 = vadd.f32 %v4667, %v4978
    %v4980 = vpop.f32.mrf.mxu0
    %v4981 = vadd.f32 %v4671, %v4980
    %v4982 = vpop.f32.mrf.mxu0
    %v4983 = vadd.f32 %v4667, %v4982
    %v4984 = vpop.f32.mrf.mxu0
    %v4985 = vadd.f32 %v4671, %v4984
    %4986 = vmatprep.mubr.bf16.mxu0 %v4656
    %4987 = vmatmul.mubr.bf16.gmra.mxu0 %v4655
    %v4988 = vpop.f32.mrf.mxu0
    %v4989 = vadd.f32 %v4667, %v4988
    %v4990 = vpop.f32.mrf.mxu0
    %v4991 = vadd.f32 %v4671, %v4990
    %v4992 = vpop.f32.mrf.mxu0
    %v4993 = vadd.f32 %v4667, %v4992
    %v4994 = vpop.f32.mrf.mxu0
    %v4995 = vadd.f32 %v4671, %v4994
    %4996 = vmatprep.mubr.bf16.mxu0 %v4658
    %4997 = vmatmul.mubr.bf16.gmra.mxu0 %v4657
    %v4998 = vpop.f32.mrf.mxu0
    %v4999 = vadd.f32 %v4667, %v4998
    %v5000 = vpop.f32.mrf.mxu0
    %v5001 = vadd.f32 %v4671, %v5000
    %v5002 = vpop.f32.mrf.mxu0
    %v5003 = vadd.f32 %v4667, %v5002
    %v5004 = vpop.f32.mrf.mxu0
    %v5005 = vadd.f32 %v4671, %v5004
    %5006 = vmatprep.mubr.bf16.mxu0 %v4660
    %5007 = vmatmul.mubr.bf16.gmra.mxu0 %v4659
    %v5008 = vpop.f32.mrf.mxu0
    %v5009 = vadd.f32 %v4667, %v5008
    %v5010 = vpop.f32.mrf.mxu0
    %v5011 = vadd.f32 %v4671, %v5010
    %v5012 = vpop.f32.mrf.mxu0
    %v5013 = vadd.f32 %v4667, %v5012
    %v5014 = vpop.f32.mrf.mxu0
    %v5015 = vadd.f32 %v4671, %v5014
    %5016 = vmatprep.mubr.bf16.mxu0 %v4662
    %5017 = vmatmul.mubr.bf16.gmra.mxu0 %v4661
    %v5018 = vpop.f32.mrf.mxu0
    %v5019 = vadd.f32 %v4667, %v5018
    %v5020 = vpop.f32.mrf.mxu0
    %v5021 = vadd.f32 %v4671, %v5020
    %v5022 = vpop.f32.mrf.mxu0
    %v5023 = vadd.f32 %v4667, %v5022
    %v5024 = vpop.f32.mrf.mxu0
    %v5025 = vadd.f32 %v4671, %v5024
    %5026 = vdwg.mxu0
    %v5027 = vld [vmem:[#allocation2 + $0x100] sm:$0xff]
    %v5028 = vld [vmem:[#allocation2 + $0x108] sm:$0xff]
    %v5029 = vld [vmem:[#allocation2 + $0x110] sm:$0xff]
    %v5030 = vld [vmem:[#allocation2 + $0x118] sm:$0xff]
    %v5031 = vld [vmem:[#allocation2 + $0x120] sm:$0xff]
    %v5032 = vld [vmem:[#allocation2 + $0x128] sm:$0xff]
    %v5033 = vld [vmem:[#allocation2 + $0x130] sm:$0xff]
    %v5034 = vld [vmem:[#allocation2 + $0x138] sm:$0xff]
    %v5035 = vld [vmem:[#allocation2 + $0x140] sm:$0xff]
    %v5036 = vld [vmem:[#allocation2 + $0x148] sm:$0xff]
    %v5037 = vld [vmem:[#allocation2 + $0x150] sm:$0xff]
    %v5038 = vld [vmem:[#allocation2 + $0x158] sm:$0xff]
    %v5039 = vld [vmem:[#allocation2 + $0x160] sm:$0xff]
    %v5040 = vld [vmem:[#allocation2 + $0x168] sm:$0xff]
    %v5041 = vld [vmem:[#allocation2 + $0x170] sm:$0xff]
    %v5042 = vld [vmem:[#allocation2 + $0x178] sm:$0xff]
    %v5043 = vld [vmem:[#allocation2 + $0x180] sm:$0xff]
    %v5044 = vld [vmem:[#allocation2 + $0x188] sm:$0xff]
    %v5045 = vld [vmem:[#allocation2 + $0x190] sm:$0xff]
    %v5046 = vld [vmem:[#allocation2 + $0x198] sm:$0xff]
    %v5047 = vld [vmem:[#allocation2 + $0x1a0] sm:$0xff]
    %v5048 = vld [vmem:[#allocation2 + $0x1a8] sm:$0xff]
    %v5049 = vld [vmem:[#allocation2 + $0x1b0] sm:$0xff]
    %v5050 = vld [vmem:[#allocation2 + $0x1b8] sm:$0xff]
    %v5051 = vld [vmem:[#allocation2 + $0x1c0] sm:$0xff]
    %v5052 = vld [vmem:[#allocation2 + $0x1c8] sm:$0xff]
    %v5053 = vld [vmem:[#allocation2 + $0x1d0] sm:$0xff]
    %v5054 = vld [vmem:[#allocation2 + $0x1d8] sm:$0xff]
    %v5055 = vld [vmem:[#allocation2 + $0x1e0] sm:$0xff]
    %v5056 = vld [vmem:[#allocation2 + $0x1e8] sm:$0xff]
    %v5057 = vld [vmem:[#allocation2 + $0x1f0] sm:$0xff]
    %v5058 = vld [vmem:[#allocation2 + $0x1f8] sm:$0xff]
    %v5059 = vld [vmem:[%s8 + $0x10] sm:$0x3]
    %v5060 = vpack.c.bf16 %v4536, %v4534
    %v5061 = vpack.c.bf16 %v4537, %v4535
    %v5062 = vpack.c.bf16 %v4540, %v4538
    %v5063 = vpack.c.bf16 %v4541, %v4539
    %v5064 = vpack.c.bf16 %v4544, %v4542
    %v5065 = vpack.c.bf16 %v4545, %v4543
    %v5066 = vpack.c.bf16 %v4548, %v4546
    %v5067 = vpack.c.bf16 %v4549, %v4547
    %v5068 = vpack.c.bf16 %v4552, %v4550
    %v5069 = vpack.c.bf16 %v4553, %v4551
    %v5070 = vpack.c.bf16 %v4556, %v4554
    %v5071 = vpack.c.bf16 %v4557, %v4555
    %v5072 = vpack.c.bf16 %v4560, %v4558
    %v5073 = vpack.c.bf16 %v4561, %v4559
    %v5074 = vpack.c.bf16 %v4564, %v4562
    %v5075 = vpack.c.bf16 %v4565, %v4563
    %v5076 = vpack.c.bf16 %v4568, %v4566
    %v5077 = vpack.c.bf16 %v4569, %v4567
    %v5078 = vpack.c.bf16 %v4572, %v4570
    %v5079 = vpack.c.bf16 %v4573, %v4571
    %v5080 = vpack.c.bf16 %v4576, %v4574
    %v5081 = vpack.c.bf16 %v4577, %v4575
    %v5082 = vpack.c.bf16 %v4580, %v4578
    %v5083 = vpack.c.bf16 %v4581, %v4579
    %v5084 = vpack.c.bf16 %v4584, %v4582
    %v5085 = vpack.c.bf16 %v4585, %v4583
    %v5086 = vpack.c.bf16 %v4588, %v4586
    %v5087 = vpack.c.bf16 %v4589, %v4587
    %v5088 = vpack.c.bf16 %v4592, %v4590
    %v5089 = vpack.c.bf16 %v4593, %v4591
    %v5090 = vpack.c.bf16 %v4596, %v4594
    %v5091 = vpack.c.bf16 %v4597, %v4595
    %v5093 = vlaneseq
    %v5094 = vshrl.u32 %v5093, 7
    %v5095 = vsub.s32 0, %v5094
    %v5096 = vrot.slane %v5059, %v5095
    %v5097 = vlaneseq
    %v5098 = vshrl.u32 %v5097, 7
    %v5099 = vsub.s32 1, %v5098
    %v5100 = vrot.slane %v5059, %v5099
    %v5135 = vunpack.c.l.b16 %v5027
    %v5136 = vunpack.c.h.b16 %v5027
    %v5137 = vunpack.c.l.b16 %v5028
    %v5138 = vunpack.c.h.b16 %v5028
    %v5139 = vunpack.c.l.b16 %v5029
    %v5140 = vunpack.c.h.b16 %v5029
    %v5141 = vunpack.c.l.b16 %v5030
    %v5142 = vunpack.c.h.b16 %v5030
    %v5143 = vunpack.c.l.b16 %v5031
    %v5144 = vunpack.c.h.b16 %v5031
    %v5145 = vunpack.c.l.b16 %v5032
    %v5146 = vunpack.c.h.b16 %v5032
    %v5147 = vunpack.c.l.b16 %v5033
    %v5148 = vunpack.c.h.b16 %v5033
    %v5149 = vunpack.c.l.b16 %v5034
    %v5150 = vunpack.c.h.b16 %v5034
    %v5151 = vunpack.c.l.b16 %v5035
    %v5152 = vunpack.c.h.b16 %v5035
    %v5153 = vunpack.c.l.b16 %v5036
    %v5154 = vunpack.c.h.b16 %v5036
    %v5155 = vunpack.c.l.b16 %v5037
    %v5156 = vunpack.c.h.b16 %v5037
    %v5157 = vunpack.c.l.b16 %v5038
    %v5158 = vunpack.c.h.b16 %v5038
    %v5159 = vunpack.c.l.b16 %v5039
    %v5160 = vunpack.c.h.b16 %v5039
    %v5161 = vunpack.c.l.b16 %v5040
    %v5162 = vunpack.c.h.b16 %v5040
    %v5163 = vunpack.c.l.b16 %v5041
    %v5164 = vunpack.c.h.b16 %v5041
    %v5165 = vunpack.c.l.b16 %v5042
    %v5166 = vunpack.c.h.b16 %v5042
    %v5167 = vunpack.c.l.b16 %v5043
    %v5168 = vunpack.c.h.b16 %v5043
    %v5169 = vunpack.c.l.b16 %v5044
    %v5170 = vunpack.c.h.b16 %v5044
    %v5171 = vunpack.c.l.b16 %v5045
    %v5172 = vunpack.c.h.b16 %v5045
    %v5173 = vunpack.c.l.b16 %v5046
    %v5174 = vunpack.c.h.b16 %v5046
    %v5175 = vunpack.c.l.b16 %v5047
    %v5176 = vunpack.c.h.b16 %v5047
    %v5177 = vunpack.c.l.b16 %v5048
    %v5178 = vunpack.c.h.b16 %v5048
    %v5179 = vunpack.c.l.b16 %v5049
    %v5180 = vunpack.c.h.b16 %v5049
    %v5181 = vunpack.c.l.b16 %v5050
    %v5182 = vunpack.c.h.b16 %v5050
    %v5183 = vunpack.c.l.b16 %v5051
    %v5184 = vunpack.c.h.b16 %v5051
    %v5185 = vunpack.c.l.b16 %v5052
    %v5186 = vunpack.c.h.b16 %v5052
    %v5187 = vunpack.c.l.b16 %v5053
    %v5188 = vunpack.c.h.b16 %v5053
    %v5189 = vunpack.c.l.b16 %v5054
    %v5190 = vunpack.c.h.b16 %v5054
    %v5191 = vunpack.c.l.b16 %v5055
    %v5192 = vunpack.c.h.b16 %v5055
    %v5193 = vunpack.c.l.b16 %v5056
    %v5194 = vunpack.c.h.b16 %v5056
    %v5195 = vunpack.c.l.b16 %v5057
    %v5196 = vunpack.c.h.b16 %v5057
    %v5197 = vunpack.c.l.b16 %v5058
    %v5198 = vunpack.c.h.b16 %v5058
    %v5199 = vpack.c.b16 %v5137, %v5135
    %v5200 = vpack.c.b16 %v5138, %v5136
    %v5201 = vpack.c.b16 %v5141, %v5139
    %v5202 = vpack.c.b16 %v5142, %v5140
    %v5203 = vpack.c.b16 %v5145, %v5143
    %v5204 = vpack.c.b16 %v5146, %v5144
    %v5205 = vpack.c.b16 %v5149, %v5147
    %v5206 = vpack.c.b16 %v5150, %v5148
    %v5207 = vpack.c.b16 %v5153, %v5151
    %v5208 = vpack.c.b16 %v5154, %v5152
    %v5209 = vpack.c.b16 %v5157, %v5155
    %v5210 = vpack.c.b16 %v5158, %v5156
    %v5211 = vpack.c.b16 %v5161, %v5159
    %v5212 = vpack.c.b16 %v5162, %v5160
    %v5213 = vpack.c.b16 %v5165, %v5163
    %v5214 = vpack.c.b16 %v5166, %v5164
    %v5215 = vpack.c.b16 %v5169, %v5167
    %v5216 = vpack.c.b16 %v5170, %v5168
    %v5217 = vpack.c.b16 %v5173, %v5171
    %v5218 = vpack.c.b16 %v5174, %v5172
    %v5219 = vpack.c.b16 %v5177, %v5175
    %v5220 = vpack.c.b16 %v5178, %v5176
    %v5221 = vpack.c.b16 %v5181, %v5179
    %v5222 = vpack.c.b16 %v5182, %v5180
    %v5223 = vpack.c.b16 %v5185, %v5183
    %v5224 = vpack.c.b16 %v5186, %v5184
    %v5225 = vpack.c.b16 %v5189, %v5187
    %v5226 = vpack.c.b16 %v5190, %v5188
    %v5227 = vpack.c.b16 %v5193, %v5191
    %v5228 = vpack.c.b16 %v5194, %v5192
    %v5229 = vpack.c.b16 %v5197, %v5195
    %v5230 = vpack.c.b16 %v5198, %v5196
    %5263 = vmatprep.subr.bf16.mxu0 %v5214
    %5264 = vmatpush1.bf16.msra.mxu0 %v5213
    %5265 = vmatprep.subr.bf16.mxu0 %v5212
    %5266 = vmatpush1.bf16.msra.mxu0 %v5211
    %5267 = vmatprep.subr.bf16.mxu0 %v5210
    %5268 = vmatpush1.bf16.msra.mxu0 %v5209
    %5269 = vmatprep.subr.bf16.mxu0 %v5208
    %5270 = vmatpush1.bf16.msra.mxu0 %v5207
    %5271 = vmatprep.subr.bf16.mxu0 %v5206
    %5272 = vmatpush1.bf16.msra.mxu0 %v5205
    %5273 = vmatprep.subr.bf16.mxu0 %v5204
    %5274 = vmatpush1.bf16.msra.mxu0 %v5203
    %5275 = vmatprep.subr.bf16.mxu0 %v5202
    %5276 = vmatpush1.bf16.msra.mxu0 %v5201
    %5277 = vmatprep.subr.bf16.mxu0 %v5200
    %5278 = vmatpush1.bf16.msra.mxu0 %v5199
    %5279 = vmatprep.subr.bf16.mxu0 %v5230
    %5280 = vmatpush2.bf16.msra.mxu0 %v5229
    %5281 = vmatprep.subr.bf16.mxu0 %v5228
    %5282 = vmatpush2.bf16.msra.mxu0 %v5227
    %5283 = vmatprep.subr.bf16.mxu0 %v5226
    %5284 = vmatpush2.bf16.msra.mxu0 %v5225
    %5285 = vmatprep.subr.bf16.mxu0 %v5224
    %5286 = vmatpush2.bf16.msra.mxu0 %v5223
    %5287 = vmatprep.subr.bf16.mxu0 %v5222
    %5288 = vmatpush2.bf16.msra.mxu0 %v5221
    %5289 = vmatprep.subr.bf16.mxu0 %v5220
    %5290 = vmatpush2.bf16.msra.mxu0 %v5219
    %5291 = vmatprep.subr.bf16.mxu0 %v5218
    %5292 = vmatpush2.bf16.msra.mxu0 %v5217
    %5293 = vmatprep.subr.bf16.mxu0 %v5216
    %5294 = vmatpush2.bf16.msra.mxu0 %v5215
    %5295 = vmatprep.mubr.bf16.mxu0 %v5061
    %5296 = vmatmul.mubr.bf16.gmra.mxu0 %v5060
    %v5297 = vpop.f32.mrf.mxu0
    %v5298 = vadd.f32 %v5096, %v5297
    %v5299 = vpop.f32.mrf.mxu0
    %v5300 = vadd.f32 %v5100, %v5299
    %v5301 = vpop.f32.mrf.mxu0
    %v5302 = vadd.f32 %v5096, %v5301
    %v5303 = vpop.f32.mrf.mxu0
    %v5304 = vadd.f32 %v5100, %v5303
    %5305 = vmatprep.mubr.bf16.mxu0 %v5063
    %5306 = vmatmul.mubr.bf16.gmra.mxu0 %v5062
    %v5307 = vpop.f32.mrf.mxu0
    %v5308 = vadd.f32 %v5096, %v5307
    %v5309 = vpop.f32.mrf.mxu0
    %v5310 = vadd.f32 %v5100, %v5309
    %v5311 = vpop.f32.mrf.mxu0
    %v5312 = vadd.f32 %v5096, %v5311
    %v5313 = vpop.f32.mrf.mxu0
    %v5314 = vadd.f32 %v5100, %v5313
    %5315 = vmatprep.mubr.bf16.mxu0 %v5065
    %5316 = vmatmul.mubr.bf16.gmra.mxu0 %v5064
    %v5317 = vpop.f32.mrf.mxu0
    %v5318 = vadd.f32 %v5096, %v5317
    %v5319 = vpop.f32.mrf.mxu0
    %v5320 = vadd.f32 %v5100, %v5319
    %v5321 = vpop.f32.mrf.mxu0
    %v5322 = vadd.f32 %v5096, %v5321
    %v5323 = vpop.f32.mrf.mxu0
    %v5324 = vadd.f32 %v5100, %v5323
    %5325 = vmatprep.mubr.bf16.mxu0 %v5067
    %5326 = vmatmul.mubr.bf16.gmra.mxu0 %v5066
    %v5327 = vpop.f32.mrf.mxu0
    %v5328 = vadd.f32 %v5096, %v5327
    %v5329 = vpop.f32.mrf.mxu0
    %v5330 = vadd.f32 %v5100, %v5329
    %v5331 = vpop.f32.mrf.mxu0
    %v5332 = vadd.f32 %v5096, %v5331
    %v5333 = vpop.f32.mrf.mxu0
    %v5334 = vadd.f32 %v5100, %v5333
    %5335 = vmatprep.mubr.bf16.mxu0 %v5069
    %5336 = vmatmul.mubr.bf16.gmra.mxu0 %v5068
    %v5337 = vpop.f32.mrf.mxu0
    %v5338 = vadd.f32 %v5096, %v5337
    %v5339 = vpop.f32.mrf.mxu0
    %v5340 = vadd.f32 %v5100, %v5339
    %v5341 = vpop.f32.mrf.mxu0
    %v5342 = vadd.f32 %v5096, %v5341
    %v5343 = vpop.f32.mrf.mxu0
    %v5344 = vadd.f32 %v5100, %v5343
    %5345 = vmatprep.mubr.bf16.mxu0 %v5071
    %5346 = vmatmul.mubr.bf16.gmra.mxu0 %v5070
    %v5347 = vpop.f32.mrf.mxu0
    %v5348 = vadd.f32 %v5096, %v5347
    %v5349 = vpop.f32.mrf.mxu0
    %v5350 = vadd.f32 %v5100, %v5349
    %v5351 = vpop.f32.mrf.mxu0
    %v5352 = vadd.f32 %v5096, %v5351
    %v5353 = vpop.f32.mrf.mxu0
    %v5354 = vadd.f32 %v5100, %v5353
    %5355 = vmatprep.mubr.bf16.mxu0 %v5073
    %5356 = vmatmul.mubr.bf16.gmra.mxu0 %v5072
    %v5357 = vpop.f32.mrf.mxu0
    %v5358 = vadd.f32 %v5096, %v5357
    %v5359 = vpop.f32.mrf.mxu0
    %v5360 = vadd.f32 %v5100, %v5359
    %v5361 = vpop.f32.mrf.mxu0
    %v5362 = vadd.f32 %v5096, %v5361
    %v5363 = vpop.f32.mrf.mxu0
    %v5364 = vadd.f32 %v5100, %v5363
    %5365 = vmatprep.mubr.bf16.mxu0 %v5075
    %5366 = vmatmul.mubr.bf16.gmra.mxu0 %v5074
    %v5367 = vpop.f32.mrf.mxu0
    %v5368 = vadd.f32 %v5096, %v5367
    %v5369 = vpop.f32.mrf.mxu0
    %v5370 = vadd.f32 %v5100, %v5369
    %v5371 = vpop.f32.mrf.mxu0
    %v5372 = vadd.f32 %v5096, %v5371
    %v5373 = vpop.f32.mrf.mxu0
    %v5374 = vadd.f32 %v5100, %v5373
    %5375 = vmatprep.mubr.bf16.mxu0 %v5077
    %5376 = vmatmul.mubr.bf16.gmra.mxu0 %v5076
    %v5377 = vpop.f32.mrf.mxu0
    %v5378 = vadd.f32 %v5096, %v5377
    %v5379 = vpop.f32.mrf.mxu0
    %v5380 = vadd.f32 %v5100, %v5379
    %v5381 = vpop.f32.mrf.mxu0
    %v5382 = vadd.f32 %v5096, %v5381
    %v5383 = vpop.f32.mrf.mxu0
    %v5384 = vadd.f32 %v5100, %v5383
    %5385 = vmatprep.mubr.bf16.mxu0 %v5079
    %5386 = vmatmul.mubr.bf16.gmra.mxu0 %v5078
    %v5387 = vpop.f32.mrf.mxu0
    %v5388 = vadd.f32 %v5096, %v5387
    %v5389 = vpop.f32.mrf.mxu0
    %v5390 = vadd.f32 %v5100, %v5389
    %v5391 = vpop.f32.mrf.mxu0
    %v5392 = vadd.f32 %v5096, %v5391
    %v5393 = vpop.f32.mrf.mxu0
    %v5394 = vadd.f32 %v5100, %v5393
    %5395 = vmatprep.mubr.bf16.mxu0 %v5081
    %5396 = vmatmul.mubr.bf16.gmra.mxu0 %v5080
    %v5397 = vpop.f32.mrf.mxu0
    %v5398 = vadd.f32 %v5096, %v5397
    %v5399 = vpop.f32.mrf.mxu0
    %v5400 = vadd.f32 %v5100, %v5399
    %v5401 = vpop.f32.mrf.mxu0
    %v5402 = vadd.f32 %v5096, %v5401
    %v5403 = vpop.f32.mrf.mxu0
    %v5404 = vadd.f32 %v5100, %v5403
    %5405 = vmatprep.mubr.bf16.mxu0 %v5083
    %5406 = vmatmul.mubr.bf16.gmra.mxu0 %v5082
    %v5407 = vpop.f32.mrf.mxu0
    %v5408 = vadd.f32 %v5096, %v5407
    %v5409 = vpop.f32.mrf.mxu0
    %v5410 = vadd.f32 %v5100, %v5409
    %v5411 = vpop.f32.mrf.mxu0
    %v5412 = vadd.f32 %v5096, %v5411
    %v5413 = vpop.f32.mrf.mxu0
    %v5414 = vadd.f32 %v5100, %v5413
    %5415 = vmatprep.mubr.bf16.mxu0 %v5085
    %5416 = vmatmul.mubr.bf16.gmra.mxu0 %v5084
    %v5417 = vpop.f32.mrf.mxu0
    %v5418 = vadd.f32 %v5096, %v5417
    %v5419 = vpop.f32.mrf.mxu0
    %v5420 = vadd.f32 %v5100, %v5419
    %v5421 = vpop.f32.mrf.mxu0
    %v5422 = vadd.f32 %v5096, %v5421
    %v5423 = vpop.f32.mrf.mxu0
    %v5424 = vadd.f32 %v5100, %v5423
    %5425 = vmatprep.mubr.bf16.mxu0 %v5087
    %5426 = vmatmul.mubr.bf16.gmra.mxu0 %v5086
    %v5427 = vpop.f32.mrf.mxu0
    %v5428 = vadd.f32 %v5096, %v5427
    %v5429 = vpop.f32.mrf.mxu0
    %v5430 = vadd.f32 %v5100, %v5429
    %v5431 = vpop.f32.mrf.mxu0
    %v5432 = vadd.f32 %v5096, %v5431
    %v5433 = vpop.f32.mrf.mxu0
    %v5434 = vadd.f32 %v5100, %v5433
    %5435 = vmatprep.mubr.bf16.mxu0 %v5089
    %5436 = vmatmul.mubr.bf16.gmra.mxu0 %v5088
    %v5437 = vpop.f32.mrf.mxu0
    %v5438 = vadd.f32 %v5096, %v5437
    %v5439 = vpop.f32.mrf.mxu0
    %v5440 = vadd.f32 %v5100, %v5439
    %v5441 = vpop.f32.mrf.mxu0
    %v5442 = vadd.f32 %v5096, %v5441
    %v5443 = vpop.f32.mrf.mxu0
    %v5444 = vadd.f32 %v5100, %v5443
    %5445 = vmatprep.mubr.bf16.mxu0 %v5091
    %5446 = vmatmul.mubr.bf16.gmra.mxu0 %v5090
    %v5447 = vpop.f32.mrf.mxu0
    %v5448 = vadd.f32 %v5096, %v5447
    %v5449 = vpop.f32.mrf.mxu0
    %v5450 = vadd.f32 %v5100, %v5449
    %v5451 = vpop.f32.mrf.mxu0
    %v5452 = vadd.f32 %v5096, %v5451
    %v5453 = vpop.f32.mrf.mxu0
    %v5454 = vadd.f32 %v5100, %v5453
    %5455 = vdwg.mxu0
    %v5456 = vsub.f32 0.0, %v4871
    %v5457 = vsub.f32 0.0, %v4875
    %v5458 = vsub.f32 0.0, %v4881
    %v5459 = vsub.f32 0.0, %v4885
    %v5460 = vsub.f32 0.0, %v4891
    %v5461 = vsub.f32 0.0, %v4895
    %v5462 = vsub.f32 0.0, %v4901
    %v5463 = vsub.f32 0.0, %v4905
    %v5464 = vsub.f32 0.0, %v4911
    %v5465 = vsub.f32 0.0, %v4915
    %v5466 = vsub.f32 0.0, %v4921
    %v5467 = vsub.f32 0.0, %v4925
    %v5468 = vsub.f32 0.0, %v4931
    %v5469 = vsub.f32 0.0, %v4935
    %v5470 = vsub.f32 0.0, %v4941
    %v5471 = vsub.f32 0.0, %v4945
    %v5472 = vsub.f32 0.0, %v4951
    %v5473 = vsub.f32 0.0, %v4955
    %v5474 = vsub.f32 0.0, %v4961
    %v5475 = vsub.f32 0.0, %v4965
    %v5476 = vsub.f32 0.0, %v4971
    %v5477 = vsub.f32 0.0, %v4975
    %v5478 = vsub.f32 0.0, %v4981
    %v5479 = vsub.f32 0.0, %v4985
    %v5480 = vsub.f32 0.0, %v4991
    %v5481 = vsub.f32 0.0, %v4995
    %v5482 = vsub.f32 0.0, %v5001
    %v5483 = vsub.f32 0.0, %v5005
    %v5484 = vsub.f32 0.0, %v5011
    %v5485 = vsub.f32 0.0, %v5015
    %v5486 = vsub.f32 0.0, %v5021
    %v5487 = vsub.f32 0.0, %v5025
    %v5488 = vmul.f32 %v5456, 1.442695
    %v5489 = vpow.pop %v5488
    %v5490 = vmul.f32 %v5457, 1.442695
    %v5491 = vpow.pop %v5490
    %v5492 = vmul.f32 %v5458, 1.442695
    %v5493 = vpow.pop %v5492
    %v5494 = vmul.f32 %v5459, 1.442695
    %v5495 = vpow.pop %v5494
    %v5496 = vmul.f32 %v5460, 1.442695
    %v5497 = vpow.pop %v5496
    %v5498 = vmul.f32 %v5461, 1.442695
    %v5499 = vpow.pop %v5498
    %v5500 = vmul.f32 %v5462, 1.442695
    %v5501 = vpow.pop %v5500
    %v5502 = vmul.f32 %v5463, 1.442695
    %v5503 = vpow.pop %v5502
    %v5504 = vmul.f32 %v5464, 1.442695
    %v5505 = vpow.pop %v5504
    %v5506 = vmul.f32 %v5465, 1.442695
    %v5507 = vpow.pop %v5506
    %v5508 = vmul.f32 %v5466, 1.442695
    %v5509 = vpow.pop %v5508
    %v5510 = vmul.f32 %v5467, 1.442695
    %v5511 = vpow.pop %v5510
    %v5512 = vmul.f32 %v5468, 1.442695
    %v5513 = vpow.pop %v5512
    %v5514 = vmul.f32 %v5469, 1.442695
    %v5515 = vpow.pop %v5514
    %v5516 = vmul.f32 %v5470, 1.442695
    %v5517 = vpow.pop %v5516
    %v5518 = vmul.f32 %v5471, 1.442695
    %v5519 = vpow.pop %v5518
    %v5520 = vmul.f32 %v5472, 1.442695
    %v5521 = vpow.pop %v5520
    %v5522 = vmul.f32 %v5473, 1.442695
    %v5523 = vpow.pop %v5522
    %v5524 = vmul.f32 %v5474, 1.442695
    %v5525 = vpow.pop %v5524
    %v5526 = vmul.f32 %v5475, 1.442695
    %v5527 = vpow.pop %v5526
    %v5528 = vmul.f32 %v5476, 1.442695
    %v5529 = vpow.pop %v5528
    %v5530 = vmul.f32 %v5477, 1.442695
    %v5531 = vpow.pop %v5530
    %v5532 = vmul.f32 %v5478, 1.442695
    %v5533 = vpow.pop %v5532
    %v5534 = vmul.f32 %v5479, 1.442695
    %v5535 = vpow.pop %v5534
    %v5536 = vmul.f32 %v5480, 1.442695
    %v5537 = vpow.pop %v5536
    %v5538 = vmul.f32 %v5481, 1.442695
    %v5539 = vpow.pop %v5538
    %v5540 = vmul.f32 %v5482, 1.442695
    %v5541 = vpow.pop %v5540
    %v5542 = vmul.f32 %v5483, 1.442695
    %v5543 = vpow.pop %v5542
    %v5544 = vmul.f32 %v5484, 1.442695
    %v5545 = vpow.pop %v5544
    %v5546 = vmul.f32 %v5485, 1.442695
    %v5547 = vpow.pop %v5546
    %v5548 = vmul.f32 %v5486, 1.442695
    %v5549 = vpow.pop %v5548
    %v5550 = vmul.f32 %v5487, 1.442695
    %v5551 = vpow.pop %v5550
    %v5552 = vsub.f32 0.0, %v5300
    %v5553 = vsub.f32 0.0, %v5304
    %v5554 = vsub.f32 0.0, %v5310
    %v5555 = vsub.f32 0.0, %v5314
    %v5556 = vsub.f32 0.0, %v5320
    %v5557 = vsub.f32 0.0, %v5324
    %v5558 = vsub.f32 0.0, %v5330
    %v5559 = vsub.f32 0.0, %v5334
    %v5560 = vsub.f32 0.0, %v5340
    %v5561 = vsub.f32 0.0, %v5344
    %v5562 = vsub.f32 0.0, %v5350
    %v5563 = vsub.f32 0.0, %v5354
    %v5564 = vsub.f32 0.0, %v5360
    %v5565 = vsub.f32 0.0, %v5364
    %v5566 = vsub.f32 0.0, %v5370
    %v5567 = vsub.f32 0.0, %v5374
    %v5568 = vsub.f32 0.0, %v5380
    %v5569 = vsub.f32 0.0, %v5384
    %v5570 = vsub.f32 0.0, %v5390
    %v5571 = vsub.f32 0.0, %v5394
    %v5572 = vsub.f32 0.0, %v5400
    %v5573 = vsub.f32 0.0, %v5404
    %v5574 = vsub.f32 0.0, %v5410
    %v5575 = vsub.f32 0.0, %v5414
    %v5576 = vsub.f32 0.0, %v5420
    %v5577 = vsub.f32 0.0, %v5424
    %v5578 = vsub.f32 0.0, %v5430
    %v5579 = vsub.f32 0.0, %v5434
    %v5580 = vsub.f32 0.0, %v5440
    %v5581 = vsub.f32 0.0, %v5444
    %v5582 = vsub.f32 0.0, %v5450
    %v5583 = vsub.f32 0.0, %v5454
    %v5584 = vmul.f32 %v5552, 1.442695
    %v5585 = vpow.pop %v5584
    %v5586 = vmul.f32 %v5553, 1.442695
    %v5587 = vpow.pop %v5586
    %v5588 = vmul.f32 %v5554, 1.442695
    %v5589 = vpow.pop %v5588
    %v5590 = vmul.f32 %v5555, 1.442695
    %v5591 = vpow.pop %v5590
    %v5592 = vmul.f32 %v5556, 1.442695
    %v5593 = vpow.pop %v5592
    %v5594 = vmul.f32 %v5557, 1.442695
    %v5595 = vpow.pop %v5594
    %v5596 = vmul.f32 %v5558, 1.442695
    %v5597 = vpow.pop %v5596
    %v5598 = vmul.f32 %v5559, 1.442695
    %v5599 = vpow.pop %v5598
    %v5600 = vmul.f32 %v5560, 1.442695
    %v5601 = vpow.pop %v5600
    %v5602 = vmul.f32 %v5561, 1.442695
    %v5603 = vpow.pop %v5602
    %v5604 = vmul.f32 %v5562, 1.442695
    %v5605 = vpow.pop %v5604
    %v5606 = vmul.f32 %v5563, 1.442695
    %v5607 = vpow.pop %v5606
    %v5608 = vmul.f32 %v5564, 1.442695
    %v5609 = vpow.pop %v5608
    %v5610 = vmul.f32 %v5565, 1.442695
    %v5611 = vpow.pop %v5610
    %v5612 = vmul.f32 %v5566, 1.442695
    %v5613 = vpow.pop %v5612
    %v5614 = vmul.f32 %v5567, 1.442695
    %v5615 = vpow.pop %v5614
    %v5616 = vmul.f32 %v5568, 1.442695
    %v5617 = vpow.pop %v5616
    %v5618 = vmul.f32 %v5569, 1.442695
    %v5619 = vpow.pop %v5618
    %v5620 = vmul.f32 %v5570, 1.442695
    %v5621 = vpow.pop %v5620
    %v5622 = vmul.f32 %v5571, 1.442695
    %v5623 = vpow.pop %v5622
    %v5624 = vmul.f32 %v5572, 1.442695
    %v5625 = vpow.pop %v5624
    %v5626 = vmul.f32 %v5573, 1.442695
    %v5627 = vpow.pop %v5626
    %v5628 = vmul.f32 %v5574, 1.442695
    %v5629 = vpow.pop %v5628
    %v5630 = vmul.f32 %v5575, 1.442695
    %v5631 = vpow.pop %v5630
    %v5632 = vmul.f32 %v5576, 1.442695
    %v5633 = vpow.pop %v5632
    %v5634 = vmul.f32 %v5577, 1.442695
    %v5635 = vpow.pop %v5634
    %v5636 = vmul.f32 %v5578, 1.442695
    %v5637 = vpow.pop %v5636
    %v5638 = vmul.f32 %v5579, 1.442695
    %v5639 = vpow.pop %v5638
    %v5640 = vmul.f32 %v5580, 1.442695
    %v5641 = vpow.pop %v5640
    %v5642 = vmul.f32 %v5581, 1.442695
    %v5643 = vpow.pop %v5642
    %v5644 = vmul.f32 %v5582, 1.442695
    %v5645 = vpow.pop %v5644
    %v5646 = vmul.f32 %v5583, 1.442695
    %v5647 = vpow.pop %v5646
    %v5648 = vadd.f32 %v5489, %v5585
    %v5649 = vadd.f32 %v5491, %v5587
    %v5650 = vadd.f32 %v5493, %v5589
    %v5651 = vadd.f32 %v5495, %v5591
    %v5652 = vadd.f32 %v5497, %v5593
    %v5653 = vadd.f32 %v5499, %v5595
    %v5654 = vadd.f32 %v5501, %v5597
    %v5655 = vadd.f32 %v5503, %v5599
    %v5656 = vadd.f32 %v5505, %v5601
    %v5657 = vadd.f32 %v5507, %v5603
    %v5658 = vadd.f32 %v5509, %v5605
    %v5659 = vadd.f32 %v5511, %v5607
    %v5660 = vadd.f32 %v5513, %v5609
    %v5661 = vadd.f32 %v5515, %v5611
    %v5662 = vadd.f32 %v5517, %v5613
    %v5663 = vadd.f32 %v5519, %v5615
    %v5664 = vadd.f32 %v5521, %v5617
    %v5665 = vadd.f32 %v5523, %v5619
    %v5666 = vadd.f32 %v5525, %v5621
    %v5667 = vadd.f32 %v5527, %v5623
    %v5668 = vadd.f32 %v5529, %v5625
    %v5669 = vadd.f32 %v5531, %v5627
    %v5670 = vadd.f32 %v5533, %v5629
    %v5671 = vadd.f32 %v5535, %v5631
    %v5672 = vadd.f32 %v5537, %v5633
    %v5673 = vadd.f32 %v5539, %v5635
    %v5674 = vadd.f32 %v5541, %v5637
    %v5675 = vadd.f32 %v5543, %v5639
    %v5676 = vadd.f32 %v5545, %v5641
    %v5677 = vadd.f32 %v5547, %v5643
    %v5678 = vadd.f32 %v5549, %v5645
    %v5679 = vadd.f32 %v5551, %v5647
    %v5680 = vmul.f32 %v4869, %v5489
    %v5681 = vmul.f32 %v4873, %v5491
    %v5682 = vmul.f32 %v4879, %v5493
    %v5683 = vmul.f32 %v4883, %v5495
    %v5684 = vmul.f32 %v4889, %v5497
    %v5685 = vmul.f32 %v4893, %v5499
    %v5686 = vmul.f32 %v4899, %v5501
    %v5687 = vmul.f32 %v4903, %v5503
    %v5688 = vmul.f32 %v4909, %v5505
    %v5689 = vmul.f32 %v4913, %v5507
    %v5690 = vmul.f32 %v4919, %v5509
    %v5691 = vmul.f32 %v4923, %v5511
    %v5692 = vmul.f32 %v4929, %v5513
    %v5693 = vmul.f32 %v4933, %v5515
    %v5694 = vmul.f32 %v4939, %v5517
    %v5695 = vmul.f32 %v4943, %v5519
    %v5696 = vmul.f32 %v4949, %v5521
    %v5697 = vmul.f32 %v4953, %v5523
    %v5698 = vmul.f32 %v4959, %v5525
    %v5699 = vmul.f32 %v4963, %v5527
    %v5700 = vmul.f32 %v4969, %v5529
    %v5701 = vmul.f32 %v4973, %v5531
    %v5702 = vmul.f32 %v4979, %v5533
    %v5703 = vmul.f32 %v4983, %v5535
    %v5704 = vmul.f32 %v4989, %v5537
    %v5705 = vmul.f32 %v4993, %v5539
    %v5706 = vmul.f32 %v4999, %v5541
    %v5707 = vmul.f32 %v5003, %v5543
    %v5708 = vmul.f32 %v5009, %v5545
    %v5709 = vmul.f32 %v5013, %v5547
    %v5710 = vmul.f32 %v5019, %v5549
    %v5711 = vmul.f32 %v5023, %v5551
    %v5712 = vmul.f32 %v5298, %v5585
    %v5713 = vmul.f32 %v5302, %v5587
    %v5714 = vmul.f32 %v5308, %v5589
    %v5715 = vmul.f32 %v5312, %v5591
    %v5716 = vmul.f32 %v5318, %v5593
    %v5717 = vmul.f32 %v5322, %v5595
    %v5718 = vmul.f32 %v5328, %v5597
    %v5719 = vmul.f32 %v5332, %v5599
    %v5720 = vmul.f32 %v5338, %v5601
    %v5721 = vmul.f32 %v5342, %v5603
    %v5722 = vmul.f32 %v5348, %v5605
    %v5723 = vmul.f32 %v5352, %v5607
    %v5724 = vmul.f32 %v5358, %v5609
    %v5725 = vmul.f32 %v5362, %v5611
    %v5726 = vmul.f32 %v5368, %v5613
    %v5727 = vmul.f32 %v5372, %v5615
    %v5728 = vmul.f32 %v5378, %v5617
    %v5729 = vmul.f32 %v5382, %v5619
    %v5730 = vmul.f32 %v5388, %v5621
    %v5731 = vmul.f32 %v5392, %v5623
    %v5732 = vmul.f32 %v5398, %v5625
    %v5733 = vmul.f32 %v5402, %v5627
    %v5734 = vmul.f32 %v5408, %v5629
    %v5735 = vmul.f32 %v5412, %v5631
    %v5736 = vmul.f32 %v5418, %v5633
    %v5737 = vmul.f32 %v5422, %v5635
    %v5738 = vmul.f32 %v5428, %v5637
    %v5739 = vmul.f32 %v5432, %v5639
    %v5740 = vmul.f32 %v5438, %v5641
    %v5741 = vmul.f32 %v5442, %v5643
    %v5742 = vmul.f32 %v5448, %v5645
    %v5743 = vmul.f32 %v5452, %v5647
    %v5744 = vadd.f32 %v5680, %v5712
    %v5745 = vadd.f32 %v5681, %v5713
    %v5746 = vadd.f32 %v5682, %v5714
    %v5747 = vadd.f32 %v5683, %v5715
    %v5748 = vadd.f32 %v5684, %v5716
    %v5749 = vadd.f32 %v5685, %v5717
    %v5750 = vadd.f32 %v5686, %v5718
    %v5751 = vadd.f32 %v5687, %v5719
    %v5752 = vadd.f32 %v5688, %v5720
    %v5753 = vadd.f32 %v5689, %v5721
    %v5754 = vadd.f32 %v5690, %v5722
    %v5755 = vadd.f32 %v5691, %v5723
    %v5756 = vadd.f32 %v5692, %v5724
    %v5757 = vadd.f32 %v5693, %v5725
    %v5758 = vadd.f32 %v5694, %v5726
    %v5759 = vadd.f32 %v5695, %v5727
    %v5760 = vadd.f32 %v5696, %v5728
    %v5761 = vadd.f32 %v5697, %v5729
    %v5762 = vadd.f32 %v5698, %v5730
    %v5763 = vadd.f32 %v5699, %v5731
    %v5764 = vadd.f32 %v5700, %v5732
    %v5765 = vadd.f32 %v5701, %v5733
    %v5766 = vadd.f32 %v5702, %v5734
    %v5767 = vadd.f32 %v5703, %v5735
    %v5768 = vadd.f32 %v5704, %v5736
    %v5769 = vadd.f32 %v5705, %v5737
    %v5770 = vadd.f32 %v5706, %v5738
    %v5771 = vadd.f32 %v5707, %v5739
    %v5772 = vadd.f32 %v5708, %v5740
    %v5773 = vadd.f32 %v5709, %v5741
    %v5774 = vadd.f32 %v5710, %v5742
    %v5775 = vadd.f32 %v5711, %v5743
    %v5776 = vrcp.pop %v5648
    %v5777 = vrcp.pop %v5649
    %v5778 = vrcp.pop %v5650
    %v5779 = vrcp.pop %v5651
    %v5780 = vrcp.pop %v5652
    %v5781 = vrcp.pop %v5653
    %v5782 = vrcp.pop %v5654
    %v5783 = vrcp.pop %v5655
    %v5784 = vrcp.pop %v5656
    %v5785 = vrcp.pop %v5657
    %v5786 = vrcp.pop %v5658
    %v5787 = vrcp.pop %v5659
    %v5788 = vrcp.pop %v5660
    %v5789 = vrcp.pop %v5661
    %v5790 = vrcp.pop %v5662
    %v5791 = vrcp.pop %v5663
    %v5792 = vrcp.pop %v5664
    %v5793 = vrcp.pop %v5665
    %v5794 = vrcp.pop %v5666
    %v5795 = vrcp.pop %v5667
    %v5796 = vrcp.pop %v5668
    %v5797 = vrcp.pop %v5669
    %v5798 = vrcp.pop %v5670
    %v5799 = vrcp.pop %v5671
    %v5800 = vrcp.pop %v5672
    %v5801 = vrcp.pop %v5673
    %v5802 = vrcp.pop %v5674
    %v5803 = vrcp.pop %v5675
    %v5804 = vrcp.pop %v5676
    %v5805 = vrcp.pop %v5677
    %v5806 = vrcp.pop %v5678
    %v5807 = vrcp.pop %v5679
    %v5808 = vmul.f32 %v5744, %v5776
    %v5809 = vmul.f32 %v5745, %v5777
    %v5810 = vmul.f32 %v5746, %v5778
    %v5811 = vmul.f32 %v5747, %v5779
    %v5812 = vmul.f32 %v5748, %v5780
    %v5813 = vmul.f32 %v5749, %v5781
    %v5814 = vmul.f32 %v5750, %v5782
    %v5815 = vmul.f32 %v5751, %v5783
    %v5816 = vmul.f32 %v5752, %v5784
    %v5817 = vmul.f32 %v5753, %v5785
    %v5818 = vmul.f32 %v5754, %v5786
    %v5819 = vmul.f32 %v5755, %v5787
    %v5820 = vmul.f32 %v5756, %v5788
    %v5821 = vmul.f32 %v5757, %v5789
    %v5822 = vmul.f32 %v5758, %v5790
    %v5823 = vmul.f32 %v5759, %v5791
    %v5824 = vmul.f32 %v5760, %v5792
    %v5825 = vmul.f32 %v5761, %v5793
    %v5826 = vmul.f32 %v5762, %v5794
    %v5827 = vmul.f32 %v5763, %v5795
    %v5828 = vmul.f32 %v5764, %v5796
    %v5829 = vmul.f32 %v5765, %v5797
    %v5830 = vmul.f32 %v5766, %v5798
    %v5831 = vmul.f32 %v5767, %v5799
    %v5832 = vmul.f32 %v5768, %v5800
    %v5833 = vmul.f32 %v5769, %v5801
    %v5834 = vmul.f32 %v5770, %v5802
    %v5835 = vmul.f32 %v5771, %v5803
    %v5836 = vmul.f32 %v5772, %v5804
    %v5837 = vmul.f32 %v5773, %v5805
    %v5838 = vmul.f32 %v5774, %v5806
    %v5839 = vmul.f32 %v5775, %v5807
    %v5840 = vrsqrt.pop %v5648
    %v5841 = vrsqrt.pop %v5649
    %v5842 = vrsqrt.pop %v5650
    %v5843 = vrsqrt.pop %v5651
    %v5844 = vrsqrt.pop %v5652
    %v5845 = vrsqrt.pop %v5653
    %v5846 = vrsqrt.pop %v5654
    %v5847 = vrsqrt.pop %v5655
    %v5848 = vrsqrt.pop %v5656
    %v5849 = vrsqrt.pop %v5657
    %v5850 = vrsqrt.pop %v5658
    %v5851 = vrsqrt.pop %v5659
    %v5852 = vrsqrt.pop %v5660
    %v5853 = vrsqrt.pop %v5661
    %v5854 = vrsqrt.pop %v5662
    %v5855 = vrsqrt.pop %v5663
    %v5856 = vrsqrt.pop %v5664
    %v5857 = vrsqrt.pop %v5665
    %v5858 = vrsqrt.pop %v5666
    %v5859 = vrsqrt.pop %v5667
    %v5860 = vrsqrt.pop %v5668
    %v5861 = vrsqrt.pop %v5669
    %v5862 = vrsqrt.pop %v5670
    %v5863 = vrsqrt.pop %v5671
    %v5864 = vrsqrt.pop %v5672
    %v5865 = vrsqrt.pop %v5673
    %v5866 = vrsqrt.pop %v5674
    %v5867 = vrsqrt.pop %v5675
    %v5868 = vrsqrt.pop %v5676
    %v5869 = vrsqrt.pop %v5677
    %v5870 = vrsqrt.pop %v5678
    %v5871 = vrsqrt.pop %v5679
    %v5872 = vld [vmem:[%s2] sm:$0xff]
    %v5873 = vld [vmem:[%s2 + $0x8] sm:$0xff]
    %v5874 = vld [vmem:[%s2 + $0x10] sm:$0xff]
    %v5875 = vld [vmem:[%s2 + $0x18] sm:$0xff]
    %v5876 = vld [vmem:[%s2 + $0x20] sm:$0xff]
    %v5877 = vld [vmem:[%s2 + $0x28] sm:$0xff]
    %v5878 = vld [vmem:[%s2 + $0x30] sm:$0xff]
    %v5879 = vld [vmem:[%s2 + $0x38] sm:$0xff]
    %v5880 = vld [vmem:[%s2 + $0x40] sm:$0xff]
    %v5881 = vld [vmem:[%s2 + $0x48] sm:$0xff]
    %v5882 = vld [vmem:[%s2 + $0x50] sm:$0xff]
    %v5883 = vld [vmem:[%s2 + $0x58] sm:$0xff]
    %v5884 = vld [vmem:[%s2 + $0x60] sm:$0xff]
    %v5885 = vld [vmem:[%s2 + $0x68] sm:$0xff]
    %v5886 = vld [vmem:[%s2 + $0x70] sm:$0xff]
    %v5887 = vld [vmem:[%s2 + $0x78] sm:$0xff]
    %v5888 = vld [vmem:[%s2 + $0x80] sm:$0xff]
    %v5889 = vld [vmem:[%s2 + $0x88] sm:$0xff]
    %v5890 = vld [vmem:[%s2 + $0x90] sm:$0xff]
    %v5891 = vld [vmem:[%s2 + $0x98] sm:$0xff]
    %v5892 = vld [vmem:[%s2 + $0xa0] sm:$0xff]
    %v5893 = vld [vmem:[%s2 + $0xa8] sm:$0xff]
    %v5894 = vld [vmem:[%s2 + $0xb0] sm:$0xff]
    %v5895 = vld [vmem:[%s2 + $0xb8] sm:$0xff]
    %v5896 = vld [vmem:[%s2 + $0xc0] sm:$0xff]
    %v5897 = vld [vmem:[%s2 + $0xc8] sm:$0xff]
    %v5898 = vld [vmem:[%s2 + $0xd0] sm:$0xff]
    %v5899 = vld [vmem:[%s2 + $0xd8] sm:$0xff]
    %v5900 = vld [vmem:[%s2 + $0xe0] sm:$0xff]
    %v5901 = vld [vmem:[%s2 + $0xe8] sm:$0xff]
    %v5902 = vld [vmem:[%s2 + $0xf0] sm:$0xff]
    %v5903 = vld [vmem:[%s2 + $0xf8] sm:$0xff]
    %v5904 = vmul.f32 %v5872, %v5840
    %v5905 = vmul.f32 %v5873, %v5841
    %v5906 = vmul.f32 %v5874, %v5842
    %v5907 = vmul.f32 %v5875, %v5843
    %v5908 = vmul.f32 %v5876, %v5844
    %v5909 = vmul.f32 %v5877, %v5845
    %v5910 = vmul.f32 %v5878, %v5846
    %v5911 = vmul.f32 %v5879, %v5847
    %v5912 = vmul.f32 %v5880, %v5848
    %v5913 = vmul.f32 %v5881, %v5849
    %v5914 = vmul.f32 %v5882, %v5850
    %v5915 = vmul.f32 %v5883, %v5851
    %v5916 = vmul.f32 %v5884, %v5852
    %v5917 = vmul.f32 %v5885, %v5853
    %v5918 = vmul.f32 %v5886, %v5854
    %v5919 = vmul.f32 %v5887, %v5855
    %v5920 = vmul.f32 %v5888, %v5856
    %v5921 = vmul.f32 %v5889, %v5857
    %v5922 = vmul.f32 %v5890, %v5858
    %v5923 = vmul.f32 %v5891, %v5859
    %v5924 = vmul.f32 %v5892, %v5860
    %v5925 = vmul.f32 %v5893, %v5861
    %v5926 = vmul.f32 %v5894, %v5862
    %v5927 = vmul.f32 %v5895, %v5863
    %v5928 = vmul.f32 %v5896, %v5864
    %v5929 = vmul.f32 %v5897, %v5865
    %v5930 = vmul.f32 %v5898, %v5866
    %v5931 = vmul.f32 %v5899, %v5867
    %v5932 = vmul.f32 %v5900, %v5868
    %v5933 = vmul.f32 %v5901, %v5869
    %v5934 = vmul.f32 %v5902, %v5870
    %v5935 = vmul.f32 %v5903, %v5871
    %v5936 = vadd.f32 %v5808, %v5904
    %v5937 = vadd.f32 %v5809, %v5905
    %v5938 = vadd.f32 %v5810, %v5906
    %v5939 = vadd.f32 %v5811, %v5907
    %v5940 = vadd.f32 %v5812, %v5908
    %v5941 = vadd.f32 %v5813, %v5909
    %v5942 = vadd.f32 %v5814, %v5910
    %v5943 = vadd.f32 %v5815, %v5911
    %v5944 = vadd.f32 %v5816, %v5912
    %v5945 = vadd.f32 %v5817, %v5913
    %v5946 = vadd.f32 %v5818, %v5914
    %v5947 = vadd.f32 %v5819, %v5915
    %v5948 = vadd.f32 %v5820, %v5916
    %v5949 = vadd.f32 %v5821, %v5917
    %v5950 = vadd.f32 %v5822, %v5918
    %v5951 = vadd.f32 %v5823, %v5919
    %v5952 = vadd.f32 %v5824, %v5920
    %v5953 = vadd.f32 %v5825, %v5921
    %v5954 = vadd.f32 %v5826, %v5922
    %v5955 = vadd.f32 %v5827, %v5923
    %v5956 = vadd.f32 %v5828, %v5924
    %v5957 = vadd.f32 %v5829, %v5925
    %v5958 = vadd.f32 %v5830, %v5926
    %v5959 = vadd.f32 %v5831, %v5927
    %v5960 = vadd.f32 %v5832, %v5928
    %v5961 = vadd.f32 %v5833, %v5929
    %v5962 = vadd.f32 %v5834, %v5930
    %v5963 = vadd.f32 %v5835, %v5931
    %v5964 = vadd.f32 %v5836, %v5932
    %v5965 = vadd.f32 %v5837, %v5933
    %v5966 = vadd.f32 %v5838, %v5934
    %v5967 = vadd.f32 %v5839, %v5935
    %v5968 = vld [vmem:[#allocation4] sm:$0xf]
    %v5969 = vld [vmem:[#allocation4 + $0x4] sm:$0xf]
    %v5970 = vld [vmem:[#allocation4 + $0x8] sm:$0xf]
    %v5971 = vld [vmem:[#allocation4 + $0xc] sm:$0xf]
    %v5972 = vld [vmem:[#allocation4 + $0x10] sm:$0xf]
    %v5973 = vld [vmem:[#allocation4 + $0x14] sm:$0xf]
    %v5974 = vld [vmem:[#allocation4 + $0x18] sm:$0xf]
    %v5975 = vld [vmem:[#allocation4 + $0x1c] sm:$0xf]
    %v5976 = vld [vmem:[#allocation4 + $0x20] sm:$0xf]
    %v5977 = vld [vmem:[#allocation4 + $0x24] sm:$0xf]
    %v5978 = vld [vmem:[#allocation4 + $0x28] sm:$0xf]
    %v5979 = vld [vmem:[#allocation4 + $0x2c] sm:$0xf]
    %v5980 = vld [vmem:[#allocation4 + $0x30] sm:$0xf]
    %v5981 = vld [vmem:[#allocation4 + $0x34] sm:$0xf]
    %v5982 = vld [vmem:[#allocation4 + $0x38] sm:$0xf]
    %v5983 = vld [vmem:[#allocation4 + $0x3c] sm:$0xf]
    %v5984 = vld [vmem:[%s8 + $0x12] sm:$0x1]
    %v5985 = vpack.c.bf16 %v5937, %v5936
    %v5986 = vpack.c.bf16 %v5939, %v5938
    %v5987 = vpack.c.bf16 %v5941, %v5940
    %v5988 = vpack.c.bf16 %v5943, %v5942
    %v5989 = vpack.c.bf16 %v5945, %v5944
    %v5990 = vpack.c.bf16 %v5947, %v5946
    %v5991 = vpack.c.bf16 %v5949, %v5948
    %v5992 = vpack.c.bf16 %v5951, %v5950
    %v5993 = vpack.c.bf16 %v5953, %v5952
    %v5994 = vpack.c.bf16 %v5955, %v5954
    %v5995 = vpack.c.bf16 %v5957, %v5956
    %v5996 = vpack.c.bf16 %v5959, %v5958
    %v5997 = vpack.c.bf16 %v5961, %v5960
    %v5998 = vpack.c.bf16 %v5963, %v5962
    %v5999 = vpack.c.bf16 %v5965, %v5964
    %v6000 = vpack.c.bf16 %v5967, %v5966
    %v6002 = vlaneseq
    %v6003 = vshrl.u32 %v6002, 7
    %v6004 = vsub.s32 0, %v6003
    %v6005 = vrot.slane %v5984, %v6004
    %v6023 = vunpack.c.l.b16 %v5968
    %v6024 = vunpack.c.l.b16 %v5969
    %v6025 = vunpack.c.l.b16 %v5970
    %v6026 = vunpack.c.l.b16 %v5971
    %v6027 = vunpack.c.l.b16 %v5972
    %v6028 = vunpack.c.l.b16 %v5973
    %v6029 = vunpack.c.l.b16 %v5974
    %v6030 = vunpack.c.l.b16 %v5975
    %v6031 = vunpack.c.l.b16 %v5976
    %v6032 = vunpack.c.l.b16 %v5977
    %v6033 = vunpack.c.l.b16 %v5978
    %v6034 = vunpack.c.l.b16 %v5979
    %v6035 = vunpack.c.l.b16 %v5980
    %v6036 = vunpack.c.l.b16 %v5981
    %v6037 = vunpack.c.l.b16 %v5982
    %v6038 = vunpack.c.l.b16 %v5983
    %v6039 = vpack.c.b16 %v6024, %v6023
    %v6040 = vpack.c.b16 %v6026, %v6025
    %v6041 = vpack.c.b16 %v6028, %v6027
    %v6042 = vpack.c.b16 %v6030, %v6029
    %v6043 = vpack.c.b16 %v6032, %v6031
    %v6044 = vpack.c.b16 %v6034, %v6033
    %v6045 = vpack.c.b16 %v6036, %v6035
    %v6046 = vpack.c.b16 %v6038, %v6037
    %6055 = vmatprep.subr.bf16.mxu0 0
    %6056 = vmatpush1.bf16.msra.mxu0 %v6046
    %6057 = vmatprep.subr.bf16.mxu0 0
    %6058 = vmatpush1.bf16.msra.mxu0 %v6045
    %6059 = vmatprep.subr.bf16.mxu0 0
    %6060 = vmatpush1.bf16.msra.mxu0 %v6044
    %6061 = vmatprep.subr.bf16.mxu0 0
    %6062 = vmatpush1.bf16.msra.mxu0 %v6043
    %6063 = vmatprep.subr.bf16.mxu0 0
    %6064 = vmatpush1.bf16.msra.mxu0 %v6042
    %6065 = vmatprep.subr.bf16.mxu0 0
    %6066 = vmatpush1.bf16.msra.mxu0 %v6041
    %6067 = vmatprep.subr.bf16.mxu0 0
    %6068 = vmatpush1.bf16.msra.mxu0 %v6040
    %6069 = vmatprep.subr.bf16.mxu0 0
    %6070 = vmatpush1.bf16.msra.mxu0 %v6039
    %6071 = vmatprep.subr.bf16.mxu0 0
    %6072 = vmatpush2.bf16.msra.mxu0 0
    %6073 = vmatprep.subr.bf16.mxu0 0
    %6074 = vmatpush2.bf16.msra.mxu0 0
    %6075 = vmatprep.subr.bf16.mxu0 0
    %6076 = vmatpush2.bf16.msra.mxu0 0
    %6077 = vmatprep.subr.bf16.mxu0 0
    %6078 = vmatpush2.bf16.msra.mxu0 0
    %6079 = vmatprep.subr.bf16.mxu0 0
    %6080 = vmatpush2.bf16.msra.mxu0 0
    %6081 = vmatprep.subr.bf16.mxu0 0
    %6082 = vmatpush2.bf16.msra.mxu0 0
    %6083 = vmatprep.subr.bf16.mxu0 0
    %6084 = vmatpush2.bf16.msra.mxu0 0
    %6085 = vmatprep.subr.bf16.mxu0 0
    %6086 = vmatpush2.bf16.msra.mxu0 0
    %6087 = vmatprep.mubr.bf16.mxu0 0
    %6088 = vmatmul.mubr.bf16.gmra.mxu0 %v5985
    %v6089 = vpop.f32.mrf.mxu0
    %v6090 = vadd.f32 %v6005, %v6089
    %v6091 = vpop.f32.mrf.mxu0
    %v6092 = vpop.f32.mrf.mxu0
    %v6093 = vadd.f32 %v6005, %v6092
    %v6094 = vpop.f32.mrf.mxu0
    %6095 = vmatprep.mubr.bf16.mxu0 0
    %6096 = vmatmul.mubr.bf16.gmra.mxu0 %v5986
    %v6097 = vpop.f32.mrf.mxu0
    %v6098 = vadd.f32 %v6005, %v6097
    %v6099 = vpop.f32.mrf.mxu0
    %v6100 = vpop.f32.mrf.mxu0
    %v6101 = vadd.f32 %v6005, %v6100
    %v6102 = vpop.f32.mrf.mxu0
    %6103 = vmatprep.mubr.bf16.mxu0 0
    %6104 = vmatmul.mubr.bf16.gmra.mxu0 %v5987
    %v6105 = vpop.f32.mrf.mxu0
    %v6106 = vadd.f32 %v6005, %v6105
    %v6107 = vpop.f32.mrf.mxu0
    %v6108 = vpop.f32.mrf.mxu0
    %v6109 = vadd.f32 %v6005, %v6108
    %v6110 = vpop.f32.mrf.mxu0
    %6111 = vmatprep.mubr.bf16.mxu0 0
    %6112 = vmatmul.mubr.bf16.gmra.mxu0 %v5988
    %v6113 = vpop.f32.mrf.mxu0
    %v6114 = vadd.f32 %v6005, %v6113
    %v6115 = vpop.f32.mrf.mxu0
    %v6116 = vpop.f32.mrf.mxu0
    %v6117 = vadd.f32 %v6005, %v6116
    %v6118 = vpop.f32.mrf.mxu0
    %6119 = vmatprep.mubr.bf16.mxu0 0
    %6120 = vmatmul.mubr.bf16.gmra.mxu0 %v5989
    %v6121 = vpop.f32.mrf.mxu0
    %v6122 = vadd.f32 %v6005, %v6121
    %v6123 = vpop.f32.mrf.mxu0
    %v6124 = vpop.f32.mrf.mxu0
    %v6125 = vadd.f32 %v6005, %v6124
    %v6126 = vpop.f32.mrf.mxu0
    %6127 = vmatprep.mubr.bf16.mxu0 0
    %6128 = vmatmul.mubr.bf16.gmra.mxu0 %v5990
    %v6129 = vpop.f32.mrf.mxu0
    %v6130 = vadd.f32 %v6005, %v6129
    %v6131 = vpop.f32.mrf.mxu0
    %v6132 = vpop.f32.mrf.mxu0
    %v6133 = vadd.f32 %v6005, %v6132
    %v6134 = vpop.f32.mrf.mxu0
    %6135 = vmatprep.mubr.bf16.mxu0 0
    %6136 = vmatmul.mubr.bf16.gmra.mxu0 %v5991
    %v6137 = vpop.f32.mrf.mxu0
    %v6138 = vadd.f32 %v6005, %v6137
    %v6139 = vpop.f32.mrf.mxu0
    %v6140 = vpop.f32.mrf.mxu0
    %v6141 = vadd.f32 %v6005, %v6140
    %v6142 = vpop.f32.mrf.mxu0
    %6143 = vmatprep.mubr.bf16.mxu0 0
    %6144 = vmatmul.mubr.bf16.gmra.mxu0 %v5992
    %v6145 = vpop.f32.mrf.mxu0
    %v6146 = vadd.f32 %v6005, %v6145
    %v6147 = vpop.f32.mrf.mxu0
    %v6148 = vpop.f32.mrf.mxu0
    %v6149 = vadd.f32 %v6005, %v6148
    %v6150 = vpop.f32.mrf.mxu0
    %6151 = vmatprep.mubr.bf16.mxu0 0
    %6152 = vmatmul.mubr.bf16.gmra.mxu0 %v5993
    %v6153 = vpop.f32.mrf.mxu0
    %v6154 = vadd.f32 %v6005, %v6153
    %v6155 = vpop.f32.mrf.mxu0
    %v6156 = vpop.f32.mrf.mxu0
    %v6157 = vadd.f32 %v6005, %v6156
    %v6158 = vpop.f32.mrf.mxu0
    %6159 = vmatprep.mubr.bf16.mxu0 0
    %6160 = vmatmul.mubr.bf16.gmra.mxu0 %v5994
    %v6161 = vpop.f32.mrf.mxu0
    %v6162 = vadd.f32 %v6005, %v6161
    %v6163 = vpop.f32.mrf.mxu0
    %v6164 = vpop.f32.mrf.mxu0
    %v6165 = vadd.f32 %v6005, %v6164
    %v6166 = vpop.f32.mrf.mxu0
    %6167 = vmatprep.mubr.bf16.mxu0 0
    %6168 = vmatmul.mubr.bf16.gmra.mxu0 %v5995
    %v6169 = vpop.f32.mrf.mxu0
    %v6170 = vadd.f32 %v6005, %v6169
    %v6171 = vpop.f32.mrf.mxu0
    %v6172 = vpop.f32.mrf.mxu0
    %v6173 = vadd.f32 %v6005, %v6172
    %v6174 = vpop.f32.mrf.mxu0
    %6175 = vmatprep.mubr.bf16.mxu0 0
    %6176 = vmatmul.mubr.bf16.gmra.mxu0 %v5996
    %v6177 = vpop.f32.mrf.mxu0
    %v6178 = vadd.f32 %v6005, %v6177
    %v6179 = vpop.f32.mrf.mxu0
    %v6180 = vpop.f32.mrf.mxu0
    %v6181 = vadd.f32 %v6005, %v6180
    %v6182 = vpop.f32.mrf.mxu0
    %6183 = vmatprep.mubr.bf16.mxu0 0
    %6184 = vmatmul.mubr.bf16.gmra.mxu0 %v5997
    %v6185 = vpop.f32.mrf.mxu0
    %v6186 = vadd.f32 %v6005, %v6185
    %v6187 = vpop.f32.mrf.mxu0
    %v6188 = vpop.f32.mrf.mxu0
    %v6189 = vadd.f32 %v6005, %v6188
    %v6190 = vpop.f32.mrf.mxu0
    %6191 = vmatprep.mubr.bf16.mxu0 0
    %6192 = vmatmul.mubr.bf16.gmra.mxu0 %v5998
    %v6193 = vpop.f32.mrf.mxu0
    %v6194 = vadd.f32 %v6005, %v6193
    %v6195 = vpop.f32.mrf.mxu0
    %v6196 = vpop.f32.mrf.mxu0
    %v6197 = vadd.f32 %v6005, %v6196
    %v6198 = vpop.f32.mrf.mxu0
    %6199 = vmatprep.mubr.bf16.mxu0 0
    %6200 = vmatmul.mubr.bf16.gmra.mxu0 %v5999
    %v6201 = vpop.f32.mrf.mxu0
    %v6202 = vadd.f32 %v6005, %v6201
    %v6203 = vpop.f32.mrf.mxu0
    %v6204 = vpop.f32.mrf.mxu0
    %v6205 = vadd.f32 %v6005, %v6204
    %v6206 = vpop.f32.mrf.mxu0
    %6207 = vmatprep.mubr.bf16.mxu0 0
    %6208 = vmatmul.mubr.bf16.gmra.mxu0 %v6000
    %v6209 = vpop.f32.mrf.mxu0
    %v6210 = vadd.f32 %v6005, %v6209
    %v6211 = vpop.f32.mrf.mxu0
    %v6212 = vpop.f32.mrf.mxu0
    %v6213 = vadd.f32 %v6005, %v6212
    %v6214 = vpop.f32.mrf.mxu0
    %6215 = vdwg.mxu0
    %v6216 = vmax.f32 %v6090, 0.0
    %v6217 = vmax.f32 %v6093, 0.0
    %v6218 = vmax.f32 %v6098, 0.0
    %v6219 = vmax.f32 %v6101, 0.0
    %v6220 = vmax.f32 %v6106, 0.0
    %v6221 = vmax.f32 %v6109, 0.0
    %v6222 = vmax.f32 %v6114, 0.0
    %v6223 = vmax.f32 %v6117, 0.0
    %v6224 = vmax.f32 %v6122, 0.0
    %v6225 = vmax.f32 %v6125, 0.0
    %v6226 = vmax.f32 %v6130, 0.0
    %v6227 = vmax.f32 %v6133, 0.0
    %v6228 = vmax.f32 %v6138, 0.0
    %v6229 = vmax.f32 %v6141, 0.0
    %v6230 = vmax.f32 %v6146, 0.0
    %v6231 = vmax.f32 %v6149, 0.0
    %v6232 = vmax.f32 %v6154, 0.0
    %v6233 = vmax.f32 %v6157, 0.0
    %v6234 = vmax.f32 %v6162, 0.0
    %v6235 = vmax.f32 %v6165, 0.0
    %v6236 = vmax.f32 %v6170, 0.0
    %v6237 = vmax.f32 %v6173, 0.0
    %v6238 = vmax.f32 %v6178, 0.0
    %v6239 = vmax.f32 %v6181, 0.0
    %v6240 = vmax.f32 %v6186, 0.0
    %v6241 = vmax.f32 %v6189, 0.0
    %v6242 = vmax.f32 %v6194, 0.0
    %v6243 = vmax.f32 %v6197, 0.0
    %v6244 = vmax.f32 %v6202, 0.0
    %v6245 = vmax.f32 %v6205, 0.0
    %v6246 = vmax.f32 %v6210, 0.0
    %v6247 = vmax.f32 %v6213, 0.0
    %v6248 = vld [vmem:[#allocation4 + $0x40] sm:$0xf]
    %v6249 = vld [vmem:[#allocation4 + $0x44] sm:$0xf]
    %v6250 = vld [vmem:[#allocation4 + $0x48] sm:$0xf]
    %v6251 = vld [vmem:[#allocation4 + $0x4c] sm:$0xf]
    %v6252 = vld [vmem:[#allocation4 + $0x50] sm:$0xf]
    %v6253 = vld [vmem:[#allocation4 + $0x54] sm:$0xf]
    %v6254 = vld [vmem:[#allocation4 + $0x58] sm:$0xf]
    %v6255 = vld [vmem:[#allocation4 + $0x5c] sm:$0xf]
    %v6256 = vld [vmem:[#allocation4 + $0x60] sm:$0xf]
    %v6257 = vld [vmem:[#allocation4 + $0x64] sm:$0xf]
    %v6258 = vld [vmem:[#allocation4 + $0x68] sm:$0xf]
    %v6259 = vld [vmem:[#allocation4 + $0x6c] sm:$0xf]
    %v6260 = vld [vmem:[#allocation4 + $0x70] sm:$0xf]
    %v6261 = vld [vmem:[#allocation4 + $0x74] sm:$0xf]
    %v6262 = vld [vmem:[#allocation4 + $0x78] sm:$0xf]
    %v6263 = vld [vmem:[#allocation4 + $0x7c] sm:$0xf]
    %v6264 = vld [vmem:[%s8 + $0x13] sm:$0x1]
    %v6265 = vpack.c.bf16 %v6217, %v6216
    %v6266 = vpack.c.bf16 %v6219, %v6218
    %v6267 = vpack.c.bf16 %v6221, %v6220
    %v6268 = vpack.c.bf16 %v6223, %v6222
    %v6269 = vpack.c.bf16 %v6225, %v6224
    %v6270 = vpack.c.bf16 %v6227, %v6226
    %v6271 = vpack.c.bf16 %v6229, %v6228
    %v6272 = vpack.c.bf16 %v6231, %v6230
    %v6273 = vpack.c.bf16 %v6233, %v6232
    %v6274 = vpack.c.bf16 %v6235, %v6234
    %v6275 = vpack.c.bf16 %v6237, %v6236
    %v6276 = vpack.c.bf16 %v6239, %v6238
    %v6277 = vpack.c.bf16 %v6241, %v6240
    %v6278 = vpack.c.bf16 %v6243, %v6242
    %v6279 = vpack.c.bf16 %v6245, %v6244
    %v6280 = vpack.c.bf16 %v6247, %v6246
    %v6282 = vlaneseq
    %v6283 = vshrl.u32 %v6282, 7
    %v6284 = vsub.s32 0, %v6283
    %v6285 = vrot.slane %v6264, %v6284
    %v6303 = vunpack.c.l.b16 %v6248
    %v6304 = vunpack.c.l.b16 %v6249
    %v6305 = vunpack.c.l.b16 %v6250
    %v6306 = vunpack.c.l.b16 %v6251
    %v6307 = vunpack.c.l.b16 %v6252
    %v6308 = vunpack.c.l.b16 %v6253
    %v6309 = vunpack.c.l.b16 %v6254
    %v6310 = vunpack.c.l.b16 %v6255
    %v6311 = vunpack.c.l.b16 %v6256
    %v6312 = vunpack.c.l.b16 %v6257
    %v6313 = vunpack.c.l.b16 %v6258
    %v6314 = vunpack.c.l.b16 %v6259
    %v6315 = vunpack.c.l.b16 %v6260
    %v6316 = vunpack.c.l.b16 %v6261
    %v6317 = vunpack.c.l.b16 %v6262
    %v6318 = vunpack.c.l.b16 %v6263
    %v6319 = vpack.c.b16 %v6304, %v6303
    %v6320 = vpack.c.b16 %v6306, %v6305
    %v6321 = vpack.c.b16 %v6308, %v6307
    %v6322 = vpack.c.b16 %v6310, %v6309
    %v6323 = vpack.c.b16 %v6312, %v6311
    %v6324 = vpack.c.b16 %v6314, %v6313
    %v6325 = vpack.c.b16 %v6316, %v6315
    %v6326 = vpack.c.b16 %v6318, %v6317
    %6335 = vmatprep.subr.bf16.mxu0 0
    %6336 = vmatpush1.bf16.msra.mxu0 %v6326
    %6337 = vmatprep.subr.bf16.mxu0 0
    %6338 = vmatpush1.bf16.msra.mxu0 %v6325
    %6339 = vmatprep.subr.bf16.mxu0 0
    %6340 = vmatpush1.bf16.msra.mxu0 %v6324
    %6341 = vmatprep.subr.bf16.mxu0 0
    %6342 = vmatpush1.bf16.msra.mxu0 %v6323
    %6343 = vmatprep.subr.bf16.mxu0 0
    %6344 = vmatpush1.bf16.msra.mxu0 %v6322
    %6345 = vmatprep.subr.bf16.mxu0 0
    %6346 = vmatpush1.bf16.msra.mxu0 %v6321
    %6347 = vmatprep.subr.bf16.mxu0 0
    %6348 = vmatpush1.bf16.msra.mxu0 %v6320
    %6349 = vmatprep.subr.bf16.mxu0 0
    %6350 = vmatpush1.bf16.msra.mxu0 %v6319
    %6351 = vmatprep.subr.bf16.mxu0 0
    %6352 = vmatpush2.bf16.msra.mxu0 0
    %6353 = vmatprep.subr.bf16.mxu0 0
    %6354 = vmatpush2.bf16.msra.mxu0 0
    %6355 = vmatprep.subr.bf16.mxu0 0
    %6356 = vmatpush2.bf16.msra.mxu0 0
    %6357 = vmatprep.subr.bf16.mxu0 0
    %6358 = vmatpush2.bf16.msra.mxu0 0
    %6359 = vmatprep.subr.bf16.mxu0 0
    %6360 = vmatpush2.bf16.msra.mxu0 0
    %6361 = vmatprep.subr.bf16.mxu0 0
    %6362 = vmatpush2.bf16.msra.mxu0 0
    %6363 = vmatprep.subr.bf16.mxu0 0
    %6364 = vmatpush2.bf16.msra.mxu0 0
    %6365 = vmatprep.subr.bf16.mxu0 0
    %6366 = vmatpush2.bf16.msra.mxu0 0
    %6367 = vmatprep.mubr.bf16.mxu0 0
    %6368 = vmatmul.mubr.bf16.gmra.mxu0 %v6265
    %v6369 = vpop.f32.mrf.mxu0
    %v6370 = vadd.f32 %v6285, %v6369
    %v6371 = vpop.f32.mrf.mxu0
    %v6372 = vpop.f32.mrf.mxu0
    %v6373 = vadd.f32 %v6285, %v6372
    %v6374 = vpop.f32.mrf.mxu0
    %6375 = vmatprep.mubr.bf16.mxu0 0
    %6376 = vmatmul.mubr.bf16.gmra.mxu0 %v6266
    %v6377 = vpop.f32.mrf.mxu0
    %v6378 = vadd.f32 %v6285, %v6377
    %v6379 = vpop.f32.mrf.mxu0
    %v6380 = vpop.f32.mrf.mxu0
    %v6381 = vadd.f32 %v6285, %v6380
    %v6382 = vpop.f32.mrf.mxu0
    %6383 = vmatprep.mubr.bf16.mxu0 0
    %6384 = vmatmul.mubr.bf16.gmra.mxu0 %v6267
    %v6385 = vpop.f32.mrf.mxu0
    %v6386 = vadd.f32 %v6285, %v6385
    %v6387 = vpop.f32.mrf.mxu0
    %v6388 = vpop.f32.mrf.mxu0
    %v6389 = vadd.f32 %v6285, %v6388
    %v6390 = vpop.f32.mrf.mxu0
    %6391 = vmatprep.mubr.bf16.mxu0 0
    %6392 = vmatmul.mubr.bf16.gmra.mxu0 %v6268
    %v6393 = vpop.f32.mrf.mxu0
    %v6394 = vadd.f32 %v6285, %v6393
    %v6395 = vpop.f32.mrf.mxu0
    %v6396 = vpop.f32.mrf.mxu0
    %v6397 = vadd.f32 %v6285, %v6396
    %v6398 = vpop.f32.mrf.mxu0
    %6399 = vmatprep.mubr.bf16.mxu0 0
    %6400 = vmatmul.mubr.bf16.gmra.mxu0 %v6269
    %v6401 = vpop.f32.mrf.mxu0
    %v6402 = vadd.f32 %v6285, %v6401
    %v6403 = vpop.f32.mrf.mxu0
    %v6404 = vpop.f32.mrf.mxu0
    %v6405 = vadd.f32 %v6285, %v6404
    %v6406 = vpop.f32.mrf.mxu0
    %6407 = vmatprep.mubr.bf16.mxu0 0
    %6408 = vmatmul.mubr.bf16.gmra.mxu0 %v6270
    %v6409 = vpop.f32.mrf.mxu0
    %v6410 = vadd.f32 %v6285, %v6409
    %v6411 = vpop.f32.mrf.mxu0
    %v6412 = vpop.f32.mrf.mxu0
    %v6413 = vadd.f32 %v6285, %v6412
    %v6414 = vpop.f32.mrf.mxu0
    %6415 = vmatprep.mubr.bf16.mxu0 0
    %6416 = vmatmul.mubr.bf16.gmra.mxu0 %v6271
    %v6417 = vpop.f32.mrf.mxu0
    %v6418 = vadd.f32 %v6285, %v6417
    %v6419 = vpop.f32.mrf.mxu0
    %v6420 = vpop.f32.mrf.mxu0
    %v6421 = vadd.f32 %v6285, %v6420
    %v6422 = vpop.f32.mrf.mxu0
    %6423 = vmatprep.mubr.bf16.mxu0 0
    %6424 = vmatmul.mubr.bf16.gmra.mxu0 %v6272
    %v6425 = vpop.f32.mrf.mxu0
    %v6426 = vadd.f32 %v6285, %v6425
    %v6427 = vpop.f32.mrf.mxu0
    %v6428 = vpop.f32.mrf.mxu0
    %v6429 = vadd.f32 %v6285, %v6428
    %v6430 = vpop.f32.mrf.mxu0
    %6431 = vmatprep.mubr.bf16.mxu0 0
    %6432 = vmatmul.mubr.bf16.gmra.mxu0 %v6273
    %v6433 = vpop.f32.mrf.mxu0
    %v6434 = vadd.f32 %v6285, %v6433
    %v6435 = vpop.f32.mrf.mxu0
    %v6436 = vpop.f32.mrf.mxu0
    %v6437 = vadd.f32 %v6285, %v6436
    %v6438 = vpop.f32.mrf.mxu0
    %6439 = vmatprep.mubr.bf16.mxu0 0
    %6440 = vmatmul.mubr.bf16.gmra.mxu0 %v6274
    %v6441 = vpop.f32.mrf.mxu0
    %v6442 = vadd.f32 %v6285, %v6441
    %v6443 = vpop.f32.mrf.mxu0
    %v6444 = vpop.f32.mrf.mxu0
    %v6445 = vadd.f32 %v6285, %v6444
    %v6446 = vpop.f32.mrf.mxu0
    %6447 = vmatprep.mubr.bf16.mxu0 0
    %6448 = vmatmul.mubr.bf16.gmra.mxu0 %v6275
    %v6449 = vpop.f32.mrf.mxu0
    %v6450 = vadd.f32 %v6285, %v6449
    %v6451 = vpop.f32.mrf.mxu0
    %v6452 = vpop.f32.mrf.mxu0
    %v6453 = vadd.f32 %v6285, %v6452
    %v6454 = vpop.f32.mrf.mxu0
    %6455 = vmatprep.mubr.bf16.mxu0 0
    %6456 = vmatmul.mubr.bf16.gmra.mxu0 %v6276
    %v6457 = vpop.f32.mrf.mxu0
    %v6458 = vadd.f32 %v6285, %v6457
    %v6459 = vpop.f32.mrf.mxu0
    %v6460 = vpop.f32.mrf.mxu0
    %v6461 = vadd.f32 %v6285, %v6460
    %v6462 = vpop.f32.mrf.mxu0
    %6463 = vmatprep.mubr.bf16.mxu0 0
    %6464 = vmatmul.mubr.bf16.gmra.mxu0 %v6277
    %v6465 = vpop.f32.mrf.mxu0
    %v6466 = vadd.f32 %v6285, %v6465
    %v6467 = vpop.f32.mrf.mxu0
    %v6468 = vpop.f32.mrf.mxu0
    %v6469 = vadd.f32 %v6285, %v6468
    %v6470 = vpop.f32.mrf.mxu0
    %6471 = vmatprep.mubr.bf16.mxu0 0
    %6472 = vmatmul.mubr.bf16.gmra.mxu0 %v6278
    %v6473 = vpop.f32.mrf.mxu0
    %v6474 = vadd.f32 %v6285, %v6473
    %v6475 = vpop.f32.mrf.mxu0
    %v6476 = vpop.f32.mrf.mxu0
    %v6477 = vadd.f32 %v6285, %v6476
    %v6478 = vpop.f32.mrf.mxu0
    %6479 = vmatprep.mubr.bf16.mxu0 0
    %6480 = vmatmul.mubr.bf16.gmra.mxu0 %v6279
    %v6481 = vpop.f32.mrf.mxu0
    %v6482 = vadd.f32 %v6285, %v6481
    %v6483 = vpop.f32.mrf.mxu0
    %v6484 = vpop.f32.mrf.mxu0
    %v6485 = vadd.f32 %v6285, %v6484
    %v6486 = vpop.f32.mrf.mxu0
    %6487 = vmatprep.mubr.bf16.mxu0 0
    %6488 = vmatmul.mubr.bf16.gmra.mxu0 %v6280
    %v6489 = vpop.f32.mrf.mxu0
    %v6490 = vadd.f32 %v6285, %v6489
    %v6491 = vpop.f32.mrf.mxu0
    %v6492 = vpop.f32.mrf.mxu0
    %v6493 = vadd.f32 %v6285, %v6492
    %v6494 = vpop.f32.mrf.mxu0
    %6495 = vdwg.mxu0
    %v6496 = vpack.c.bf16 %v6373, %v6370
    %v6497 = vpack.c.bf16 %v6381, %v6378
    %v6498 = vpack.c.bf16 %v6389, %v6386
    %v6499 = vpack.c.bf16 %v6397, %v6394
    %v6500 = vpack.c.bf16 %v6405, %v6402
    %v6501 = vpack.c.bf16 %v6413, %v6410
    %v6502 = vpack.c.bf16 %v6421, %v6418
    %v6503 = vpack.c.bf16 %v6429, %v6426
    %v6504 = vpack.c.bf16 %v6437, %v6434
    %v6505 = vpack.c.bf16 %v6445, %v6442
    %v6506 = vpack.c.bf16 %v6453, %v6450
    %v6507 = vpack.c.bf16 %v6461, %v6458
    %v6508 = vpack.c.bf16 %v6469, %v6466
    %v6509 = vpack.c.bf16 %v6477, %v6474
    %v6510 = vpack.c.bf16 %v6485, %v6482
    %v6511 = vpack.c.bf16 %v6493, %v6490
    %v6528 = vunpack.c.l.b16 %v6496
    %v6529 = vunpack.c.h.b16 %v6496
    %v6530 = vunpack.c.l.b16 %v6497
    %v6531 = vunpack.c.h.b16 %v6497
    %v6532 = vunpack.c.l.b16 %v6498
    %v6533 = vunpack.c.h.b16 %v6498
    %v6534 = vunpack.c.l.b16 %v6499
    %v6535 = vunpack.c.h.b16 %v6499
    %v6536 = vunpack.c.l.b16 %v6500
    %v6537 = vunpack.c.h.b16 %v6500
    %v6538 = vunpack.c.l.b16 %v6501
    %v6539 = vunpack.c.h.b16 %v6501
    %v6540 = vunpack.c.l.b16 %v6502
    %v6541 = vunpack.c.h.b16 %v6502
    %v6542 = vunpack.c.l.b16 %v6503
    %v6543 = vunpack.c.h.b16 %v6503
    %v6544 = vunpack.c.l.b16 %v6504
    %v6545 = vunpack.c.h.b16 %v6504
    %v6546 = vunpack.c.l.b16 %v6505
    %v6547 = vunpack.c.h.b16 %v6505
    %v6548 = vunpack.c.l.b16 %v6506
    %v6549 = vunpack.c.h.b16 %v6506
    %v6550 = vunpack.c.l.b16 %v6507
    %v6551 = vunpack.c.h.b16 %v6507
    %v6552 = vunpack.c.l.b16 %v6508
    %v6553 = vunpack.c.h.b16 %v6508
    %v6554 = vunpack.c.l.b16 %v6509
    %v6555 = vunpack.c.h.b16 %v6509
    %v6556 = vunpack.c.l.b16 %v6510
    %v6557 = vunpack.c.h.b16 %v6510
    %v6558 = vunpack.c.l.b16 %v6511
    %v6559 = vunpack.c.h.b16 %v6511
    %v6560 = vpack.c.b16 %v6528, %v6528
    %v6561 = vpack.c.b16 %v6529, %v6529
    %v6562 = vpack.c.b16 %v6530, %v6530
    %v6563 = vpack.c.b16 %v6531, %v6531
    %v6564 = vpack.c.b16 %v6532, %v6532
    %v6565 = vpack.c.b16 %v6533, %v6533
    %v6566 = vpack.c.b16 %v6534, %v6534
    %v6567 = vpack.c.b16 %v6535, %v6535
    %v6568 = vpack.c.b16 %v6536, %v6536
    %v6569 = vpack.c.b16 %v6537, %v6537
    %v6570 = vpack.c.b16 %v6538, %v6538
    %v6571 = vpack.c.b16 %v6539, %v6539
    %v6572 = vpack.c.b16 %v6540, %v6540
    %v6573 = vpack.c.b16 %v6541, %v6541
    %v6574 = vpack.c.b16 %v6542, %v6542
    %v6575 = vpack.c.b16 %v6543, %v6543
    %v6576 = vpack.c.b16 %v6544, %v6544
    %v6577 = vpack.c.b16 %v6545, %v6545
    %v6578 = vpack.c.b16 %v6546, %v6546
    %v6579 = vpack.c.b16 %v6547, %v6547
    %v6580 = vpack.c.b16 %v6548, %v6548
    %v6581 = vpack.c.b16 %v6549, %v6549
    %v6582 = vpack.c.b16 %v6550, %v6550
    %v6583 = vpack.c.b16 %v6551, %v6551
    %v6584 = vpack.c.b16 %v6552, %v6552
    %v6585 = vpack.c.b16 %v6553, %v6553
    %v6586 = vpack.c.b16 %v6554, %v6554
    %v6587 = vpack.c.b16 %v6555, %v6555
    %v6588 = vpack.c.b16 %v6556, %v6556
    %v6589 = vpack.c.b16 %v6557, %v6557
    %v6590 = vpack.c.b16 %v6558, %v6558
    %v6591 = vpack.c.b16 %v6559, %v6559
    %6624 = vst [vmem:[%s9] sm:$0xf] %v6560
    %6625 = vst [vmem:[%s9 + $0x4] sm:$0xf] %v6561
    %6626 = vst [vmem:[%s9 + $0x8] sm:$0xf] %v6562
    %6627 = vst [vmem:[%s9 + $0xc] sm:$0xf] %v6563
    %6628 = vst [vmem:[%s9 + $0x10] sm:$0xf] %v6564
    %6629 = vst [vmem:[%s9 + $0x14] sm:$0xf] %v6565
    %6630 = vst [vmem:[%s9 + $0x18] sm:$0xf] %v6566
    %6631 = vst [vmem:[%s9 + $0x1c] sm:$0xf] %v6567
    %6632 = vst [vmem:[%s9 + $0x20] sm:$0xf] %v6568
    %6633 = vst [vmem:[%s9 + $0x24] sm:$0xf] %v6569
    %6634 = vst [vmem:[%s9 + $0x28] sm:$0xf] %v6570
    %6635 = vst [vmem:[%s9 + $0x2c] sm:$0xf] %v6571
    %6636 = vst [vmem:[%s9 + $0x30] sm:$0xf] %v6572
    %6637 = vst [vmem:[%s9 + $0x34] sm:$0xf] %v6573
    %6638 = vst [vmem:[%s9 + $0x38] sm:$0xf] %v6574
    %6639 = vst [vmem:[%s9 + $0x3c] sm:$0xf] %v6575
    %6640 = vst [vmem:[%s9 + $0x40] sm:$0xf] %v6576
    %6641 = vst [vmem:[%s9 + $0x44] sm:$0xf] %v6577
    %6642 = vst [vmem:[%s9 + $0x48] sm:$0xf] %v6578
    %6643 = vst [vmem:[%s9 + $0x4c] sm:$0xf] %v6579
    %6644 = vst [vmem:[%s9 + $0x50] sm:$0xf] %v6580
    %6645 = vst [vmem:[%s9 + $0x54] sm:$0xf] %v6581
    %6646 = vst [vmem:[%s9 + $0x58] sm:$0xf] %v6582
    %6647 = vst [vmem:[%s9 + $0x5c] sm:$0xf] %v6583
    %6648 = vst [vmem:[%s9 + $0x60] sm:$0xf] %v6584
    %6649 = vst [vmem:[%s9 + $0x64] sm:$0xf] %v6585
    %6650 = vst [vmem:[%s9 + $0x68] sm:$0xf] %v6586
    %6651 = vst [vmem:[%s9 + $0x6c] sm:$0xf] %v6587
    %6652 = vst [vmem:[%s9 + $0x70] sm:$0xf] %v6588
    %6653 = vst [vmem:[%s9 + $0x74] sm:$0xf] %v6589
    %6654 = vst [vmem:[%s9 + $0x78] sm:$0xf] %v6590
    %6655 = vst [vmem:[%s9 + $0x7c] sm:$0xf] %v6591
    // Predicated region
    $region46: #{_hmmved_forward_impl.1} parent=1 // pred_check
      _
    $region47: #{_hmmved_forward_impl.1} parent=1 // pred_check_branch
      %6657 = sbr.rel (0) target = $region49
    $region48: #{_hmmved_forward_impl.1} parent=1 // pred_region
      _
    $region49: #{_hmmved_forward_impl.1} parent=1 // pred_fallthru
      _
    // Predicated region
    $region50: #{_hmmved_forward_impl.1} parent=1 // pred_check
      _
    $region51: #{_hmmved_forward_impl.1} parent=1 // pred_check_branch
      %6659 = sbr.rel (0) target = $region53
    $region52: #{_hmmved_forward_impl.1} parent=1 // pred_region
      _
    $region53: #{_hmmved_forward_impl.1} parent=1 // pred_fallthru
      _
    %6660 = vsyncpa [#allocation3], 1
    %6661 = vsyncpa [#allocation5], 1

</llo_original>
